<compile_context>
chip_gen: v5e
topology: v5e:2x2
jax: 0.10.0
libtpu: 0.0.40
codegen_flags: <defaults>
</compile_context>

<pallas_src>
from functools import partial

import numpy as np
import jax
import jax.numpy as jnp
from jax.experimental import pallas as pl
from jax.experimental.pallas import tpu as pltpu


# ----------------------------- in-kernel helpers -----------------------------

def _erf(z):
    # Abramowitz & Stegun 7.1.26 (max abs err ~1.5e-7); only needs exp (EUP).
    p = 0.3275911
    a1, a2, a3, a4, a5 = (0.254829592, -0.284496736, 1.421413741,
                          -1.453152027, 1.061405429)
    az = jnp.abs(z)
    t = 1.0 / (1.0 + p * az)
    poly = t * (a1 + t * (a2 + t * (a3 + t * (a4 + t * a5))))
    y = 1.0 - poly * jnp.exp(-az * az)
    return jnp.where(z < 0.0, -y, y)


def _gelu_exact(x):
    # matches torch.nn.functional.gelu (erf form) to ~1e-7
    return 0.5 * x * (1.0 + _erf(x * np.float32(1.0 / np.sqrt(2.0))))


# --------------------------------- kernel ------------------------------------

def _dse_kernel(xs_ref, fwd_ref, inv_ref, lr_ref, li_ref, o_ref):
    # xs_ref : (1, Bt, dv*2*S) f32   lanes = (channel, re/im, grid point)
    # fwd_ref: (dv*2*S, Kp)    bf16  block-diag-over-channel forward transform,
    #                                real-block packed, zero-padded to Kp cols
    # inv_ref: (Kp, dv*2*S)    bf16  fused spectral-mixing + inverse transform
    # lr_ref : (dv, dv)        f32   SMEM  GridLinear weights (real path)
    # li_ref : (dv, dv)        f32   SMEM  GridLinear weights (imag path)
    # o_ref  : (1, Bt, dv*2*S) f32
    dv = lr_ref.shape[0]
    lw = xs_ref.shape[2]
    s2 = lw // dv               # 2 * nY * nX
    s = s2 // 2                 # nY * nX

    xs = xs_ref[0]                                            # (Bt, dv*2S) f32

    # [R2][R3][R4] two lane-dense MXU dots: (forward transform), then the
    # host-precomposed (spectral mixing + inverse transform).
    ft = jnp.dot(xs.astype(jnp.bfloat16), fwd_ref[...],
                 preferred_element_type=jnp.float32)          # (Bt, Kp)
    v = jnp.dot(ft.astype(jnp.bfloat16), inv_ref[...],
                preferred_element_type=jnp.float32)           # (Bt, dv*2S)

    # [R8] GridLinear residual, exact f32:
    #   w[:, (o,re,s)] = sum_i Lr[o,i] * x[:, (i,re,s)]
    #   w[:, (o,im,s)] = sum_i Li[o,i] * x[:, (i,im,s)]
    # 2*dv*dv scalar x lane-aligned-block FMAs; weights read as SMEM scalars,
    # so no array broadcasts and no kron operator.
    w_blocks = []
    for o in range(dv):
        wr = lr_ref[o, 0] * xs[:, 0:s]
        wi = li_ref[o, 0] * xs[:, s:s2]
        for i in range(1, dv):
            base = i * s2
            wr = wr + lr_ref[o, i] * xs[:, base:base + s]
            wi = wi + li_ref[o, i] * xs[:, base + s:base + s2]
        w_blocks.append(wr)
        w_blocks.append(wi)
    w = jnp.concatenate(w_blocks, axis=-1)                    # (Bt, dv*2S)

    # residual + exact (erf) GELU on real/imag lanes; one lane-dense store.
    o_ref[0] = _gelu_exact(v + w)


# --------------------------------- wrapper ------------------------------------

def _pick_num_steps(B):
    # [R1] Fold the entire batch into one grid step (single-TC v5e/v6e; tiny
    # steps don't pay on v7x either).  Split into two steps only when each half
    # still fills the MXU M dimension with >=128 batch rows.
    if B >= 256 and B % 2 == 0:
        return 2
    return 1


def _vandermonde_ops(nY, nX, kX, kY):
    """numpy (shape-only) forward/inverse Vandermonde-Fourier operators."""
    S = nY * nX
    Mm = 2 * kX * kY
    m = np.concatenate([np.arange(kX), np.arange(-kX, 0)]).astype(np.float64)
    n = np.arange(kY, dtype=np.float64)
    px = (2.0 * np.pi / nX) * np.arange(nX)
    py = (2.0 * np.pi / nY) * np.arange(nY)
    Ax = np.exp(-1j * np.outer(m, px))                        # (2kX, nX)
    Ay = np.exp(-1j * np.outer(n, py))                        # (kY, nY)
    # forward:  x_ft[(y,x)->s, (m,n)->mode] ;  inverse has 1/(nY*nX) folded in
    Bfwd = np.einsum('mx,ny->yxmn', Ax, Ay).reshape(S, Mm)
    Binv = np.einsum('mx,ny->mnyx', np.conj(Ax), np.conj(Ay)).reshape(Mm, S) / (nY * nX)
    return Bfwd, Binv


@partial(jax.jit, static_argnames=("kX", "kY"))
def dse_layer_forward(x, W1, W2, Lr, Li, *, kX, kY):
    """x: complex64 [B, dv, nY, nX] -> complex64 [B, dv, nY, nX]."""
    B, dv, nY, nX = x.shape
    S = nY * nX
    Mm = 2 * kX * kY
    steps = _pick_num_steps(B)
    Bt = B // steps
    Lw = dv * 2 * S                       # lane width of the data slab
    K2 = dv * 2 * Mm                      # spectral width before padding
    Kp = ((K2 + 127) // 128) * 128        # [R7] lane-dense spectral width
    f32, bf16 = jnp.float32, jnp.bfloat16

    # ---- host-side operators (shape-only parts in numpy) [R9] ----
    Bfwd, Binv = _vandermonde_ops(nY, nX, kX, kY)
    Fr, Fi = np.real(Bfwd), np.imag(Bfwd)
    rb_fwd = np.block([[Fr, Fi], [-Fi, Fr]])                  # (2S, 2Mm) real-block [R2]
    fwd_np = np.kron(np.eye(dv), rb_fwd).astype(np.float32)   # block-diag over channels
    if Kp != K2:
        fwd_np = np.concatenate(
            [fwd_np, np.zeros((dv * 2 * S, Kp - K2), np.float32)], axis=1)
    fwd_op = jnp.asarray(fwd_np, dtype=bf16)                  # [R4]

    # [R3] fused mixing + inverse: C[(i,m),(o,s)] = Wc[i,o,m] * Binv[m,s] (complex),
    # real-block packed with rows=(i, re/im, m) and cols=(o, re/im, s).
    Wc = jnp.concatenate([W1, W2], axis=2).reshape(dv, dv, Mm).astype(jnp.complex64)
    Cc = jnp.einsum('iom,ms->imos', Wc, jnp.asarray(Binv.astype(np.complex64)))
    Cr, Ci = jnp.real(Cc), jnp.imag(Cc)                       # (dv, Mm, dv, S)
    top = jnp.stack([Cr, Ci], axis=3)                         # input-real rows
    bot = jnp.stack([-Ci, Cr], axis=3)                        # input-imag rows
    inv_op = jnp.stack([top, bot], axis=1).reshape(K2, Lw)
    if Kp != K2:
        inv_op = jnp.concatenate(
            [inv_op, jnp.zeros((Kp - K2, Lw), inv_op.dtype)], axis=0)
    inv_op = inv_op.astype(bf16)                              # [R4]

    lr32 = Lr.astype(f32)
    li32 = Li.astype(f32)

    # ---- canonical lane-dense data slab: (steps, Bt, dv*2*S) ----
    xr = jnp.real(x).astype(f32)
    xi = jnp.imag(x).astype(f32)
    xs = jnp.stack([xr, xi], axis=2).reshape(steps, Bt, Lw)

    data_spec = pl.BlockSpec((1, Bt, Lw), lambda g: (g, 0, 0))

    # [R5/R6] VMEM budget derived from actual block / constant sizes.
    slab_bytes = Bt * Lw * 4
    const_bytes = (fwd_op.size + inv_op.size) * 2             # bf16
    need = 2 * (2 * slab_bytes) + 2 * const_bytes + (2 << 20)
    vmem_limit = int(min(100 << 20, max(2 * need, 8 << 20)))

    cost = pl.CostEstimate(
        flops=int(steps * (2 * Bt * Lw * Kp + 2 * Bt * Kp * Lw
                           + 4 * Bt * dv * dv * S)),
        transcendentals=int(steps * Bt * Lw),
        bytes_accessed=int(2 * steps * slab_bytes + const_bytes + 2 * dv * dv * 4))

    out = pl.pallas_call(
        _dse_kernel,
        out_shape=jax.ShapeDtypeStruct((steps, Bt, Lw), f32),
        grid_spec=pltpu.PrefetchScalarGridSpec(
            num_scalar_prefetch=0,
            grid=(steps,),
            in_specs=[
                data_spec,
                pl.BlockSpec((dv * 2 * S, Kp), lambda g: (0, 0)),
                pl.BlockSpec((Kp, Lw), lambda g: (0, 0)),
                pl.BlockSpec(memory_space=pltpu.MemorySpace.SMEM),
                pl.BlockSpec(memory_space=pltpu.MemorySpace.SMEM),
            ],
            out_specs=data_spec),
        compiler_params=pltpu.CompilerParams(
            dimension_semantics=("parallel",),
            vmem_limit_bytes=vmem_limit),
        cost_estimate=cost,
    )(xs, fwd_op, inv_op, lr32, li32)

    out = out.reshape(B, dv, 2, nY, nX)
    return jax.lax.complex(out[:, :, 0], out[:, :, 1])


# -------------------------- pure-JAX reference --------------------------------

def dse_layer_reference(x, W1, W2, Lr, Li, kX, kY):
    B, dv, nY, nX = x.shape
    m_modes = jnp.concatenate([jnp.arange(kX), jnp.arange(-kX, 0)]).astype(jnp.float32)
    n_modes = jnp.arange(kY, dtype=jnp.float32)
    px = (2.0 * np.pi / nX) * jnp.arange(nX, dtype=jnp.float32)
    py = (2.0 * np.pi / nY) * jnp.arange(nY, dtype=jnp.float32)
    Ax = jnp.exp(-1j * m_modes[:, None] * px[None, :])
    Ay = jnp.exp(-1j * n_modes[:, None] * py[None, :])
    hi = jax.lax.Precision.HIGHEST

    # transformer.forward
    x_ft = jnp.einsum('bcyx,mx,ny->bcmn', x, Ax, Ay, precision=hi)
    # SpectralConv2d_dse: compl_mul2d on low / high X-modes
    out1 = jnp.einsum('bimn,iomn->bomn', x_ft[:, :, :kX, :], W1, precision=hi)
    out2 = jnp.einsum('bimn,iomn->bomn', x_ft[:, :, -kX:, :], W2, precision=hi)
    out_ft = jnp.concatenate([out1, out2], axis=2)
    # transformer.inverse
    v = jnp.einsum('bomn,mx,ny->boyx', out_ft, jnp.conj(Ax), jnp.conj(Ay),
                   precision=hi) / (nY * nX)
    # Wr(x.real) + 1j*Wi(x.imag)  (GridLinear: pointwise channel linear, no bias)
    w = (jnp.einsum('oi,biyx->boyx', Lr, jnp.real(x), precision=hi)
         + 1j * jnp.einsum('oi,biyx->boyx', Li, jnp.imag(x), precision=hi))
    v = v + w
    return (jax.nn.gelu(jnp.real(v), approximate=False)
            + 1j * jax.nn.gelu(jnp.imag(v), approximate=False))


# ----------------------------------- main --------------------------------------

if __name__ == "__main__":
    B, dv, nY, nX = 2, 4, 16, 16
    kX, kY = 4, 4

    key = jax.random.PRNGKey(0)
    ks = jax.random.split(key, 8)
    scale = 1.0 / (dv * dv)
    W1 = (scale * (jax.random.uniform(ks[0], (dv, dv, kX, kY))
                   + 1j * jax.random.uniform(ks[1], (dv, dv, kX, kY)))).astype(jnp.complex64)
    W2 = (scale * (jax.random.uniform(ks[2], (dv, dv, kX, kY))
                   + 1j * jax.random.uniform(ks[3], (dv, dv, kX, kY)))).astype(jnp.complex64)
    bound = 1.0 / np.sqrt(dv)
    Lr = jax.random.uniform(ks[4], (dv, dv), jnp.float32, -bound, bound)
    Li = jax.random.uniform(ks[5], (dv, dv), jnp.float32, -bound, bound)
    x = (jax.random.normal(ks[6], (B, dv, nY, nX))
         + 1j * jax.random.normal(ks[7], (B, dv, nY, nX))).astype(jnp.complex64)

    out = dse_layer_forward(x, W1, W2, Lr, Li, kX=kX, kY=kY)
    out = jax.block_until_ready(out)

    ref = dse_layer_reference(x, W1, W2, Lr, Li, kX, kY)
    np.testing.assert_allclose(np.asarray(jnp.real(out)), np.asarray(jnp.real(ref)),
                               rtol=2e-2, atol=2e-2)
    np.testing.assert_allclose(np.asarray(jnp.imag(out)), np.asarray(jnp.imag(ref)),
                               rtol=2e-2, atol=2e-2)
    print("KERNEL_OK")
</pallas_src>

<mosaic_0001>
module attributes {stable_mosaic.version = 11 : i64} {
  func.func @_dse_kernel(%arg0: i32, %arg1: memref<1x2x2048xf32, #tpu.memory_space<vmem>>, %arg2: memref<2048x256xbf16, #tpu.memory_space<vmem>>, %arg3: memref<256x2048xbf16, #tpu.memory_space<vmem>>, %arg4: memref<4x4xf32, #tpu.memory_space<smem>>, %arg5: memref<4x4xf32, #tpu.memory_space<smem>>, %arg6: memref<1x2x2048xf32, #tpu.memory_space<vmem>>) attributes {dimension_semantics = [#tpu.dimension_semantics<parallel>], iteration_bounds = array<i64: 1>, scalar_prefetch = 0 : i64, scratch_operands = 0 : i64, tpu.core_type = #tpu.core_type<tc>, window_params = [{transform_indices = @transform_0, window_bounds = array<i64: 1, 2, 2048>}, {pipeline_mode = #tpu.pipeline_mode<synchronous>, transform_indices = @transform_1, window_bounds = array<i64: 2048, 256>}, {pipeline_mode = #tpu.pipeline_mode<synchronous>, transform_indices = @transform_2, window_bounds = array<i64: 256, 2048>}, {transform_indices = @transform_3, window_bounds = array<i64: 4, 4>}, {transform_indices = @transform_4, window_bounds = array<i64: 4, 4>}, {transform_indices = @transform_5, window_bounds = array<i64: 1, 2, 2048>}]} {
    %c0 = arith.constant 0 : index
    %c0_0 = arith.constant 0 : index
    %c0_1 = arith.constant 0 : index
    %0 = vector.load %arg1[%c0, %c0_0, %c0_1] : memref<1x2x2048xf32, #tpu.memory_space<vmem>>, vector<1x2x2048xf32>
    %1 = vector.shape_cast %0 : vector<1x2x2048xf32> to vector<2x2048xf32>
    %2 = arith.truncf %1 : vector<2x2048xf32> to vector<2x2048xbf16>
    %c0_2 = arith.constant 0 : index
    %c0_3 = arith.constant 0 : index
    %3 = vector.load %arg2[%c0_2, %c0_3] : memref<2048x256xbf16, #tpu.memory_space<vmem>>, vector<2048x256xbf16>
    %cst = arith.constant dense<0.000000e+00> : vector<2x256xf32>
    %4 = tpu.matmul %2, %3, %cst {dimension_numbers = #tpu.dot_dimension_numbers<[1], [0], [0], [1], [0, 0, 1, 1], [], []>} : vector<2x2048xbf16>, vector<2048x256xbf16>, vector<2x256xf32> -> vector<2x256xf32>
    %5 = arith.truncf %4 : vector<2x256xf32> to vector<2x256xbf16>
    %c0_4 = arith.constant 0 : index
    %c0_5 = arith.constant 0 : index
    %6 = vector.load %arg3[%c0_4, %c0_5] : memref<256x2048xbf16, #tpu.memory_space<vmem>>, vector<256x2048xbf16>
    %cst_6 = arith.constant dense<0.000000e+00> : vector<2x2048xf32>
    %7 = tpu.matmul %5, %6, %cst_6 {dimension_numbers = #tpu.dot_dimension_numbers<[1], [0], [0], [1], [0, 0, 1, 1], [], []>} : vector<2x256xbf16>, vector<256x2048xbf16>, vector<2x2048xf32> -> vector<2x2048xf32>
    %c0_7 = arith.constant 0 : index
    %c0_8 = arith.constant 0 : index
    %8 = memref.load %arg4[%c0_7, %c0_8] : memref<4x4xf32, #tpu.memory_space<smem>>
    %9 = vector.extract_strided_slice %1 {offsets = [0, 0], sizes = [2, 256], strides = [1, 1]} : vector<2x2048xf32> to vector<2x256xf32>
    %10 = vector.broadcast %8 : f32 to vector<2x256xf32>
    %11 = arith.mulf %10, %9 : vector<2x256xf32>
    %c0_9 = arith.constant 0 : index
    %c0_10 = arith.constant 0 : index
    %12 = memref.load %arg5[%c0_9, %c0_10] : memref<4x4xf32, #tpu.memory_space<smem>>
    %13 = vector.extract_strided_slice %1 {offsets = [0, 256], sizes = [2, 256], strides = [1, 1]} : vector<2x2048xf32> to vector<2x256xf32>
    %14 = vector.broadcast %12 : f32 to vector<2x256xf32>
    %15 = arith.mulf %14, %13 : vector<2x256xf32>
    %c0_11 = arith.constant 0 : index
    %c1 = arith.constant 1 : index
    %16 = memref.load %arg4[%c0_11, %c1] : memref<4x4xf32, #tpu.memory_space<smem>>
    %17 = vector.extract_strided_slice %1 {offsets = [0, 512], sizes = [2, 256], strides = [1, 1]} : vector<2x2048xf32> to vector<2x256xf32>
    %18 = vector.broadcast %16 : f32 to vector<2x256xf32>
    %19 = arith.mulf %18, %17 : vector<2x256xf32>
    %20 = arith.addf %11, %19 : vector<2x256xf32>
    %c0_12 = arith.constant 0 : index
    %c1_13 = arith.constant 1 : index
    %21 = memref.load %arg5[%c0_12, %c1_13] : memref<4x4xf32, #tpu.memory_space<smem>>
    %22 = vector.extract_strided_slice %1 {offsets = [0, 768], sizes = [2, 256], strides = [1, 1]} : vector<2x2048xf32> to vector<2x256xf32>
    %23 = vector.broadcast %21 : f32 to vector<2x256xf32>
    %24 = arith.mulf %23, %22 : vector<2x256xf32>
    %25 = arith.addf %15, %24 : vector<2x256xf32>
    %c0_14 = arith.constant 0 : index
    %c2 = arith.constant 2 : index
    %26 = memref.load %arg4[%c0_14, %c2] : memref<4x4xf32, #tpu.memory_space<smem>>
    %27 = vector.extract_strided_slice %1 {offsets = [0, 1024], sizes = [2, 256], strides = [1, 1]} : vector<2x2048xf32> to vector<2x256xf32>
    %28 = vector.broadcast %26 : f32 to vector<2x256xf32>
    %29 = arith.mulf %28, %27 : vector<2x256xf32>
    %30 = arith.addf %20, %29 : vector<2x256xf32>
    %c0_15 = arith.constant 0 : index
    %c2_16 = arith.constant 2 : index
    %31 = memref.load %arg5[%c0_15, %c2_16] : memref<4x4xf32, #tpu.memory_space<smem>>
    %32 = vector.extract_strided_slice %1 {offsets = [0, 1280], sizes = [2, 256], strides = [1, 1]} : vector<2x2048xf32> to vector<2x256xf32>
    %33 = vector.broadcast %31 : f32 to vector<2x256xf32>
    %34 = arith.mulf %33, %32 : vector<2x256xf32>
    %35 = arith.addf %25, %34 : vector<2x256xf32>
    %c0_17 = arith.constant 0 : index
    %c3 = arith.constant 3 : index
    %36 = memref.load %arg4[%c0_17, %c3] : memref<4x4xf32, #tpu.memory_space<smem>>
    %37 = vector.extract_strided_slice %1 {offsets = [0, 1536], sizes = [2, 256], strides = [1, 1]} : vector<2x2048xf32> to vector<2x256xf32>
    %38 = vector.broadcast %36 : f32 to vector<2x256xf32>
    %39 = arith.mulf %38, %37 : vector<2x256xf32>
    %40 = arith.addf %30, %39 : vector<2x256xf32>
    %c0_18 = arith.constant 0 : index
    %c3_19 = arith.constant 3 : index
    %41 = memref.load %arg5[%c0_18, %c3_19] : memref<4x4xf32, #tpu.memory_space<smem>>
    %42 = vector.extract_strided_slice %1 {offsets = [0, 1792], sizes = [2, 256], strides = [1, 1]} : vector<2x2048xf32> to vector<2x256xf32>
    %43 = vector.broadcast %41 : f32 to vector<2x256xf32>
    %44 = arith.mulf %43, %42 : vector<2x256xf32>
    %45 = arith.addf %35, %44 : vector<2x256xf32>
    %c1_20 = arith.constant 1 : index
    %c0_21 = arith.constant 0 : index
    %46 = memref.load %arg4[%c1_20, %c0_21] : memref<4x4xf32, #tpu.memory_space<smem>>
    %47 = vector.extract_strided_slice %1 {offsets = [0, 0], sizes = [2, 256], strides = [1, 1]} : vector<2x2048xf32> to vector<2x256xf32>
    %48 = vector.broadcast %46 : f32 to vector<2x256xf32>
    %49 = arith.mulf %48, %47 : vector<2x256xf32>
    %c1_22 = arith.constant 1 : index
    %c0_23 = arith.constant 0 : index
    %50 = memref.load %arg5[%c1_22, %c0_23] : memref<4x4xf32, #tpu.memory_space<smem>>
    %51 = vector.extract_strided_slice %1 {offsets = [0, 256], sizes = [2, 256], strides = [1, 1]} : vector<2x2048xf32> to vector<2x256xf32>
    %52 = vector.broadcast %50 : f32 to vector<2x256xf32>
    %53 = arith.mulf %52, %51 : vector<2x256xf32>
    %c1_24 = arith.constant 1 : index
    %c1_25 = arith.constant 1 : index
    %54 = memref.load %arg4[%c1_24, %c1_25] : memref<4x4xf32, #tpu.memory_space<smem>>
    %55 = vector.extract_strided_slice %1 {offsets = [0, 512], sizes = [2, 256], strides = [1, 1]} : vector<2x2048xf32> to vector<2x256xf32>
    %56 = vector.broadcast %54 : f32 to vector<2x256xf32>
    %57 = arith.mulf %56, %55 : vector<2x256xf32>
    %58 = arith.addf %49, %57 : vector<2x256xf32>
    %c1_26 = arith.constant 1 : index
    %c1_27 = arith.constant 1 : index
    %59 = memref.load %arg5[%c1_26, %c1_27] : memref<4x4xf32, #tpu.memory_space<smem>>
    %60 = vector.extract_strided_slice %1 {offsets = [0, 768], sizes = [2, 256], strides = [1, 1]} : vector<2x2048xf32> to vector<2x256xf32>
    %61 = vector.broadcast %59 : f32 to vector<2x256xf32>
    %62 = arith.mulf %61, %60 : vector<2x256xf32>
    %63 = arith.addf %53, %62 : vector<2x256xf32>
    %c1_28 = arith.constant 1 : index
    %c2_29 = arith.constant 2 : index
    %64 = memref.load %arg4[%c1_28, %c2_29] : memref<4x4xf32, #tpu.memory_space<smem>>
    %65 = vector.extract_strided_slice %1 {offsets = [0, 1024], sizes = [2, 256], strides = [1, 1]} : vector<2x2048xf32> to vector<2x256xf32>
    %66 = vector.broadcast %64 : f32 to vector<2x256xf32>
    %67 = arith.mulf %66, %65 : vector<2x256xf32>
    %68 = arith.addf %58, %67 : vector<2x256xf32>
    %c1_30 = arith.constant 1 : index
    %c2_31 = arith.constant 2 : index
    %69 = memref.load %arg5[%c1_30, %c2_31] : memref<4x4xf32, #tpu.memory_space<smem>>
    %70 = vector.extract_strided_slice %1 {offsets = [0, 1280], sizes = [2, 256], strides = [1, 1]} : vector<2x2048xf32> to vector<2x256xf32>
    %71 = vector.broadcast %69 : f32 to vector<2x256xf32>
    %72 = arith.mulf %71, %70 : vector<2x256xf32>
    %73 = arith.addf %63, %72 : vector<2x256xf32>
    %c1_32 = arith.constant 1 : index
    %c3_33 = arith.constant 3 : index
    %74 = memref.load %arg4[%c1_32, %c3_33] : memref<4x4xf32, #tpu.memory_space<smem>>
    %75 = vector.extract_strided_slice %1 {offsets = [0, 1536], sizes = [2, 256], strides = [1, 1]} : vector<2x2048xf32> to vector<2x256xf32>
    %76 = vector.broadcast %74 : f32 to vector<2x256xf32>
    %77 = arith.mulf %76, %75 : vector<2x256xf32>
    %78 = arith.addf %68, %77 : vector<2x256xf32>
    %c1_34 = arith.constant 1 : index
    %c3_35 = arith.constant 3 : index
    %79 = memref.load %arg5[%c1_34, %c3_35] : memref<4x4xf32, #tpu.memory_space<smem>>
    %80 = vector.extract_strided_slice %1 {offsets = [0, 1792], sizes = [2, 256], strides = [1, 1]} : vector<2x2048xf32> to vector<2x256xf32>
    %81 = vector.broadcast %79 : f32 to vector<2x256xf32>
    %82 = arith.mulf %81, %80 : vector<2x256xf32>
    %83 = arith.addf %73, %82 : vector<2x256xf32>
    %c2_36 = arith.constant 2 : index
    %c0_37 = arith.constant 0 : index
    %84 = memref.load %arg4[%c2_36, %c0_37] : memref<4x4xf32, #tpu.memory_space<smem>>
    %85 = vector.extract_strided_slice %1 {offsets = [0, 0], sizes = [2, 256], strides = [1, 1]} : vector<2x2048xf32> to vector<2x256xf32>
    %86 = vector.broadcast %84 : f32 to vector<2x256xf32>
    %87 = arith.mulf %86, %85 : vector<2x256xf32>
    %c2_38 = arith.constant 2 : index
    %c0_39 = arith.constant 0 : index
    %88 = memref.load %arg5[%c2_38, %c0_39] : memref<4x4xf32, #tpu.memory_space<smem>>
    %89 = vector.extract_strided_slice %1 {offsets = [0, 256], sizes = [2, 256], strides = [1, 1]} : vector<2x2048xf32> to vector<2x256xf32>
    %90 = vector.broadcast %88 : f32 to vector<2x256xf32>
    %91 = arith.mulf %90, %89 : vector<2x256xf32>
    %c2_40 = arith.constant 2 : index
    %c1_41 = arith.constant 1 : index
    %92 = memref.load %arg4[%c2_40, %c1_41] : memref<4x4xf32, #tpu.memory_space<smem>>
    %93 = vector.extract_strided_slice %1 {offsets = [0, 512], sizes = [2, 256], strides = [1, 1]} : vector<2x2048xf32> to vector<2x256xf32>
    %94 = vector.broadcast %92 : f32 to vector<2x256xf32>
    %95 = arith.mulf %94, %93 : vector<2x256xf32>
    %96 = arith.addf %87, %95 : vector<2x256xf32>
    %c2_42 = arith.constant 2 : index
    %c1_43 = arith.constant 1 : index
    %97 = memref.load %arg5[%c2_42, %c1_43] : memref<4x4xf32, #tpu.memory_space<smem>>
    %98 = vector.extract_strided_slice %1 {offsets = [0, 768], sizes = [2, 256], strides = [1, 1]} : vector<2x2048xf32> to vector<2x256xf32>
    %99 = vector.broadcast %97 : f32 to vector<2x256xf32>
    %100 = arith.mulf %99, %98 : vector<2x256xf32>
    %101 = arith.addf %91, %100 : vector<2x256xf32>
    %c2_44 = arith.constant 2 : index
    %c2_45 = arith.constant 2 : index
    %102 = memref.load %arg4[%c2_44, %c2_45] : memref<4x4xf32, #tpu.memory_space<smem>>
    %103 = vector.extract_strided_slice %1 {offsets = [0, 1024], sizes = [2, 256], strides = [1, 1]} : vector<2x2048xf32> to vector<2x256xf32>
    %104 = vector.broadcast %102 : f32 to vector<2x256xf32>
    %105 = arith.mulf %104, %103 : vector<2x256xf32>
    %106 = arith.addf %96, %105 : vector<2x256xf32>
    %c2_46 = arith.constant 2 : index
    %c2_47 = arith.constant 2 : index
    %107 = memref.load %arg5[%c2_46, %c2_47] : memref<4x4xf32, #tpu.memory_space<smem>>
    %108 = vector.extract_strided_slice %1 {offsets = [0, 1280], sizes = [2, 256], strides = [1, 1]} : vector<2x2048xf32> to vector<2x256xf32>
    %109 = vector.broadcast %107 : f32 to vector<2x256xf32>
    %110 = arith.mulf %109, %108 : vector<2x256xf32>
    %111 = arith.addf %101, %110 : vector<2x256xf32>
    %c2_48 = arith.constant 2 : index
    %c3_49 = arith.constant 3 : index
    %112 = memref.load %arg4[%c2_48, %c3_49] : memref<4x4xf32, #tpu.memory_space<smem>>
    %113 = vector.extract_strided_slice %1 {offsets = [0, 1536], sizes = [2, 256], strides = [1, 1]} : vector<2x2048xf32> to vector<2x256xf32>
    %114 = vector.broadcast %112 : f32 to vector<2x256xf32>
    %115 = arith.mulf %114, %113 : vector<2x256xf32>
    %116 = arith.addf %106, %115 : vector<2x256xf32>
    %c2_50 = arith.constant 2 : index
    %c3_51 = arith.constant 3 : index
    %117 = memref.load %arg5[%c2_50, %c3_51] : memref<4x4xf32, #tpu.memory_space<smem>>
    %118 = vector.extract_strided_slice %1 {offsets = [0, 1792], sizes = [2, 256], strides = [1, 1]} : vector<2x2048xf32> to vector<2x256xf32>
    %119 = vector.broadcast %117 : f32 to vector<2x256xf32>
    %120 = arith.mulf %119, %118 : vector<2x256xf32>
    %121 = arith.addf %111, %120 : vector<2x256xf32>
    %c3_52 = arith.constant 3 : index
    %c0_53 = arith.constant 0 : index
    %122 = memref.load %arg4[%c3_52, %c0_53] : memref<4x4xf32, #tpu.memory_space<smem>>
    %123 = vector.extract_strided_slice %1 {offsets = [0, 0], sizes = [2, 256], strides = [1, 1]} : vector<2x2048xf32> to vector<2x256xf32>
    %124 = vector.broadcast %122 : f32 to vector<2x256xf32>
    %125 = arith.mulf %124, %123 : vector<2x256xf32>
    %c3_54 = arith.constant 3 : index
    %c0_55 = arith.constant 0 : index
    %126 = memref.load %arg5[%c3_54, %c0_55] : memref<4x4xf32, #tpu.memory_space<smem>>
    %127 = vector.extract_strided_slice %1 {offsets = [0, 256], sizes = [2, 256], strides = [1, 1]} : vector<2x2048xf32> to vector<2x256xf32>
    %128 = vector.broadcast %126 : f32 to vector<2x256xf32>
    %129 = arith.mulf %128, %127 : vector<2x256xf32>
    %c3_56 = arith.constant 3 : index
    %c1_57 = arith.constant 1 : index
    %130 = memref.load %arg4[%c3_56, %c1_57] : memref<4x4xf32, #tpu.memory_space<smem>>
    %131 = vector.extract_strided_slice %1 {offsets = [0, 512], sizes = [2, 256], strides = [1, 1]} : vector<2x2048xf32> to vector<2x256xf32>
    %132 = vector.broadcast %130 : f32 to vector<2x256xf32>
    %133 = arith.mulf %132, %131 : vector<2x256xf32>
    %134 = arith.addf %125, %133 : vector<2x256xf32>
    %c3_58 = arith.constant 3 : index
    %c1_59 = arith.constant 1 : index
    %135 = memref.load %arg5[%c3_58, %c1_59] : memref<4x4xf32, #tpu.memory_space<smem>>
    %136 = vector.extract_strided_slice %1 {offsets = [0, 768], sizes = [2, 256], strides = [1, 1]} : vector<2x2048xf32> to vector<2x256xf32>
    %137 = vector.broadcast %135 : f32 to vector<2x256xf32>
    %138 = arith.mulf %137, %136 : vector<2x256xf32>
    %139 = arith.addf %129, %138 : vector<2x256xf32>
    %c3_60 = arith.constant 3 : index
    %c2_61 = arith.constant 2 : index
    %140 = memref.load %arg4[%c3_60, %c2_61] : memref<4x4xf32, #tpu.memory_space<smem>>
    %141 = vector.extract_strided_slice %1 {offsets = [0, 1024], sizes = [2, 256], strides = [1, 1]} : vector<2x2048xf32> to vector<2x256xf32>
    %142 = vector.broadcast %140 : f32 to vector<2x256xf32>
    %143 = arith.mulf %142, %141 : vector<2x256xf32>
    %144 = arith.addf %134, %143 : vector<2x256xf32>
    %c3_62 = arith.constant 3 : index
    %c2_63 = arith.constant 2 : index
    %145 = memref.load %arg5[%c3_62, %c2_63] : memref<4x4xf32, #tpu.memory_space<smem>>
    %146 = vector.extract_strided_slice %1 {offsets = [0, 1280], sizes = [2, 256], strides = [1, 1]} : vector<2x2048xf32> to vector<2x256xf32>
    %147 = vector.broadcast %145 : f32 to vector<2x256xf32>
    %148 = arith.mulf %147, %146 : vector<2x256xf32>
    %149 = arith.addf %139, %148 : vector<2x256xf32>
    %c3_64 = arith.constant 3 : index
    %c3_65 = arith.constant 3 : index
    %150 = memref.load %arg4[%c3_64, %c3_65] : memref<4x4xf32, #tpu.memory_space<smem>>
    %151 = vector.extract_strided_slice %1 {offsets = [0, 1536], sizes = [2, 256], strides = [1, 1]} : vector<2x2048xf32> to vector<2x256xf32>
    %152 = vector.broadcast %150 : f32 to vector<2x256xf32>
    %153 = arith.mulf %152, %151 : vector<2x256xf32>
    %154 = arith.addf %144, %153 : vector<2x256xf32>
    %c3_66 = arith.constant 3 : index
    %c3_67 = arith.constant 3 : index
    %155 = memref.load %arg5[%c3_66, %c3_67] : memref<4x4xf32, #tpu.memory_space<smem>>
    %156 = vector.extract_strided_slice %1 {offsets = [0, 1792], sizes = [2, 256], strides = [1, 1]} : vector<2x2048xf32> to vector<2x256xf32>
    %157 = vector.broadcast %155 : f32 to vector<2x256xf32>
    %158 = arith.mulf %157, %156 : vector<2x256xf32>
    %159 = arith.addf %149, %158 : vector<2x256xf32>
    %160 = tpu.concatenate %40, %45, %78, %83, %116, %121, %154, %159 in 1 : vector<2x256xf32>, vector<2x256xf32>, vector<2x256xf32>, vector<2x256xf32>, vector<2x256xf32>, vector<2x256xf32>, vector<2x256xf32>, vector<2x256xf32> -> vector<2x2048xf32>
    %161 = arith.addf %7, %160 : vector<2x2048xf32>
    %cst_68 = arith.constant 5.000000e-01 : f32
    %162 = vector.broadcast %cst_68 : f32 to vector<2x2048xf32>
    %163 = arith.mulf %162, %161 : vector<2x2048xf32>
    %cst_69 = arith.constant 0.707106769 : f32
    %164 = vector.broadcast %cst_69 : f32 to vector<2x2048xf32>
    %165 = arith.mulf %161, %164 : vector<2x2048xf32>
    %166 = math.absf %165 : vector<2x2048xf32>
    %cst_70 = arith.constant 0.327591091 : f32
    %167 = vector.broadcast %cst_70 : f32 to vector<2x2048xf32>
    %168 = arith.mulf %167, %166 : vector<2x2048xf32>
    %cst_71 = arith.constant 1.000000e+00 : f32
    %169 = vector.broadcast %cst_71 : f32 to vector<2x2048xf32>
    %170 = arith.addf %169, %168 : vector<2x2048xf32>
    %cst_72 = arith.constant 1.000000e+00 : f32
    %171 = vector.broadcast %cst_72 : f32 to vector<2x2048xf32>
    %172 = arith.divf %171, %170 : vector<2x2048xf32>
    %cst_73 = arith.constant 1.06140542 : f32
    %173 = vector.broadcast %cst_73 : f32 to vector<2x2048xf32>
    %174 = arith.mulf %172, %173 : vector<2x2048xf32>
    %cst_74 = arith.constant -1.45315206 : f32
    %175 = vector.broadcast %cst_74 : f32 to vector<2x2048xf32>
    %176 = arith.addf %175, %174 : vector<2x2048xf32>
    %177 = arith.mulf %172, %176 : vector<2x2048xf32>
    %cst_75 = arith.constant 1.42141378 : f32
    %178 = vector.broadcast %cst_75 : f32 to vector<2x2048xf32>
    %179 = arith.addf %178, %177 : vector<2x2048xf32>
    %180 = arith.mulf %172, %179 : vector<2x2048xf32>
    %cst_76 = arith.constant -0.284496725 : f32
    %181 = vector.broadcast %cst_76 : f32 to vector<2x2048xf32>
    %182 = arith.addf %181, %180 : vector<2x2048xf32>
    %183 = arith.mulf %172, %182 : vector<2x2048xf32>
    %cst_77 = arith.constant 0.254829586 : f32
    %184 = vector.broadcast %cst_77 : f32 to vector<2x2048xf32>
    %185 = arith.addf %184, %183 : vector<2x2048xf32>
    %186 = arith.mulf %172, %185 : vector<2x2048xf32>
    %cst_78 = arith.constant 0.000000e+00 : f32
    %187 = vector.broadcast %cst_78 : f32 to vector<2x2048xf32>
    %188 = arith.subf %187, %166 : vector<2x2048xf32>
    %189 = arith.mulf %188, %166 : vector<2x2048xf32>
    %190 = math.exp %189 : vector<2x2048xf32>
    %191 = arith.mulf %186, %190 : vector<2x2048xf32>
    %cst_79 = arith.constant 1.000000e+00 : f32
    %192 = vector.broadcast %cst_79 : f32 to vector<2x2048xf32>
    %193 = arith.subf %192, %191 : vector<2x2048xf32>
    %cst_80 = arith.constant 0.000000e+00 : f32
    %194 = vector.broadcast %cst_80 : f32 to vector<2x2048xf32>
    %195 = arith.cmpf olt, %165, %194 : vector<2x2048xf32>
    %cst_81 = arith.constant 0.000000e+00 : f32
    %196 = vector.broadcast %cst_81 : f32 to vector<2x2048xf32>
    %197 = arith.subf %196, %193 : vector<2x2048xf32>
    %198 = arith.select %195, %197, %193 : vector<2x2048xi1>, vector<2x2048xf32>
    %cst_82 = arith.constant 1.000000e+00 : f32
    %199 = vector.broadcast %cst_82 : f32 to vector<2x2048xf32>
    %200 = arith.addf %199, %198 : vector<2x2048xf32>
    %201 = arith.mulf %163, %200 : vector<2x2048xf32>
    %c0_83 = arith.constant 0 : index
    %c0_84 = arith.constant 0 : index
    %c0_85 = arith.constant 0 : index
    %202 = vector.load %arg6[%c0_83, %c0_84, %c0_85] : memref<1x2x2048xf32, #tpu.memory_space<vmem>>, vector<1x2x2048xf32>
    %203 = vector.shape_cast %202 : vector<1x2x2048xf32> to vector<2x2048xf32>
    %204 = vector.shape_cast %201 : vector<2x2048xf32> to vector<1x2x2048xf32>
    tpu.vector_store %arg6[%c0_83, %c0_84, %c0_85], %204 {strides = array<i32>} : memref<1x2x2048xf32, #tpu.memory_space<vmem>>, vector<1x2x2048xf32>,
    return
  }
  func.func @transform_0(%arg0: i32) -> (i32, i32, i32) {
    %c0_i32 = arith.constant 0 : i32
    %c0_i32_0 = arith.constant 0 : i32
    %c0_i32_1 = arith.constant 0 : i32
    return %arg0, %c0_i32, %c0_i32_0 : i32, i32, i32
  }
  func.func @transform_1(%arg0: i32) -> (i32, i32) {
    %c0_i32 = arith.constant 0 : i32
    %c0_i32_0 = arith.constant 0 : i32
    %c0_i32_1 = arith.constant 0 : i32
    return %c0_i32, %c0_i32_0 : i32, i32
  }
  func.func @transform_2(%arg0: i32) -> (i32, i32) {
    %c0_i32 = arith.constant 0 : i32
    %c0_i32_0 = arith.constant 0 : i32
    %c0_i32_1 = arith.constant 0 : i32
    return %c0_i32, %c0_i32_0 : i32, i32
  }
  func.func @transform_3(%arg0: i32) -> (i32, i32) {
    %c0_i32 = arith.constant 0 : i32
    %c0_i32_0 = arith.constant 0 : i32
    %c0_i32_1 = arith.constant 0 : i32
    return %c0_i32, %c0_i32_0 : i32, i32
  }
  func.func @transform_4(%arg0: i32) -> (i32, i32) {
    %c0_i32 = arith.constant 0 : i32
    %c0_i32_0 = arith.constant 0 : i32
    %c0_i32_1 = arith.constant 0 : i32
    return %c0_i32, %c0_i32_0 : i32, i32
  }
  func.func @transform_5(%arg0: i32) -> (i32, i32, i32) {
    %c0_i32 = arith.constant 0 : i32
    %c0_i32_0 = arith.constant 0 : i32
    %c0_i32_1 = arith.constant 0 : i32
    return %arg0, %c0_i32, %c0_i32_0 : i32, i32, i32
  }
}

</mosaic_0001>

<llo_original>
// kernel: custom-call.3
$region0: #{custom-call.3}
  %s0 = inlined_call_operand.hbm [shape: c64[4,4,4,4], index: 0, kind: input, shape index: {}]
  %s1 = inlined_call_operand.vmem [shape: f32[4,4,4,4], index: 1, kind: output, shape index: {}]
  %s2 = scalar_lea.hbm %s0, 64
  $region1: #{custom-call.3} parent=0
    #allocation0 [shape = 's32[1]{0}', space=sflag, size = 0x4, scoped, tag = 'scoped memory for custom-call.3']
    %3 = vsyncpa [#allocation0], 0
    %s5 = sshll.u32 %s2, 4
    %s6 = int_to_ptr.hbm [resolvable:$true] %s5
    %s7 = sshll.u32 %s1, 4
    %s8 = int_to_ptr.vmem [resolvable:$true] %s7
    %10 = dma.hbm_to_vmem [thread:$0]  %s6, 1024, %s8, [#allocation0]
    %12 = dma.done [#allocation0], 1024
    %13 = vsyncpa [#allocation0], 1

// kernel: custom-call.2
$region0: #{custom-call.2}
  %s0 = inlined_call_operand.hbm [shape: c64[4,4,4,4], index: 0, kind: input, shape index: {}]
  %s1 = inlined_call_operand.vmem [shape: f32[4,4,4,4], index: 1, kind: output, shape index: {}]
  $region1: #{custom-call.2} parent=0
    #allocation0 [shape = 's32[1]{0}', space=sflag, size = 0x4, scoped, tag = 'scoped memory for custom-call.2']
    %2 = vsyncpa [#allocation0], 0
    %s4 = sshll.u32 %s0, 4
    %s5 = int_to_ptr.hbm [resolvable:$true] %s4
    %s6 = sshll.u32 %s1, 4
    %s7 = int_to_ptr.vmem [resolvable:$true] %s6
    %9 = dma.hbm_to_vmem [thread:$0]  %s5, 1024, %s7, [#allocation0]
    %11 = dma.done [#allocation0], 1024
    %12 = vsyncpa [#allocation0], 1

// kernel: custom-call
$region0: #{custom-call}
  %s0 = inlined_call_operand.hbm [shape: c64[2,4,16,16], index: 0, kind: input, shape index: {}]
  %s1 = inlined_call_operand.vmem [shape: f32[2,4,16,16], index: 1, kind: output, shape index: {}]
  $region1: #{custom-call} parent=0
    #allocation0 [shape = 's32[1]{0}', space=sflag, size = 0x4, scoped, tag = 'scoped memory for custom-call']
    %2 = vsyncpa [#allocation0], 0
    %s4 = sshll.u32 %s0, 4
    %s5 = int_to_ptr.hbm [resolvable:$true] %s4
    %s6 = sshll.u32 %s1, 4
    %s7 = int_to_ptr.vmem [resolvable:$true] %s6
    %9 = dma.hbm_to_vmem [thread:$0]  %s5, 2048, %s7, [#allocation0]
    %11 = dma.done [#allocation0], 2048
    %12 = vsyncpa [#allocation0], 1

// kernel: custom-call.1
$region0: #{custom-call.1}
  %s0 = inlined_call_operand.hbm [shape: c64[2,4,16,16], index: 0, kind: input, shape index: {}]
  %s1 = inlined_call_operand.vmem [shape: f32[2,4,16,16], index: 1, kind: output, shape index: {}]
  %s2 = scalar_lea.hbm %s0, 128
  $region1: #{custom-call.1} parent=0
    #allocation0 [shape = 's32[1]{0}', space=sflag, size = 0x4, scoped, tag = 'scoped memory for custom-call.1']
    %3 = vsyncpa [#allocation0], 0
    %s5 = sshll.u32 %s2, 4
    %s6 = int_to_ptr.hbm [resolvable:$true] %s5
    %s7 = sshll.u32 %s1, 4
    %s8 = int_to_ptr.vmem [resolvable:$true] %s7
    %10 = dma.hbm_to_vmem [thread:$0]  %s6, 2048, %s8, [#allocation0]
    %12 = dma.done [#allocation0], 2048
    %13 = vsyncpa [#allocation0], 1

// kernel: custom-call.6
$region0: #{custom-call.6}
  %s0 = inlined_call_operand.vmem [shape: f32[2,4,16,16], index: 0, kind: input, shape index: {}]
  %s1 = inlined_call_operand.vmem [shape: f32[2,4,16,16], index: 1, kind: input, shape index: {}]
  %s2 = inlined_call_operand.hbm [shape: c64[2,4,16,16], index: 2, kind: output, shape index: {}]
  %s3 = scalar_lea.hbm %s2, 128
  $region1: #{custom-call.6} parent=0
    #allocation0 [shape = 's32[1]{0}', space=sflag, size = 0x4, scoped, tag = 'scoped memory for custom-call.6']
    %4 = vsyncpa [#allocation0], 0
    %s6 = sshll.u32 %s0, 4
    %s7 = int_to_ptr.vmem [resolvable:$true] %s6
    %s8 = sshll.u32 %s2, 4
    %s9 = int_to_ptr.hbm [resolvable:$true] %s8
    %11 = dma.vmem_to_hbm [thread:$0]  %s7, 2048, %s9, [#allocation0]
    %13 = dma.done [#allocation0], 2048
    %14 = vsyncpa [#allocation0], 1
  $region2: #{custom-call.6} parent=0
    #allocation1 [shape = 's32[1]{0}', space=sflag, size = 0x4, scoped, tag = 'scoped memory for custom-call.6']
    %15 = vsyncpa [#allocation1], 0
    %s17 = sshll.u32 %s1, 4
    %s18 = int_to_ptr.vmem [resolvable:$true] %s17
    %s19 = sshll.u32 %s3, 4
    %s20 = int_to_ptr.hbm [resolvable:$true] %s19
    %22 = dma.vmem_to_hbm [thread:$0]  %s18, 2048, %s20, [#allocation1]
    %24 = dma.done [#allocation1], 2048
    %25 = vsyncpa [#allocation1], 1

// kernel: dse_layer_forward.1
$region0: #{dse_layer_forward.1}
  #allocation0 [shape = 'u32[]', space=smem, size = 0x4, offset = 0x4, fixed_abs, tag = 'smem constant byte address 0x4 - core index']
  #allocation1 [shape = 'u32[72,128]{1,0:T(1,128)}', space=vmem, size = 0x9000, scoped, tag = 'internal scratch']
  %s0 = inlined_call_operand.vmem [shape: f32[1,2,2048], index: 0, kind: input, shape index: {}]
  %s1 = inlined_call_operand.vmem [shape: bf16[2048,256], index: 1, kind: input, shape index: {}]
  %s2 = inlined_call_operand.vmem [shape: bf16[256,2048], index: 2, kind: input, shape index: {}]
  %s3 = inlined_call_operand.vmem [shape: f32[4,4], index: 3, kind: input, shape index: {}]
  %s4 = inlined_call_operand.vmem [shape: f32[4,4], index: 4, kind: input, shape index: {}]
  %s5 = inlined_call_operand.vmem [shape: f32[1,2,2048], index: 5, kind: output, shape index: {}]
  %s6 = sld [smem:[#allocation0]]
  $region38: #{dse_layer_forward.1} parent=0
    _
  %s8 = ssub.s32 1, %s6
  %s9 = scalar_select 0, %s8, %s6
  $region1: #{dse_layer_forward.1} parent=0
    #allocation2 [shape = 'u8[2048]{0}', space=smem, size = 0x800, scoped, tag = 'input window, operand 3, single buffered']
    #allocation3 [shape = 's32[1]{0}', space=sflag, size = 0x4, scoped, tag = 'scoped memory for dse_layer_forward.1']
    #allocation4 [shape = 'u8[2048]{0}', space=smem, size = 0x800, scoped, tag = 'input window, operand 4, single buffered']
    #allocation5 [shape = 's32[1]{0}', space=sflag, size = 0x4, scoped, tag = 'scoped memory for dse_layer_forward.1']
    %10 = vsyncpa [#allocation3], 0
    %11 = vsyncpa [#allocation5], 0
    // Predicated region
    $region2: #{dse_layer_forward.1} parent=1 // pred_check
      _
    $region3: #{dse_layer_forward.1} parent=1 // pred_check_branch
      %13 = sbr.rel (0) target = $region5
    $region4: #{dse_layer_forward.1} parent=1 // pred_region
      _
    $region5: #{dse_layer_forward.1} parent=1 // pred_fallthru
      _
    // Predicated region
    $region6: #{dse_layer_forward.1} parent=1 // pred_check
      _
    $region7: #{dse_layer_forward.1} parent=1 // pred_check_branch
      %15 = sbr.rel (0) target = $region9
    $region8: #{dse_layer_forward.1} parent=1 // pred_region
      _
    $region9: #{dse_layer_forward.1} parent=1 // pred_fallthru
      _
    // Predicated region
    $region10: #{dse_layer_forward.1} parent=1 // pred_check
      _
    $region11: #{dse_layer_forward.1} parent=1 // pred_check_branch
      %17 = sbr.rel (0) target = $region13
    $region12: #{dse_layer_forward.1} parent=1 // pred_region
      _
    $region13: #{dse_layer_forward.1} parent=1 // pred_fallthru
      _
    // Predicated region
    $region14: #{dse_layer_forward.1} parent=1 // pred_check
      _
    $region15: #{dse_layer_forward.1} parent=1 // pred_check_branch
      %19 = sbr.rel (0) target = $region17
    $region16: #{dse_layer_forward.1} parent=1 // pred_region
      %21 = vsyncadd [#allocation3], 0
      %s23 = sshll.u32 %s3, 4
      %s24 = int_to_ptr.vmem [resolvable:$true] %s23
      %26 = dma.vmem_to_smem %s24, 64, [#allocation2], [#allocation3]
    $region17: #{dse_layer_forward.1} parent=1 // pred_fallthru
      _
    // Predicated region
    $region18: #{dse_layer_forward.1} parent=1 // pred_check
      _
    $region19: #{dse_layer_forward.1} parent=1 // pred_check_branch
      %28 = sbr.rel (0) target = $region21
    $region20: #{dse_layer_forward.1} parent=1 // pred_region
      %30 = vsyncadd [#allocation5], 0
      %s32 = sshll.u32 %s4, 4
      %s33 = int_to_ptr.vmem [resolvable:$true] %s32
      %35 = dma.vmem_to_smem %s33, 64, [#allocation4], [#allocation5]
    $region21: #{dse_layer_forward.1} parent=1 // pred_fallthru
      _
    // Predicated region
    $region22: #{dse_layer_forward.1} parent=1 // pred_check
      _
    $region23: #{dse_layer_forward.1} parent=1 // pred_check_branch
      %37 = sbr.rel (0) target = $region25
    $region24: #{dse_layer_forward.1} parent=1 // pred_region
      %39 = dma.done [#allocation3], 64
    $region25: #{dse_layer_forward.1} parent=1 // pred_fallthru
      _
    // Predicated region
    $region26: #{dse_layer_forward.1} parent=1 // pred_check
      _
    $region27: #{dse_layer_forward.1} parent=1 // pred_check_branch
      %41 = sbr.rel (0) target = $region29
    $region28: #{dse_layer_forward.1} parent=1 // pred_region
      %43 = dma.done [#allocation5], 64
    $region29: #{dse_layer_forward.1} parent=1 // pred_fallthru
      _
    %44 = sfence
    %v45 = vld [vmem:[%s0] sm:$0xff]
    %v46 = vld [vmem:[%s0 + $0x8] sm:$0xff]
    %v47 = vld [vmem:[%s0 + $0x10] sm:$0xff]
    %v48 = vld [vmem:[%s0 + $0x18] sm:$0xff]
    %53 = vst [vmem:[#allocation1] ss:$4 sm:$0xff] %v45
    %s54 = scalar_lea.vmem [#allocation1], 32
    %55 = vst [vmem:[%s54] ss:$4 sm:$0xff] %v46
    %v56 = vld.sshfl [vmem:[#allocation1] sm:$0xff pattern:$0x73625140]
    %v57 = vld.sshfl [vmem:[#allocation1 + $0x8] sm:$0xff pattern:$0x73625140]
    %v58 = vld.sshfl [vmem:[#allocation1 + $0x10] sm:$0xff pattern:$0x73625140]
    %v59 = vld.sshfl [vmem:[#allocation1 + $0x18] sm:$0xff pattern:$0x73625140]
    %v60 = vld.sshfl [vmem:[#allocation1 + $0x20] sm:$0xff pattern:$0x73625140]
    %v61 = vld.sshfl [vmem:[#allocation1 + $0x28] sm:$0xff pattern:$0x73625140]
    %v62 = vld.sshfl [vmem:[#allocation1 + $0x30] sm:$0xff pattern:$0x73625140]
    %v63 = vld.sshfl [vmem:[#allocation1 + $0x38] sm:$0xff pattern:$0x73625140]
    %64 = vst [vmem:[#allocation1] ss:$4 sm:$0xff] %v47
    %65 = vst [vmem:[%s54] ss:$4 sm:$0xff] %v48
    %v66 = vld.sshfl [vmem:[#allocation1] sm:$0xff pattern:$0x73625140]
    %v67 = vld.sshfl [vmem:[#allocation1 + $0x8] sm:$0xff pattern:$0x73625140]
    %v68 = vld.sshfl [vmem:[#allocation1 + $0x10] sm:$0xff pattern:$0x73625140]
    %v69 = vld.sshfl [vmem:[#allocation1 + $0x18] sm:$0xff pattern:$0x73625140]
    %v70 = vld.sshfl [vmem:[#allocation1 + $0x20] sm:$0xff pattern:$0x73625140]
    %v71 = vld.sshfl [vmem:[#allocation1 + $0x28] sm:$0xff pattern:$0x73625140]
    %v72 = vld.sshfl [vmem:[#allocation1 + $0x30] sm:$0xff pattern:$0x73625140]
    %v73 = vld.sshfl [vmem:[#allocation1 + $0x38] sm:$0xff pattern:$0x73625140]
    %v90 = vpack.c.bf16 %v56, %v56
    %v91 = vpack.c.bf16 %v57, %v57
    %v92 = vpack.c.bf16 %v58, %v58
    %v93 = vpack.c.bf16 %v59, %v59
    %v94 = vpack.c.bf16 %v60, %v60
    %v95 = vpack.c.bf16 %v61, %v61
    %v96 = vpack.c.bf16 %v62, %v62
    %v97 = vpack.c.bf16 %v63, %v63
    %v98 = vpack.c.bf16 %v66, %v66
    %v99 = vpack.c.bf16 %v67, %v67
    %v100 = vpack.c.bf16 %v68, %v68
    %v101 = vpack.c.bf16 %v69, %v69
    %v102 = vpack.c.bf16 %v70, %v70
    %v103 = vpack.c.bf16 %v71, %v71
    %v104 = vpack.c.bf16 %v72, %v72
    %v105 = vpack.c.bf16 %v73, %v73
    %v106 = vld [vmem:[%s1] sm:$0xff]
    %v107 = vld [vmem:[%s1 + $0x8] sm:$0xff]
    %v108 = vld [vmem:[%s1 + $0x10] sm:$0xff]
    %v109 = vld [vmem:[%s1 + $0x18] sm:$0xff]
    %v110 = vld [vmem:[%s1 + $0x20] sm:$0xff]
    %v111 = vld [vmem:[%s1 + $0x28] sm:$0xff]
    %v112 = vld [vmem:[%s1 + $0x30] sm:$0xff]
    %v113 = vld [vmem:[%s1 + $0x38] sm:$0xff]
    %v114 = vld [vmem:[%s1 + $0x40] sm:$0xff]
    %v115 = vld [vmem:[%s1 + $0x48] sm:$0xff]
    %v116 = vld [vmem:[%s1 + $0x50] sm:$0xff]
    %v117 = vld [vmem:[%s1 + $0x58] sm:$0xff]
    %v118 = vld [vmem:[%s1 + $0x60] sm:$0xff]
    %v119 = vld [vmem:[%s1 + $0x68] sm:$0xff]
    %v120 = vld [vmem:[%s1 + $0x70] sm:$0xff]
    %v121 = vld [vmem:[%s1 + $0x78] sm:$0xff]
    %v122 = vld [vmem:[%s1 + $0x80] sm:$0xff]
    %v123 = vld [vmem:[%s1 + $0x88] sm:$0xff]
    %v124 = vld [vmem:[%s1 + $0x90] sm:$0xff]
    %v125 = vld [vmem:[%s1 + $0x98] sm:$0xff]
    %v126 = vld [vmem:[%s1 + $0xa0] sm:$0xff]
    %v127 = vld [vmem:[%s1 + $0xa8] sm:$0xff]
    %v128 = vld [vmem:[%s1 + $0xb0] sm:$0xff]
    %v129 = vld [vmem:[%s1 + $0xb8] sm:$0xff]
    %v130 = vld [vmem:[%s1 + $0xc0] sm:$0xff]
    %v131 = vld [vmem:[%s1 + $0xc8] sm:$0xff]
    %v132 = vld [vmem:[%s1 + $0xd0] sm:$0xff]
    %v133 = vld [vmem:[%s1 + $0xd8] sm:$0xff]
    %v134 = vld [vmem:[%s1 + $0xe0] sm:$0xff]
    %v135 = vld [vmem:[%s1 + $0xe8] sm:$0xff]
    %v136 = vld [vmem:[%s1 + $0xf0] sm:$0xff]
    %v137 = vld [vmem:[%s1 + $0xf8] sm:$0xff]
    %v138 = vld [vmem:[%s1 + $0x100] sm:$0xff]
    %v139 = vld [vmem:[%s1 + $0x108] sm:$0xff]
    %v140 = vld [vmem:[%s1 + $0x110] sm:$0xff]
    %v141 = vld [vmem:[%s1 + $0x118] sm:$0xff]
    %v142 = vld [vmem:[%s1 + $0x120] sm:$0xff]
    %v143 = vld [vmem:[%s1 + $0x128] sm:$0xff]
    %v144 = vld [vmem:[%s1 + $0x130] sm:$0xff]
    %v145 = vld [vmem:[%s1 + $0x138] sm:$0xff]
    %v146 = vld [vmem:[%s1 + $0x140] sm:$0xff]
    %v147 = vld [vmem:[%s1 + $0x148] sm:$0xff]
    %v148 = vld [vmem:[%s1 + $0x150] sm:$0xff]
    %v149 = vld [vmem:[%s1 + $0x158] sm:$0xff]
    %v150 = vld [vmem:[%s1 + $0x160] sm:$0xff]
    %v151 = vld [vmem:[%s1 + $0x168] sm:$0xff]
    %v152 = vld [vmem:[%s1 + $0x170] sm:$0xff]
    %v153 = vld [vmem:[%s1 + $0x178] sm:$0xff]
    %v154 = vld [vmem:[%s1 + $0x180] sm:$0xff]
    %v155 = vld [vmem:[%s1 + $0x188] sm:$0xff]
    %v156 = vld [vmem:[%s1 + $0x190] sm:$0xff]
    %v157 = vld [vmem:[%s1 + $0x198] sm:$0xff]
    %v158 = vld [vmem:[%s1 + $0x1a0] sm:$0xff]
    %v159 = vld [vmem:[%s1 + $0x1a8] sm:$0xff]
    %v160 = vld [vmem:[%s1 + $0x1b0] sm:$0xff]
    %v161 = vld [vmem:[%s1 + $0x1b8] sm:$0xff]
    %v162 = vld [vmem:[%s1 + $0x1c0] sm:$0xff]
    %v163 = vld [vmem:[%s1 + $0x1c8] sm:$0xff]
    %v164 = vld [vmem:[%s1 + $0x1d0] sm:$0xff]
    %v165 = vld [vmem:[%s1 + $0x1d8] sm:$0xff]
    %v166 = vld [vmem:[%s1 + $0x1e0] sm:$0xff]
    %v167 = vld [vmem:[%s1 + $0x1e8] sm:$0xff]
    %v168 = vld [vmem:[%s1 + $0x1f0] sm:$0xff]
    %v169 = vld [vmem:[%s1 + $0x1f8] sm:$0xff]
    %v170 = vld [vmem:[%s1 + $0x200] sm:$0xff]
    %v171 = vld [vmem:[%s1 + $0x208] sm:$0xff]
    %v172 = vld [vmem:[%s1 + $0x210] sm:$0xff]
    %v173 = vld [vmem:[%s1 + $0x218] sm:$0xff]
    %v174 = vld [vmem:[%s1 + $0x220] sm:$0xff]
    %v175 = vld [vmem:[%s1 + $0x228] sm:$0xff]
    %v176 = vld [vmem:[%s1 + $0x230] sm:$0xff]
    %v177 = vld [vmem:[%s1 + $0x238] sm:$0xff]
    %v178 = vld [vmem:[%s1 + $0x240] sm:$0xff]
    %v179 = vld [vmem:[%s1 + $0x248] sm:$0xff]
    %v180 = vld [vmem:[%s1 + $0x250] sm:$0xff]
    %v181 = vld [vmem:[%s1 + $0x258] sm:$0xff]
    %v182 = vld [vmem:[%s1 + $0x260] sm:$0xff]
    %v183 = vld [vmem:[%s1 + $0x268] sm:$0xff]
    %v184 = vld [vmem:[%s1 + $0x270] sm:$0xff]
    %v185 = vld [vmem:[%s1 + $0x278] sm:$0xff]
    %v186 = vld [vmem:[%s1 + $0x280] sm:$0xff]
    %v187 = vld [vmem:[%s1 + $0x288] sm:$0xff]
    %v188 = vld [vmem:[%s1 + $0x290] sm:$0xff]
    %v189 = vld [vmem:[%s1 + $0x298] sm:$0xff]
    %v190 = vld [vmem:[%s1 + $0x2a0] sm:$0xff]
    %v191 = vld [vmem:[%s1 + $0x2a8] sm:$0xff]
    %v192 = vld [vmem:[%s1 + $0x2b0] sm:$0xff]
    %v193 = vld [vmem:[%s1 + $0x2b8] sm:$0xff]
    %v194 = vld [vmem:[%s1 + $0x2c0] sm:$0xff]
    %v195 = vld [vmem:[%s1 + $0x2c8] sm:$0xff]
    %v196 = vld [vmem:[%s1 + $0x2d0] sm:$0xff]
    %v197 = vld [vmem:[%s1 + $0x2d8] sm:$0xff]
    %v198 = vld [vmem:[%s1 + $0x2e0] sm:$0xff]
    %v199 = vld [vmem:[%s1 + $0x2e8] sm:$0xff]
    %v200 = vld [vmem:[%s1 + $0x2f0] sm:$0xff]
    %v201 = vld [vmem:[%s1 + $0x2f8] sm:$0xff]
    %v202 = vld [vmem:[%s1 + $0x300] sm:$0xff]
    %v203 = vld [vmem:[%s1 + $0x308] sm:$0xff]
    %v204 = vld [vmem:[%s1 + $0x310] sm:$0xff]
    %v205 = vld [vmem:[%s1 + $0x318] sm:$0xff]
    %v206 = vld [vmem:[%s1 + $0x320] sm:$0xff]
    %v207 = vld [vmem:[%s1 + $0x328] sm:$0xff]
    %v208 = vld [vmem:[%s1 + $0x330] sm:$0xff]
    %v209 = vld [vmem:[%s1 + $0x338] sm:$0xff]
    %v210 = vld [vmem:[%s1 + $0x340] sm:$0xff]
    %v211 = vld [vmem:[%s1 + $0x348] sm:$0xff]
    %v212 = vld [vmem:[%s1 + $0x350] sm:$0xff]
    %v213 = vld [vmem:[%s1 + $0x358] sm:$0xff]
    %v214 = vld [vmem:[%s1 + $0x360] sm:$0xff]
    %v215 = vld [vmem:[%s1 + $0x368] sm:$0xff]
    %v216 = vld [vmem:[%s1 + $0x370] sm:$0xff]
    %v217 = vld [vmem:[%s1 + $0x378] sm:$0xff]
    %v218 = vld [vmem:[%s1 + $0x380] sm:$0xff]
    %v219 = vld [vmem:[%s1 + $0x388] sm:$0xff]
    %v220 = vld [vmem:[%s1 + $0x390] sm:$0xff]
    %v221 = vld [vmem:[%s1 + $0x398] sm:$0xff]
    %v222 = vld [vmem:[%s1 + $0x3a0] sm:$0xff]
    %v223 = vld [vmem:[%s1 + $0x3a8] sm:$0xff]
    %v224 = vld [vmem:[%s1 + $0x3b0] sm:$0xff]
    %v225 = vld [vmem:[%s1 + $0x3b8] sm:$0xff]
    %v226 = vld [vmem:[%s1 + $0x3c0] sm:$0xff]
    %v227 = vld [vmem:[%s1 + $0x3c8] sm:$0xff]
    %v228 = vld [vmem:[%s1 + $0x3d0] sm:$0xff]
    %v229 = vld [vmem:[%s1 + $0x3d8] sm:$0xff]
    %v230 = vld [vmem:[%s1 + $0x3e0] sm:$0xff]
    %v231 = vld [vmem:[%s1 + $0x3e8] sm:$0xff]
    %v232 = vld [vmem:[%s1 + $0x3f0] sm:$0xff]
    %v233 = vld [vmem:[%s1 + $0x3f8] sm:$0xff]
    %v234 = vld [vmem:[%s1 + $0x400] sm:$0xff]
    %v235 = vld [vmem:[%s1 + $0x408] sm:$0xff]
    %v236 = vld [vmem:[%s1 + $0x410] sm:$0xff]
    %v237 = vld [vmem:[%s1 + $0x418] sm:$0xff]
    %v238 = vld [vmem:[%s1 + $0x420] sm:$0xff]
    %v239 = vld [vmem:[%s1 + $0x428] sm:$0xff]
    %v240 = vld [vmem:[%s1 + $0x430] sm:$0xff]
    %v241 = vld [vmem:[%s1 + $0x438] sm:$0xff]
    %v242 = vld [vmem:[%s1 + $0x440] sm:$0xff]
    %v243 = vld [vmem:[%s1 + $0x448] sm:$0xff]
    %v244 = vld [vmem:[%s1 + $0x450] sm:$0xff]
    %v245 = vld [vmem:[%s1 + $0x458] sm:$0xff]
    %v246 = vld [vmem:[%s1 + $0x460] sm:$0xff]
    %v247 = vld [vmem:[%s1 + $0x468] sm:$0xff]
    %v248 = vld [vmem:[%s1 + $0x470] sm:$0xff]
    %v249 = vld [vmem:[%s1 + $0x478] sm:$0xff]
    %v250 = vld [vmem:[%s1 + $0x480] sm:$0xff]
    %v251 = vld [vmem:[%s1 + $0x488] sm:$0xff]
    %v252 = vld [vmem:[%s1 + $0x490] sm:$0xff]
    %v253 = vld [vmem:[%s1 + $0x498] sm:$0xff]
    %v254 = vld [vmem:[%s1 + $0x4a0] sm:$0xff]
    %v255 = vld [vmem:[%s1 + $0x4a8] sm:$0xff]
    %v256 = vld [vmem:[%s1 + $0x4b0] sm:$0xff]
    %v257 = vld [vmem:[%s1 + $0x4b8] sm:$0xff]
    %v258 = vld [vmem:[%s1 + $0x4c0] sm:$0xff]
    %v259 = vld [vmem:[%s1 + $0x4c8] sm:$0xff]
    %v260 = vld [vmem:[%s1 + $0x4d0] sm:$0xff]
    %v261 = vld [vmem:[%s1 + $0x4d8] sm:$0xff]
    %v262 = vld [vmem:[%s1 + $0x4e0] sm:$0xff]
    %v263 = vld [vmem:[%s1 + $0x4e8] sm:$0xff]
    %v264 = vld [vmem:[%s1 + $0x4f0] sm:$0xff]
    %v265 = vld [vmem:[%s1 + $0x4f8] sm:$0xff]
    %v266 = vld [vmem:[%s1 + $0x500] sm:$0xff]
    %v267 = vld [vmem:[%s1 + $0x508] sm:$0xff]
    %v268 = vld [vmem:[%s1 + $0x510] sm:$0xff]
    %v269 = vld [vmem:[%s1 + $0x518] sm:$0xff]
    %v270 = vld [vmem:[%s1 + $0x520] sm:$0xff]
    %v271 = vld [vmem:[%s1 + $0x528] sm:$0xff]
    %v272 = vld [vmem:[%s1 + $0x530] sm:$0xff]
    %v273 = vld [vmem:[%s1 + $0x538] sm:$0xff]
    %v274 = vld [vmem:[%s1 + $0x540] sm:$0xff]
    %v275 = vld [vmem:[%s1 + $0x548] sm:$0xff]
    %v276 = vld [vmem:[%s1 + $0x550] sm:$0xff]
    %v277 = vld [vmem:[%s1 + $0x558] sm:$0xff]
    %v278 = vld [vmem:[%s1 + $0x560] sm:$0xff]
    %v279 = vld [vmem:[%s1 + $0x568] sm:$0xff]
    %v280 = vld [vmem:[%s1 + $0x570] sm:$0xff]
    %v281 = vld [vmem:[%s1 + $0x578] sm:$0xff]
    %v282 = vld [vmem:[%s1 + $0x580] sm:$0xff]
    %v283 = vld [vmem:[%s1 + $0x588] sm:$0xff]
    %v284 = vld [vmem:[%s1 + $0x590] sm:$0xff]
    %v285 = vld [vmem:[%s1 + $0x598] sm:$0xff]
    %v286 = vld [vmem:[%s1 + $0x5a0] sm:$0xff]
    %v287 = vld [vmem:[%s1 + $0x5a8] sm:$0xff]
    %v288 = vld [vmem:[%s1 + $0x5b0] sm:$0xff]
    %v289 = vld [vmem:[%s1 + $0x5b8] sm:$0xff]
    %v290 = vld [vmem:[%s1 + $0x5c0] sm:$0xff]
    %v291 = vld [vmem:[%s1 + $0x5c8] sm:$0xff]
    %v292 = vld [vmem:[%s1 + $0x5d0] sm:$0xff]
    %v293 = vld [vmem:[%s1 + $0x5d8] sm:$0xff]
    %v294 = vld [vmem:[%s1 + $0x5e0] sm:$0xff]
    %v295 = vld [vmem:[%s1 + $0x5e8] sm:$0xff]
    %v296 = vld [vmem:[%s1 + $0x5f0] sm:$0xff]
    %v297 = vld [vmem:[%s1 + $0x5f8] sm:$0xff]
    %v298 = vld [vmem:[%s1 + $0x600] sm:$0xff]
    %v299 = vld [vmem:[%s1 + $0x608] sm:$0xff]
    %v300 = vld [vmem:[%s1 + $0x610] sm:$0xff]
    %v301 = vld [vmem:[%s1 + $0x618] sm:$0xff]
    %v302 = vld [vmem:[%s1 + $0x620] sm:$0xff]
    %v303 = vld [vmem:[%s1 + $0x628] sm:$0xff]
    %v304 = vld [vmem:[%s1 + $0x630] sm:$0xff]
    %v305 = vld [vmem:[%s1 + $0x638] sm:$0xff]
    %v306 = vld [vmem:[%s1 + $0x640] sm:$0xff]
    %v307 = vld [vmem:[%s1 + $0x648] sm:$0xff]
    %v308 = vld [vmem:[%s1 + $0x650] sm:$0xff]
    %v309 = vld [vmem:[%s1 + $0x658] sm:$0xff]
    %v310 = vld [vmem:[%s1 + $0x660] sm:$0xff]
    %v311 = vld [vmem:[%s1 + $0x668] sm:$0xff]
    %v312 = vld [vmem:[%s1 + $0x670] sm:$0xff]
    %v313 = vld [vmem:[%s1 + $0x678] sm:$0xff]
    %v314 = vld [vmem:[%s1 + $0x680] sm:$0xff]
    %v315 = vld [vmem:[%s1 + $0x688] sm:$0xff]
    %v316 = vld [vmem:[%s1 + $0x690] sm:$0xff]
    %v317 = vld [vmem:[%s1 + $0x698] sm:$0xff]
    %v318 = vld [vmem:[%s1 + $0x6a0] sm:$0xff]
    %v319 = vld [vmem:[%s1 + $0x6a8] sm:$0xff]
    %v320 = vld [vmem:[%s1 + $0x6b0] sm:$0xff]
    %v321 = vld [vmem:[%s1 + $0x6b8] sm:$0xff]
    %v322 = vld [vmem:[%s1 + $0x6c0] sm:$0xff]
    %v323 = vld [vmem:[%s1 + $0x6c8] sm:$0xff]
    %v324 = vld [vmem:[%s1 + $0x6d0] sm:$0xff]
    %v325 = vld [vmem:[%s1 + $0x6d8] sm:$0xff]
    %v326 = vld [vmem:[%s1 + $0x6e0] sm:$0xff]
    %v327 = vld [vmem:[%s1 + $0x6e8] sm:$0xff]
    %v328 = vld [vmem:[%s1 + $0x6f0] sm:$0xff]
    %v329 = vld [vmem:[%s1 + $0x6f8] sm:$0xff]
    %v330 = vld [vmem:[%s1 + $0x700] sm:$0xff]
    %v331 = vld [vmem:[%s1 + $0x708] sm:$0xff]
    %v332 = vld [vmem:[%s1 + $0x710] sm:$0xff]
    %v333 = vld [vmem:[%s1 + $0x718] sm:$0xff]
    %v334 = vld [vmem:[%s1 + $0x720] sm:$0xff]
    %v335 = vld [vmem:[%s1 + $0x728] sm:$0xff]
    %v336 = vld [vmem:[%s1 + $0x730] sm:$0xff]
    %v337 = vld [vmem:[%s1 + $0x738] sm:$0xff]
    %v338 = vld [vmem:[%s1 + $0x740] sm:$0xff]
    %v339 = vld [vmem:[%s1 + $0x748] sm:$0xff]
    %v340 = vld [vmem:[%s1 + $0x750] sm:$0xff]
    %v341 = vld [vmem:[%s1 + $0x758] sm:$0xff]
    %v342 = vld [vmem:[%s1 + $0x760] sm:$0xff]
    %v343 = vld [vmem:[%s1 + $0x768] sm:$0xff]
    %v344 = vld [vmem:[%s1 + $0x770] sm:$0xff]
    %v345 = vld [vmem:[%s1 + $0x778] sm:$0xff]
    %v346 = vld [vmem:[%s1 + $0x780] sm:$0xff]
    %v347 = vld [vmem:[%s1 + $0x788] sm:$0xff]
    %v348 = vld [vmem:[%s1 + $0x790] sm:$0xff]
    %v349 = vld [vmem:[%s1 + $0x798] sm:$0xff]
    %v350 = vld [vmem:[%s1 + $0x7a0] sm:$0xff]
    %v351 = vld [vmem:[%s1 + $0x7a8] sm:$0xff]
    %v352 = vld [vmem:[%s1 + $0x7b0] sm:$0xff]
    %v353 = vld [vmem:[%s1 + $0x7b8] sm:$0xff]
    %v354 = vld [vmem:[%s1 + $0x7c0] sm:$0xff]
    %v355 = vld [vmem:[%s1 + $0x7c8] sm:$0xff]
    %v356 = vld [vmem:[%s1 + $0x7d0] sm:$0xff]
    %v357 = vld [vmem:[%s1 + $0x7d8] sm:$0xff]
    %v358 = vld [vmem:[%s1 + $0x7e0] sm:$0xff]
    %v359 = vld [vmem:[%s1 + $0x7e8] sm:$0xff]
    %v360 = vld [vmem:[%s1 + $0x7f0] sm:$0xff]
    %v361 = vld [vmem:[%s1 + $0x7f8] sm:$0xff]
    %v618 = vunpack.c.l.b16 %v106
    %v619 = vunpack.c.h.b16 %v106
    %v620 = vunpack.c.l.b16 %v107
    %v621 = vunpack.c.h.b16 %v107
    %v622 = vunpack.c.l.b16 %v108
    %v623 = vunpack.c.h.b16 %v108
    %v624 = vunpack.c.l.b16 %v109
    %v625 = vunpack.c.h.b16 %v109
    %v626 = vunpack.c.l.b16 %v110
    %v627 = vunpack.c.h.b16 %v110
    %v628 = vunpack.c.l.b16 %v111
    %v629 = vunpack.c.h.b16 %v111
    %v630 = vunpack.c.l.b16 %v112
    %v631 = vunpack.c.h.b16 %v112
    %v632 = vunpack.c.l.b16 %v113
    %v633 = vunpack.c.h.b16 %v113
    %v634 = vunpack.c.l.b16 %v114
    %v635 = vunpack.c.h.b16 %v114
    %v636 = vunpack.c.l.b16 %v115
    %v637 = vunpack.c.h.b16 %v115
    %v638 = vunpack.c.l.b16 %v116
    %v639 = vunpack.c.h.b16 %v116
    %v640 = vunpack.c.l.b16 %v117
    %v641 = vunpack.c.h.b16 %v117
    %v642 = vunpack.c.l.b16 %v118
    %v643 = vunpack.c.h.b16 %v118
    %v644 = vunpack.c.l.b16 %v119
    %v645 = vunpack.c.h.b16 %v119
    %v646 = vunpack.c.l.b16 %v120
    %v647 = vunpack.c.h.b16 %v120
    %v648 = vunpack.c.l.b16 %v121
    %v649 = vunpack.c.h.b16 %v121
    %v650 = vunpack.c.l.b16 %v122
    %v651 = vunpack.c.h.b16 %v122
    %v652 = vunpack.c.l.b16 %v123
    %v653 = vunpack.c.h.b16 %v123
    %v654 = vunpack.c.l.b16 %v124
    %v655 = vunpack.c.h.b16 %v124
    %v656 = vunpack.c.l.b16 %v125
    %v657 = vunpack.c.h.b16 %v125
    %v658 = vunpack.c.l.b16 %v126
    %v659 = vunpack.c.h.b16 %v126
    %v660 = vunpack.c.l.b16 %v127
    %v661 = vunpack.c.h.b16 %v127
    %v662 = vunpack.c.l.b16 %v128
    %v663 = vunpack.c.h.b16 %v128
    %v664 = vunpack.c.l.b16 %v129
    %v665 = vunpack.c.h.b16 %v129
    %v666 = vunpack.c.l.b16 %v130
    %v667 = vunpack.c.h.b16 %v130
    %v668 = vunpack.c.l.b16 %v131
    %v669 = vunpack.c.h.b16 %v131
    %v670 = vunpack.c.l.b16 %v132
    %v671 = vunpack.c.h.b16 %v132
    %v672 = vunpack.c.l.b16 %v133
    %v673 = vunpack.c.h.b16 %v133
    %v674 = vunpack.c.l.b16 %v134
    %v675 = vunpack.c.h.b16 %v134
    %v676 = vunpack.c.l.b16 %v135
    %v677 = vunpack.c.h.b16 %v135
    %v678 = vunpack.c.l.b16 %v136
    %v679 = vunpack.c.h.b16 %v136
    %v680 = vunpack.c.l.b16 %v137
    %v681 = vunpack.c.h.b16 %v137
    %v682 = vunpack.c.l.b16 %v138
    %v683 = vunpack.c.h.b16 %v138
    %v684 = vunpack.c.l.b16 %v139
    %v685 = vunpack.c.h.b16 %v139
    %v686 = vunpack.c.l.b16 %v140
    %v687 = vunpack.c.h.b16 %v140
    %v688 = vunpack.c.l.b16 %v141
    %v689 = vunpack.c.h.b16 %v141
    %v690 = vunpack.c.l.b16 %v142
    %v691 = vunpack.c.h.b16 %v142
    %v692 = vunpack.c.l.b16 %v143
    %v693 = vunpack.c.h.b16 %v143
    %v694 = vunpack.c.l.b16 %v144
    %v695 = vunpack.c.h.b16 %v144
    %v696 = vunpack.c.l.b16 %v145
    %v697 = vunpack.c.h.b16 %v145
    %v698 = vunpack.c.l.b16 %v146
    %v699 = vunpack.c.h.b16 %v146
    %v700 = vunpack.c.l.b16 %v147
    %v701 = vunpack.c.h.b16 %v147
    %v702 = vunpack.c.l.b16 %v148
    %v703 = vunpack.c.h.b16 %v148
    %v704 = vunpack.c.l.b16 %v149
    %v705 = vunpack.c.h.b16 %v149
    %v706 = vunpack.c.l.b16 %v150
    %v707 = vunpack.c.h.b16 %v150
    %v708 = vunpack.c.l.b16 %v151
    %v709 = vunpack.c.h.b16 %v151
    %v710 = vunpack.c.l.b16 %v152
    %v711 = vunpack.c.h.b16 %v152
    %v712 = vunpack.c.l.b16 %v153
    %v713 = vunpack.c.h.b16 %v153
    %v714 = vunpack.c.l.b16 %v154
    %v715 = vunpack.c.h.b16 %v154
    %v716 = vunpack.c.l.b16 %v155
    %v717 = vunpack.c.h.b16 %v155
    %v718 = vunpack.c.l.b16 %v156
    %v719 = vunpack.c.h.b16 %v156
    %v720 = vunpack.c.l.b16 %v157
    %v721 = vunpack.c.h.b16 %v157
    %v722 = vunpack.c.l.b16 %v158
    %v723 = vunpack.c.h.b16 %v158
    %v724 = vunpack.c.l.b16 %v159
    %v725 = vunpack.c.h.b16 %v159
    %v726 = vunpack.c.l.b16 %v160
    %v727 = vunpack.c.h.b16 %v160
    %v728 = vunpack.c.l.b16 %v161
    %v729 = vunpack.c.h.b16 %v161
    %v730 = vunpack.c.l.b16 %v162
    %v731 = vunpack.c.h.b16 %v162
    %v732 = vunpack.c.l.b16 %v163
    %v733 = vunpack.c.h.b16 %v163
    %v734 = vunpack.c.l.b16 %v164
    %v735 = vunpack.c.h.b16 %v164
    %v736 = vunpack.c.l.b16 %v165
    %v737 = vunpack.c.h.b16 %v165
    %v738 = vunpack.c.l.b16 %v166
    %v739 = vunpack.c.h.b16 %v166
    %v740 = vunpack.c.l.b16 %v167
    %v741 = vunpack.c.h.b16 %v167
    %v742 = vunpack.c.l.b16 %v168
    %v743 = vunpack.c.h.b16 %v168
    %v744 = vunpack.c.l.b16 %v169
    %v745 = vunpack.c.h.b16 %v169
    %v746 = vunpack.c.l.b16 %v170
    %v747 = vunpack.c.h.b16 %v170
    %v748 = vunpack.c.l.b16 %v171
    %v749 = vunpack.c.h.b16 %v171
    %v750 = vunpack.c.l.b16 %v172
    %v751 = vunpack.c.h.b16 %v172
    %v752 = vunpack.c.l.b16 %v173
    %v753 = vunpack.c.h.b16 %v173
    %v754 = vunpack.c.l.b16 %v174
    %v755 = vunpack.c.h.b16 %v174
    %v756 = vunpack.c.l.b16 %v175
    %v757 = vunpack.c.h.b16 %v175
    %v758 = vunpack.c.l.b16 %v176
    %v759 = vunpack.c.h.b16 %v176
    %v760 = vunpack.c.l.b16 %v177
    %v761 = vunpack.c.h.b16 %v177
    %v762 = vunpack.c.l.b16 %v178
    %v763 = vunpack.c.h.b16 %v178
    %v764 = vunpack.c.l.b16 %v179
    %v765 = vunpack.c.h.b16 %v179
    %v766 = vunpack.c.l.b16 %v180
    %v767 = vunpack.c.h.b16 %v180
    %v768 = vunpack.c.l.b16 %v181
    %v769 = vunpack.c.h.b16 %v181
    %v770 = vunpack.c.l.b16 %v182
    %v771 = vunpack.c.h.b16 %v182
    %v772 = vunpack.c.l.b16 %v183
    %v773 = vunpack.c.h.b16 %v183
    %v774 = vunpack.c.l.b16 %v184
    %v775 = vunpack.c.h.b16 %v184
    %v776 = vunpack.c.l.b16 %v185
    %v777 = vunpack.c.h.b16 %v185
    %v778 = vunpack.c.l.b16 %v186
    %v779 = vunpack.c.h.b16 %v186
    %v780 = vunpack.c.l.b16 %v187
    %v781 = vunpack.c.h.b16 %v187
    %v782 = vunpack.c.l.b16 %v188
    %v783 = vunpack.c.h.b16 %v188
    %v784 = vunpack.c.l.b16 %v189
    %v785 = vunpack.c.h.b16 %v189
    %v786 = vunpack.c.l.b16 %v190
    %v787 = vunpack.c.h.b16 %v190
    %v788 = vunpack.c.l.b16 %v191
    %v789 = vunpack.c.h.b16 %v191
    %v790 = vunpack.c.l.b16 %v192
    %v791 = vunpack.c.h.b16 %v192
    %v792 = vunpack.c.l.b16 %v193
    %v793 = vunpack.c.h.b16 %v193
    %v794 = vunpack.c.l.b16 %v194
    %v795 = vunpack.c.h.b16 %v194
    %v796 = vunpack.c.l.b16 %v195
    %v797 = vunpack.c.h.b16 %v195
    %v798 = vunpack.c.l.b16 %v196
    %v799 = vunpack.c.h.b16 %v196
    %v800 = vunpack.c.l.b16 %v197
    %v801 = vunpack.c.h.b16 %v197
    %v802 = vunpack.c.l.b16 %v198
    %v803 = vunpack.c.h.b16 %v198
    %v804 = vunpack.c.l.b16 %v199
    %v805 = vunpack.c.h.b16 %v199
    %v806 = vunpack.c.l.b16 %v200
    %v807 = vunpack.c.h.b16 %v200
    %v808 = vunpack.c.l.b16 %v201
    %v809 = vunpack.c.h.b16 %v201
    %v810 = vunpack.c.l.b16 %v202
    %v811 = vunpack.c.h.b16 %v202
    %v812 = vunpack.c.l.b16 %v203
    %v813 = vunpack.c.h.b16 %v203
    %v814 = vunpack.c.l.b16 %v204
    %v815 = vunpack.c.h.b16 %v204
    %v816 = vunpack.c.l.b16 %v205
    %v817 = vunpack.c.h.b16 %v205
    %v818 = vunpack.c.l.b16 %v206
    %v819 = vunpack.c.h.b16 %v206
    %v820 = vunpack.c.l.b16 %v207
    %v821 = vunpack.c.h.b16 %v207
    %v822 = vunpack.c.l.b16 %v208
    %v823 = vunpack.c.h.b16 %v208
    %v824 = vunpack.c.l.b16 %v209
    %v825 = vunpack.c.h.b16 %v209
    %v826 = vunpack.c.l.b16 %v210
    %v827 = vunpack.c.h.b16 %v210
    %v828 = vunpack.c.l.b16 %v211
    %v829 = vunpack.c.h.b16 %v211
    %v830 = vunpack.c.l.b16 %v212
    %v831 = vunpack.c.h.b16 %v212
    %v832 = vunpack.c.l.b16 %v213
    %v833 = vunpack.c.h.b16 %v213
    %v834 = vunpack.c.l.b16 %v214
    %v835 = vunpack.c.h.b16 %v214
    %v836 = vunpack.c.l.b16 %v215
    %v837 = vunpack.c.h.b16 %v215
    %v838 = vunpack.c.l.b16 %v216
    %v839 = vunpack.c.h.b16 %v216
    %v840 = vunpack.c.l.b16 %v217
    %v841 = vunpack.c.h.b16 %v217
    %v842 = vunpack.c.l.b16 %v218
    %v843 = vunpack.c.h.b16 %v218
    %v844 = vunpack.c.l.b16 %v219
    %v845 = vunpack.c.h.b16 %v219
    %v846 = vunpack.c.l.b16 %v220
    %v847 = vunpack.c.h.b16 %v220
    %v848 = vunpack.c.l.b16 %v221
    %v849 = vunpack.c.h.b16 %v221
    %v850 = vunpack.c.l.b16 %v222
    %v851 = vunpack.c.h.b16 %v222
    %v852 = vunpack.c.l.b16 %v223
    %v853 = vunpack.c.h.b16 %v223
    %v854 = vunpack.c.l.b16 %v224
    %v855 = vunpack.c.h.b16 %v224
    %v856 = vunpack.c.l.b16 %v225
    %v857 = vunpack.c.h.b16 %v225
    %v858 = vunpack.c.l.b16 %v226
    %v859 = vunpack.c.h.b16 %v226
    %v860 = vunpack.c.l.b16 %v227
    %v861 = vunpack.c.h.b16 %v227
    %v862 = vunpack.c.l.b16 %v228
    %v863 = vunpack.c.h.b16 %v228
    %v864 = vunpack.c.l.b16 %v229
    %v865 = vunpack.c.h.b16 %v229
    %v866 = vunpack.c.l.b16 %v230
    %v867 = vunpack.c.h.b16 %v230
    %v868 = vunpack.c.l.b16 %v231
    %v869 = vunpack.c.h.b16 %v231
    %v870 = vunpack.c.l.b16 %v232
    %v871 = vunpack.c.h.b16 %v232
    %v872 = vunpack.c.l.b16 %v233
    %v873 = vunpack.c.h.b16 %v233
    %v874 = vunpack.c.l.b16 %v234
    %v875 = vunpack.c.h.b16 %v234
    %v876 = vunpack.c.l.b16 %v235
    %v877 = vunpack.c.h.b16 %v235
    %v878 = vunpack.c.l.b16 %v236
    %v879 = vunpack.c.h.b16 %v236
    %v880 = vunpack.c.l.b16 %v237
    %v881 = vunpack.c.h.b16 %v237
    %v882 = vunpack.c.l.b16 %v238
    %v883 = vunpack.c.h.b16 %v238
    %v884 = vunpack.c.l.b16 %v239
    %v885 = vunpack.c.h.b16 %v239
    %v886 = vunpack.c.l.b16 %v240
    %v887 = vunpack.c.h.b16 %v240
    %v888 = vunpack.c.l.b16 %v241
    %v889 = vunpack.c.h.b16 %v241
    %v890 = vunpack.c.l.b16 %v242
    %v891 = vunpack.c.h.b16 %v242
    %v892 = vunpack.c.l.b16 %v243
    %v893 = vunpack.c.h.b16 %v243
    %v894 = vunpack.c.l.b16 %v244
    %v895 = vunpack.c.h.b16 %v244
    %v896 = vunpack.c.l.b16 %v245
    %v897 = vunpack.c.h.b16 %v245
    %v898 = vunpack.c.l.b16 %v246
    %v899 = vunpack.c.h.b16 %v246
    %v900 = vunpack.c.l.b16 %v247
    %v901 = vunpack.c.h.b16 %v247
    %v902 = vunpack.c.l.b16 %v248
    %v903 = vunpack.c.h.b16 %v248
    %v904 = vunpack.c.l.b16 %v249
    %v905 = vunpack.c.h.b16 %v249
    %v906 = vunpack.c.l.b16 %v250
    %v907 = vunpack.c.h.b16 %v250
    %v908 = vunpack.c.l.b16 %v251
    %v909 = vunpack.c.h.b16 %v251
    %v910 = vunpack.c.l.b16 %v252
    %v911 = vunpack.c.h.b16 %v252
    %v912 = vunpack.c.l.b16 %v253
    %v913 = vunpack.c.h.b16 %v253
    %v914 = vunpack.c.l.b16 %v254
    %v915 = vunpack.c.h.b16 %v254
    %v916 = vunpack.c.l.b16 %v255
    %v917 = vunpack.c.h.b16 %v255
    %v918 = vunpack.c.l.b16 %v256
    %v919 = vunpack.c.h.b16 %v256
    %v920 = vunpack.c.l.b16 %v257
    %v921 = vunpack.c.h.b16 %v257
    %v922 = vunpack.c.l.b16 %v258
    %v923 = vunpack.c.h.b16 %v258
    %v924 = vunpack.c.l.b16 %v259
    %v925 = vunpack.c.h.b16 %v259
    %v926 = vunpack.c.l.b16 %v260
    %v927 = vunpack.c.h.b16 %v260
    %v928 = vunpack.c.l.b16 %v261
    %v929 = vunpack.c.h.b16 %v261
    %v930 = vunpack.c.l.b16 %v262
    %v931 = vunpack.c.h.b16 %v262
    %v932 = vunpack.c.l.b16 %v263
    %v933 = vunpack.c.h.b16 %v263
    %v934 = vunpack.c.l.b16 %v264
    %v935 = vunpack.c.h.b16 %v264
    %v936 = vunpack.c.l.b16 %v265
    %v937 = vunpack.c.h.b16 %v265
    %v938 = vunpack.c.l.b16 %v266
    %v939 = vunpack.c.h.b16 %v266
    %v940 = vunpack.c.l.b16 %v267
    %v941 = vunpack.c.h.b16 %v267
    %v942 = vunpack.c.l.b16 %v268
    %v943 = vunpack.c.h.b16 %v268
    %v944 = vunpack.c.l.b16 %v269
    %v945 = vunpack.c.h.b16 %v269
    %v946 = vunpack.c.l.b16 %v270
    %v947 = vunpack.c.h.b16 %v270
    %v948 = vunpack.c.l.b16 %v271
    %v949 = vunpack.c.h.b16 %v271
    %v950 = vunpack.c.l.b16 %v272
    %v951 = vunpack.c.h.b16 %v272
    %v952 = vunpack.c.l.b16 %v273
    %v953 = vunpack.c.h.b16 %v273
    %v954 = vunpack.c.l.b16 %v274
    %v955 = vunpack.c.h.b16 %v274
    %v956 = vunpack.c.l.b16 %v275
    %v957 = vunpack.c.h.b16 %v275
    %v958 = vunpack.c.l.b16 %v276
    %v959 = vunpack.c.h.b16 %v276
    %v960 = vunpack.c.l.b16 %v277
    %v961 = vunpack.c.h.b16 %v277
    %v962 = vunpack.c.l.b16 %v278
    %v963 = vunpack.c.h.b16 %v278
    %v964 = vunpack.c.l.b16 %v279
    %v965 = vunpack.c.h.b16 %v279
    %v966 = vunpack.c.l.b16 %v280
    %v967 = vunpack.c.h.b16 %v280
    %v968 = vunpack.c.l.b16 %v281
    %v969 = vunpack.c.h.b16 %v281
    %v970 = vunpack.c.l.b16 %v282
    %v971 = vunpack.c.h.b16 %v282
    %v972 = vunpack.c.l.b16 %v283
    %v973 = vunpack.c.h.b16 %v283
    %v974 = vunpack.c.l.b16 %v284
    %v975 = vunpack.c.h.b16 %v284
    %v976 = vunpack.c.l.b16 %v285
    %v977 = vunpack.c.h.b16 %v285
    %v978 = vunpack.c.l.b16 %v286
    %v979 = vunpack.c.h.b16 %v286
    %v980 = vunpack.c.l.b16 %v287
    %v981 = vunpack.c.h.b16 %v287
    %v982 = vunpack.c.l.b16 %v288
    %v983 = vunpack.c.h.b16 %v288
    %v984 = vunpack.c.l.b16 %v289
    %v985 = vunpack.c.h.b16 %v289
    %v986 = vunpack.c.l.b16 %v290
    %v987 = vunpack.c.h.b16 %v290
    %v988 = vunpack.c.l.b16 %v291
    %v989 = vunpack.c.h.b16 %v291
    %v990 = vunpack.c.l.b16 %v292
    %v991 = vunpack.c.h.b16 %v292
    %v992 = vunpack.c.l.b16 %v293
    %v993 = vunpack.c.h.b16 %v293
    %v994 = vunpack.c.l.b16 %v294
    %v995 = vunpack.c.h.b16 %v294
    %v996 = vunpack.c.l.b16 %v295
    %v997 = vunpack.c.h.b16 %v295
    %v998 = vunpack.c.l.b16 %v296
    %v999 = vunpack.c.h.b16 %v296
    %v1000 = vunpack.c.l.b16 %v297
    %v1001 = vunpack.c.h.b16 %v297
    %v1002 = vunpack.c.l.b16 %v298
    %v1003 = vunpack.c.h.b16 %v298
    %v1004 = vunpack.c.l.b16 %v299
    %v1005 = vunpack.c.h.b16 %v299
    %v1006 = vunpack.c.l.b16 %v300
    %v1007 = vunpack.c.h.b16 %v300
    %v1008 = vunpack.c.l.b16 %v301
    %v1009 = vunpack.c.h.b16 %v301
    %v1010 = vunpack.c.l.b16 %v302
    %v1011 = vunpack.c.h.b16 %v302
    %v1012 = vunpack.c.l.b16 %v303
    %v1013 = vunpack.c.h.b16 %v303
    %v1014 = vunpack.c.l.b16 %v304
    %v1015 = vunpack.c.h.b16 %v304
    %v1016 = vunpack.c.l.b16 %v305
    %v1017 = vunpack.c.h.b16 %v305
    %v1018 = vunpack.c.l.b16 %v306
    %v1019 = vunpack.c.h.b16 %v306
    %v1020 = vunpack.c.l.b16 %v307
    %v1021 = vunpack.c.h.b16 %v307
    %v1022 = vunpack.c.l.b16 %v308
    %v1023 = vunpack.c.h.b16 %v308
    %v1024 = vunpack.c.l.b16 %v309
    %v1025 = vunpack.c.h.b16 %v309
    %v1026 = vunpack.c.l.b16 %v310
    %v1027 = vunpack.c.h.b16 %v310
    %v1028 = vunpack.c.l.b16 %v311
    %v1029 = vunpack.c.h.b16 %v311
    %v1030 = vunpack.c.l.b16 %v312
    %v1031 = vunpack.c.h.b16 %v312
    %v1032 = vunpack.c.l.b16 %v313
    %v1033 = vunpack.c.h.b16 %v313
    %v1034 = vunpack.c.l.b16 %v314
    %v1035 = vunpack.c.h.b16 %v314
    %v1036 = vunpack.c.l.b16 %v315
    %v1037 = vunpack.c.h.b16 %v315
    %v1038 = vunpack.c.l.b16 %v316
    %v1039 = vunpack.c.h.b16 %v316
    %v1040 = vunpack.c.l.b16 %v317
    %v1041 = vunpack.c.h.b16 %v317
    %v1042 = vunpack.c.l.b16 %v318
    %v1043 = vunpack.c.h.b16 %v318
    %v1044 = vunpack.c.l.b16 %v319
    %v1045 = vunpack.c.h.b16 %v319
    %v1046 = vunpack.c.l.b16 %v320
    %v1047 = vunpack.c.h.b16 %v320
    %v1048 = vunpack.c.l.b16 %v321
    %v1049 = vunpack.c.h.b16 %v321
    %v1050 = vunpack.c.l.b16 %v322
    %v1051 = vunpack.c.h.b16 %v322
    %v1052 = vunpack.c.l.b16 %v323
    %v1053 = vunpack.c.h.b16 %v323
    %v1054 = vunpack.c.l.b16 %v324
    %v1055 = vunpack.c.h.b16 %v324
    %v1056 = vunpack.c.l.b16 %v325
    %v1057 = vunpack.c.h.b16 %v325
    %v1058 = vunpack.c.l.b16 %v326
    %v1059 = vunpack.c.h.b16 %v326
    %v1060 = vunpack.c.l.b16 %v327
    %v1061 = vunpack.c.h.b16 %v327
    %v1062 = vunpack.c.l.b16 %v328
    %v1063 = vunpack.c.h.b16 %v328
    %v1064 = vunpack.c.l.b16 %v329
    %v1065 = vunpack.c.h.b16 %v329
    %v1066 = vunpack.c.l.b16 %v330
    %v1067 = vunpack.c.h.b16 %v330
    %v1068 = vunpack.c.l.b16 %v331
    %v1069 = vunpack.c.h.b16 %v331
    %v1070 = vunpack.c.l.b16 %v332
    %v1071 = vunpack.c.h.b16 %v332
    %v1072 = vunpack.c.l.b16 %v333
    %v1073 = vunpack.c.h.b16 %v333
    %v1074 = vunpack.c.l.b16 %v334
    %v1075 = vunpack.c.h.b16 %v334
    %v1076 = vunpack.c.l.b16 %v335
    %v1077 = vunpack.c.h.b16 %v335
    %v1078 = vunpack.c.l.b16 %v336
    %v1079 = vunpack.c.h.b16 %v336
    %v1080 = vunpack.c.l.b16 %v337
    %v1081 = vunpack.c.h.b16 %v337
    %v1082 = vunpack.c.l.b16 %v338
    %v1083 = vunpack.c.h.b16 %v338
    %v1084 = vunpack.c.l.b16 %v339
    %v1085 = vunpack.c.h.b16 %v339
    %v1086 = vunpack.c.l.b16 %v340
    %v1087 = vunpack.c.h.b16 %v340
    %v1088 = vunpack.c.l.b16 %v341
    %v1089 = vunpack.c.h.b16 %v341
    %v1090 = vunpack.c.l.b16 %v342
    %v1091 = vunpack.c.h.b16 %v342
    %v1092 = vunpack.c.l.b16 %v343
    %v1093 = vunpack.c.h.b16 %v343
    %v1094 = vunpack.c.l.b16 %v344
    %v1095 = vunpack.c.h.b16 %v344
    %v1096 = vunpack.c.l.b16 %v345
    %v1097 = vunpack.c.h.b16 %v345
    %v1098 = vunpack.c.l.b16 %v346
    %v1099 = vunpack.c.h.b16 %v346
    %v1100 = vunpack.c.l.b16 %v347
    %v1101 = vunpack.c.h.b16 %v347
    %v1102 = vunpack.c.l.b16 %v348
    %v1103 = vunpack.c.h.b16 %v348
    %v1104 = vunpack.c.l.b16 %v349
    %v1105 = vunpack.c.h.b16 %v349
    %v1106 = vunpack.c.l.b16 %v350
    %v1107 = vunpack.c.h.b16 %v350
    %v1108 = vunpack.c.l.b16 %v351
    %v1109 = vunpack.c.h.b16 %v351
    %v1110 = vunpack.c.l.b16 %v352
    %v1111 = vunpack.c.h.b16 %v352
    %v1112 = vunpack.c.l.b16 %v353
    %v1113 = vunpack.c.h.b16 %v353
    %v1114 = vunpack.c.l.b16 %v354
    %v1115 = vunpack.c.h.b16 %v354
    %v1116 = vunpack.c.l.b16 %v355
    %v1117 = vunpack.c.h.b16 %v355
    %v1118 = vunpack.c.l.b16 %v356
    %v1119 = vunpack.c.h.b16 %v356
    %v1120 = vunpack.c.l.b16 %v357
    %v1121 = vunpack.c.h.b16 %v357
    %v1122 = vunpack.c.l.b16 %v358
    %v1123 = vunpack.c.h.b16 %v358
    %v1124 = vunpack.c.l.b16 %v359
    %v1125 = vunpack.c.h.b16 %v359
    %v1126 = vunpack.c.l.b16 %v360
    %v1127 = vunpack.c.h.b16 %v360
    %v1128 = vunpack.c.l.b16 %v361
    %v1129 = vunpack.c.h.b16 %v361
    %v1130 = vpack.c.b16 %v620, %v618
    %v1131 = vpack.c.b16 %v621, %v619
    %v1132 = vpack.c.b16 %v624, %v622
    %v1133 = vpack.c.b16 %v625, %v623
    %v1134 = vpack.c.b16 %v628, %v626
    %v1135 = vpack.c.b16 %v629, %v627
    %v1136 = vpack.c.b16 %v632, %v630
    %v1137 = vpack.c.b16 %v633, %v631
    %v1138 = vpack.c.b16 %v636, %v634
    %v1139 = vpack.c.b16 %v637, %v635
    %v1140 = vpack.c.b16 %v640, %v638
    %v1141 = vpack.c.b16 %v641, %v639
    %v1142 = vpack.c.b16 %v644, %v642
    %v1143 = vpack.c.b16 %v645, %v643
    %v1144 = vpack.c.b16 %v648, %v646
    %v1145 = vpack.c.b16 %v649, %v647
    %v1146 = vpack.c.b16 %v652, %v650
    %v1147 = vpack.c.b16 %v653, %v651
    %v1148 = vpack.c.b16 %v656, %v654
    %v1149 = vpack.c.b16 %v657, %v655
    %v1150 = vpack.c.b16 %v660, %v658
    %v1151 = vpack.c.b16 %v661, %v659
    %v1152 = vpack.c.b16 %v664, %v662
    %v1153 = vpack.c.b16 %v665, %v663
    %v1154 = vpack.c.b16 %v668, %v666
    %v1155 = vpack.c.b16 %v669, %v667
    %v1156 = vpack.c.b16 %v672, %v670
    %v1157 = vpack.c.b16 %v673, %v671
    %v1158 = vpack.c.b16 %v676, %v674
    %v1159 = vpack.c.b16 %v677, %v675
    %v1160 = vpack.c.b16 %v680, %v678
    %v1161 = vpack.c.b16 %v681, %v679
    %v1162 = vpack.c.b16 %v684, %v682
    %v1163 = vpack.c.b16 %v685, %v683
    %v1164 = vpack.c.b16 %v688, %v686
    %v1165 = vpack.c.b16 %v689, %v687
    %v1166 = vpack.c.b16 %v692, %v690
    %v1167 = vpack.c.b16 %v693, %v691
    %v1168 = vpack.c.b16 %v696, %v694
    %v1169 = vpack.c.b16 %v697, %v695
    %v1170 = vpack.c.b16 %v700, %v698
    %v1171 = vpack.c.b16 %v701, %v699
    %v1172 = vpack.c.b16 %v704, %v702
    %v1173 = vpack.c.b16 %v705, %v703
    %v1174 = vpack.c.b16 %v708, %v706
    %v1175 = vpack.c.b16 %v709, %v707
    %v1176 = vpack.c.b16 %v712, %v710
    %v1177 = vpack.c.b16 %v713, %v711
    %v1178 = vpack.c.b16 %v716, %v714
    %v1179 = vpack.c.b16 %v717, %v715
    %v1180 = vpack.c.b16 %v720, %v718
    %v1181 = vpack.c.b16 %v721, %v719
    %v1182 = vpack.c.b16 %v724, %v722
    %v1183 = vpack.c.b16 %v725, %v723
    %v1184 = vpack.c.b16 %v728, %v726
    %v1185 = vpack.c.b16 %v729, %v727
    %v1186 = vpack.c.b16 %v732, %v730
    %v1187 = vpack.c.b16 %v733, %v731
    %v1188 = vpack.c.b16 %v736, %v734
    %v1189 = vpack.c.b16 %v737, %v735
    %v1190 = vpack.c.b16 %v740, %v738
    %v1191 = vpack.c.b16 %v741, %v739
    %v1192 = vpack.c.b16 %v744, %v742
    %v1193 = vpack.c.b16 %v745, %v743
    %v1194 = vpack.c.b16 %v748, %v746
    %v1195 = vpack.c.b16 %v749, %v747
    %v1196 = vpack.c.b16 %v752, %v750
    %v1197 = vpack.c.b16 %v753, %v751
    %v1198 = vpack.c.b16 %v756, %v754
    %v1199 = vpack.c.b16 %v757, %v755
    %v1200 = vpack.c.b16 %v760, %v758
    %v1201 = vpack.c.b16 %v761, %v759
    %v1202 = vpack.c.b16 %v764, %v762
    %v1203 = vpack.c.b16 %v765, %v763
    %v1204 = vpack.c.b16 %v768, %v766
    %v1205 = vpack.c.b16 %v769, %v767
    %v1206 = vpack.c.b16 %v772, %v770
    %v1207 = vpack.c.b16 %v773, %v771
    %v1208 = vpack.c.b16 %v776, %v774
    %v1209 = vpack.c.b16 %v777, %v775
    %v1210 = vpack.c.b16 %v780, %v778
    %v1211 = vpack.c.b16 %v781, %v779
    %v1212 = vpack.c.b16 %v784, %v782
    %v1213 = vpack.c.b16 %v785, %v783
    %v1214 = vpack.c.b16 %v788, %v786
    %v1215 = vpack.c.b16 %v789, %v787
    %v1216 = vpack.c.b16 %v792, %v790
    %v1217 = vpack.c.b16 %v793, %v791
    %v1218 = vpack.c.b16 %v796, %v794
    %v1219 = vpack.c.b16 %v797, %v795
    %v1220 = vpack.c.b16 %v800, %v798
    %v1221 = vpack.c.b16 %v801, %v799
    %v1222 = vpack.c.b16 %v804, %v802
    %v1223 = vpack.c.b16 %v805, %v803
    %v1224 = vpack.c.b16 %v808, %v806
    %v1225 = vpack.c.b16 %v809, %v807
    %v1226 = vpack.c.b16 %v812, %v810
    %v1227 = vpack.c.b16 %v813, %v811
    %v1228 = vpack.c.b16 %v816, %v814
    %v1229 = vpack.c.b16 %v817, %v815
    %v1230 = vpack.c.b16 %v820, %v818
    %v1231 = vpack.c.b16 %v821, %v819
    %v1232 = vpack.c.b16 %v824, %v822
    %v1233 = vpack.c.b16 %v825, %v823
    %v1234 = vpack.c.b16 %v828, %v826
    %v1235 = vpack.c.b16 %v829, %v827
    %v1236 = vpack.c.b16 %v832, %v830
    %v1237 = vpack.c.b16 %v833, %v831
    %v1238 = vpack.c.b16 %v836, %v834
    %v1239 = vpack.c.b16 %v837, %v835
    %v1240 = vpack.c.b16 %v840, %v838
    %v1241 = vpack.c.b16 %v841, %v839
    %v1242 = vpack.c.b16 %v844, %v842
    %v1243 = vpack.c.b16 %v845, %v843
    %v1244 = vpack.c.b16 %v848, %v846
    %v1245 = vpack.c.b16 %v849, %v847
    %v1246 = vpack.c.b16 %v852, %v850
    %v1247 = vpack.c.b16 %v853, %v851
    %v1248 = vpack.c.b16 %v856, %v854
    %v1249 = vpack.c.b16 %v857, %v855
    %v1250 = vpack.c.b16 %v860, %v858
    %v1251 = vpack.c.b16 %v861, %v859
    %v1252 = vpack.c.b16 %v864, %v862
    %v1253 = vpack.c.b16 %v865, %v863
    %v1254 = vpack.c.b16 %v868, %v866
    %v1255 = vpack.c.b16 %v869, %v867
    %v1256 = vpack.c.b16 %v872, %v870
    %v1257 = vpack.c.b16 %v873, %v871
    %v1258 = vpack.c.b16 %v876, %v874
    %v1259 = vpack.c.b16 %v877, %v875
    %v1260 = vpack.c.b16 %v880, %v878
    %v1261 = vpack.c.b16 %v881, %v879
    %v1262 = vpack.c.b16 %v884, %v882
    %v1263 = vpack.c.b16 %v885, %v883
    %v1264 = vpack.c.b16 %v888, %v886
    %v1265 = vpack.c.b16 %v889, %v887
    %v1266 = vpack.c.b16 %v892, %v890
    %v1267 = vpack.c.b16 %v893, %v891
    %v1268 = vpack.c.b16 %v896, %v894
    %v1269 = vpack.c.b16 %v897, %v895
    %v1270 = vpack.c.b16 %v900, %v898
    %v1271 = vpack.c.b16 %v901, %v899
    %v1272 = vpack.c.b16 %v904, %v902
    %v1273 = vpack.c.b16 %v905, %v903
    %v1274 = vpack.c.b16 %v908, %v906
    %v1275 = vpack.c.b16 %v909, %v907
    %v1276 = vpack.c.b16 %v912, %v910
    %v1277 = vpack.c.b16 %v913, %v911
    %v1278 = vpack.c.b16 %v916, %v914
    %v1279 = vpack.c.b16 %v917, %v915
    %v1280 = vpack.c.b16 %v920, %v918
    %v1281 = vpack.c.b16 %v921, %v919
    %v1282 = vpack.c.b16 %v924, %v922
    %v1283 = vpack.c.b16 %v925, %v923
    %v1284 = vpack.c.b16 %v928, %v926
    %v1285 = vpack.c.b16 %v929, %v927
    %v1286 = vpack.c.b16 %v932, %v930
    %v1287 = vpack.c.b16 %v933, %v931
    %v1288 = vpack.c.b16 %v936, %v934
    %v1289 = vpack.c.b16 %v937, %v935
    %v1290 = vpack.c.b16 %v940, %v938
    %v1291 = vpack.c.b16 %v941, %v939
    %v1292 = vpack.c.b16 %v944, %v942
    %v1293 = vpack.c.b16 %v945, %v943
    %v1294 = vpack.c.b16 %v948, %v946
    %v1295 = vpack.c.b16 %v949, %v947
    %v1296 = vpack.c.b16 %v952, %v950
    %v1297 = vpack.c.b16 %v953, %v951
    %v1298 = vpack.c.b16 %v956, %v954
    %v1299 = vpack.c.b16 %v957, %v955
    %v1300 = vpack.c.b16 %v960, %v958
    %v1301 = vpack.c.b16 %v961, %v959
    %v1302 = vpack.c.b16 %v964, %v962
    %v1303 = vpack.c.b16 %v965, %v963
    %v1304 = vpack.c.b16 %v968, %v966
    %v1305 = vpack.c.b16 %v969, %v967
    %v1306 = vpack.c.b16 %v972, %v970
    %v1307 = vpack.c.b16 %v973, %v971
    %v1308 = vpack.c.b16 %v976, %v974
    %v1309 = vpack.c.b16 %v977, %v975
    %v1310 = vpack.c.b16 %v980, %v978
    %v1311 = vpack.c.b16 %v981, %v979
    %v1312 = vpack.c.b16 %v984, %v982
    %v1313 = vpack.c.b16 %v985, %v983
    %v1314 = vpack.c.b16 %v988, %v986
    %v1315 = vpack.c.b16 %v989, %v987
    %v1316 = vpack.c.b16 %v992, %v990
    %v1317 = vpack.c.b16 %v993, %v991
    %v1318 = vpack.c.b16 %v996, %v994
    %v1319 = vpack.c.b16 %v997, %v995
    %v1320 = vpack.c.b16 %v1000, %v998
    %v1321 = vpack.c.b16 %v1001, %v999
    %v1322 = vpack.c.b16 %v1004, %v1002
    %v1323 = vpack.c.b16 %v1005, %v1003
    %v1324 = vpack.c.b16 %v1008, %v1006
    %v1325 = vpack.c.b16 %v1009, %v1007
    %v1326 = vpack.c.b16 %v1012, %v1010
    %v1327 = vpack.c.b16 %v1013, %v1011
    %v1328 = vpack.c.b16 %v1016, %v1014
    %v1329 = vpack.c.b16 %v1017, %v1015
    %v1330 = vpack.c.b16 %v1020, %v1018
    %v1331 = vpack.c.b16 %v1021, %v1019
    %v1332 = vpack.c.b16 %v1024, %v1022
    %v1333 = vpack.c.b16 %v1025, %v1023
    %v1334 = vpack.c.b16 %v1028, %v1026
    %v1335 = vpack.c.b16 %v1029, %v1027
    %v1336 = vpack.c.b16 %v1032, %v1030
    %v1337 = vpack.c.b16 %v1033, %v1031
    %v1338 = vpack.c.b16 %v1036, %v1034
    %v1339 = vpack.c.b16 %v1037, %v1035
    %v1340 = vpack.c.b16 %v1040, %v1038
    %v1341 = vpack.c.b16 %v1041, %v1039
    %v1342 = vpack.c.b16 %v1044, %v1042
    %v1343 = vpack.c.b16 %v1045, %v1043
    %v1344 = vpack.c.b16 %v1048, %v1046
    %v1345 = vpack.c.b16 %v1049, %v1047
    %v1346 = vpack.c.b16 %v1052, %v1050
    %v1347 = vpack.c.b16 %v1053, %v1051
    %v1348 = vpack.c.b16 %v1056, %v1054
    %v1349 = vpack.c.b16 %v1057, %v1055
    %v1350 = vpack.c.b16 %v1060, %v1058
    %v1351 = vpack.c.b16 %v1061, %v1059
    %v1352 = vpack.c.b16 %v1064, %v1062
    %v1353 = vpack.c.b16 %v1065, %v1063
    %v1354 = vpack.c.b16 %v1068, %v1066
    %v1355 = vpack.c.b16 %v1069, %v1067
    %v1356 = vpack.c.b16 %v1072, %v1070
    %v1357 = vpack.c.b16 %v1073, %v1071
    %v1358 = vpack.c.b16 %v1076, %v1074
    %v1359 = vpack.c.b16 %v1077, %v1075
    %v1360 = vpack.c.b16 %v1080, %v1078
    %v1361 = vpack.c.b16 %v1081, %v1079
    %v1362 = vpack.c.b16 %v1084, %v1082
    %v1363 = vpack.c.b16 %v1085, %v1083
    %v1364 = vpack.c.b16 %v1088, %v1086
    %v1365 = vpack.c.b16 %v1089, %v1087
    %v1366 = vpack.c.b16 %v1092, %v1090
    %v1367 = vpack.c.b16 %v1093, %v1091
    %v1368 = vpack.c.b16 %v1096, %v1094
    %v1369 = vpack.c.b16 %v1097, %v1095
    %v1370 = vpack.c.b16 %v1100, %v1098
    %v1371 = vpack.c.b16 %v1101, %v1099
    %v1372 = vpack.c.b16 %v1104, %v1102
    %v1373 = vpack.c.b16 %v1105, %v1103
    %v1374 = vpack.c.b16 %v1108, %v1106
    %v1375 = vpack.c.b16 %v1109, %v1107
    %v1376 = vpack.c.b16 %v1112, %v1110
    %v1377 = vpack.c.b16 %v1113, %v1111
    %v1378 = vpack.c.b16 %v1116, %v1114
    %v1379 = vpack.c.b16 %v1117, %v1115
    %v1380 = vpack.c.b16 %v1120, %v1118
    %v1381 = vpack.c.b16 %v1121, %v1119
    %v1382 = vpack.c.b16 %v1124, %v1122
    %v1383 = vpack.c.b16 %v1125, %v1123
    %v1384 = vpack.c.b16 %v1128, %v1126
    %v1385 = vpack.c.b16 %v1129, %v1127
    %1642 = vmatpush.bf16.msra.mxu0 %v1144
    %1643 = vmatpush.bf16.msra.mxu0 %v1142
    %1644 = vmatpush.bf16.msra.mxu0 %v1140
    %1645 = vmatpush.bf16.msra.mxu0 %v1138
    %1646 = vmatpush.bf16.msra.mxu0 %v1136
    %1647 = vmatpush.bf16.msra.mxu0 %v1134
    %1648 = vmatpush.bf16.msra.mxu0 %v1132
    %1649 = vmatpush.bf16.msra.mxu0 %v1130
    %1650 = vmatmul.bf16.gmra.mxu0 %v90
    %v1651 = vpop.f32.mrf.mxu0
    %v1652 = vadd.f32 0.0, %v1651
    %v1653 = vpop.f32.mrf.mxu0
    %1654 = vdwg.mxu0
    %1655 = vmatpush.bf16.msra.mxu0 %v1160
    %1656 = vmatpush.bf16.msra.mxu0 %v1158
    %1657 = vmatpush.bf16.msra.mxu0 %v1156
    %1658 = vmatpush.bf16.msra.mxu0 %v1154
    %1659 = vmatpush.bf16.msra.mxu0 %v1152
    %1660 = vmatpush.bf16.msra.mxu0 %v1150
    %1661 = vmatpush.bf16.msra.mxu0 %v1148
    %1662 = vmatpush.bf16.msra.mxu0 %v1146
    %1663 = vmatmul.bf16.gmra.mxu0 %v91
    %v1664 = vpop.f32.mrf.mxu0
    %v1665 = vadd.f32 %v1652, %v1664
    %v1666 = vpop.f32.mrf.mxu0
    %1667 = vdwg.mxu0
    %1668 = vmatpush.bf16.msra.mxu0 %v1176
    %1669 = vmatpush.bf16.msra.mxu0 %v1174
    %1670 = vmatpush.bf16.msra.mxu0 %v1172
    %1671 = vmatpush.bf16.msra.mxu0 %v1170
    %1672 = vmatpush.bf16.msra.mxu0 %v1168
    %1673 = vmatpush.bf16.msra.mxu0 %v1166
    %1674 = vmatpush.bf16.msra.mxu0 %v1164
    %1675 = vmatpush.bf16.msra.mxu0 %v1162
    %1676 = vmatmul.bf16.gmra.mxu0 %v92
    %v1677 = vpop.f32.mrf.mxu0
    %v1678 = vadd.f32 %v1665, %v1677
    %v1679 = vpop.f32.mrf.mxu0
    %1680 = vdwg.mxu0
    %1681 = vmatpush.bf16.msra.mxu0 %v1192
    %1682 = vmatpush.bf16.msra.mxu0 %v1190
    %1683 = vmatpush.bf16.msra.mxu0 %v1188
    %1684 = vmatpush.bf16.msra.mxu0 %v1186
    %1685 = vmatpush.bf16.msra.mxu0 %v1184
    %1686 = vmatpush.bf16.msra.mxu0 %v1182
    %1687 = vmatpush.bf16.msra.mxu0 %v1180
    %1688 = vmatpush.bf16.msra.mxu0 %v1178
    %1689 = vmatmul.bf16.gmra.mxu0 %v93
    %v1690 = vpop.f32.mrf.mxu0
    %v1691 = vadd.f32 %v1678, %v1690
    %v1692 = vpop.f32.mrf.mxu0
    %1693 = vdwg.mxu0
    %1694 = vmatpush.bf16.msra.mxu0 %v1208
    %1695 = vmatpush.bf16.msra.mxu0 %v1206
    %1696 = vmatpush.bf16.msra.mxu0 %v1204
    %1697 = vmatpush.bf16.msra.mxu0 %v1202
    %1698 = vmatpush.bf16.msra.mxu0 %v1200
    %1699 = vmatpush.bf16.msra.mxu0 %v1198
    %1700 = vmatpush.bf16.msra.mxu0 %v1196
    %1701 = vmatpush.bf16.msra.mxu0 %v1194
    %1702 = vmatmul.bf16.gmra.mxu0 %v94
    %v1703 = vpop.f32.mrf.mxu0
    %v1704 = vadd.f32 %v1691, %v1703
    %v1705 = vpop.f32.mrf.mxu0
    %1706 = vdwg.mxu0
    %1707 = vmatpush.bf16.msra.mxu0 %v1224
    %1708 = vmatpush.bf16.msra.mxu0 %v1222
    %1709 = vmatpush.bf16.msra.mxu0 %v1220
    %1710 = vmatpush.bf16.msra.mxu0 %v1218
    %1711 = vmatpush.bf16.msra.mxu0 %v1216
    %1712 = vmatpush.bf16.msra.mxu0 %v1214
    %1713 = vmatpush.bf16.msra.mxu0 %v1212
    %1714 = vmatpush.bf16.msra.mxu0 %v1210
    %1715 = vmatmul.bf16.gmra.mxu0 %v95
    %v1716 = vpop.f32.mrf.mxu0
    %v1717 = vadd.f32 %v1704, %v1716
    %v1718 = vpop.f32.mrf.mxu0
    %1719 = vdwg.mxu0
    %1720 = vmatpush.bf16.msra.mxu0 %v1240
    %1721 = vmatpush.bf16.msra.mxu0 %v1238
    %1722 = vmatpush.bf16.msra.mxu0 %v1236
    %1723 = vmatpush.bf16.msra.mxu0 %v1234
    %1724 = vmatpush.bf16.msra.mxu0 %v1232
    %1725 = vmatpush.bf16.msra.mxu0 %v1230
    %1726 = vmatpush.bf16.msra.mxu0 %v1228
    %1727 = vmatpush.bf16.msra.mxu0 %v1226
    %1728 = vmatmul.bf16.gmra.mxu0 %v96
    %v1729 = vpop.f32.mrf.mxu0
    %v1730 = vadd.f32 %v1717, %v1729
    %v1731 = vpop.f32.mrf.mxu0
    %1732 = vdwg.mxu0
    %1733 = vmatpush.bf16.msra.mxu0 %v1256
    %1734 = vmatpush.bf16.msra.mxu0 %v1254
    %1735 = vmatpush.bf16.msra.mxu0 %v1252
    %1736 = vmatpush.bf16.msra.mxu0 %v1250
    %1737 = vmatpush.bf16.msra.mxu0 %v1248
    %1738 = vmatpush.bf16.msra.mxu0 %v1246
    %1739 = vmatpush.bf16.msra.mxu0 %v1244
    %1740 = vmatpush.bf16.msra.mxu0 %v1242
    %1741 = vmatmul.bf16.gmra.mxu0 %v97
    %v1742 = vpop.f32.mrf.mxu0
    %v1743 = vadd.f32 %v1730, %v1742
    %v1744 = vpop.f32.mrf.mxu0
    %1745 = vdwg.mxu0
    %1746 = vmatpush.bf16.msra.mxu0 %v1272
    %1747 = vmatpush.bf16.msra.mxu0 %v1270
    %1748 = vmatpush.bf16.msra.mxu0 %v1268
    %1749 = vmatpush.bf16.msra.mxu0 %v1266
    %1750 = vmatpush.bf16.msra.mxu0 %v1264
    %1751 = vmatpush.bf16.msra.mxu0 %v1262
    %1752 = vmatpush.bf16.msra.mxu0 %v1260
    %1753 = vmatpush.bf16.msra.mxu0 %v1258
    %1754 = vmatmul.bf16.gmra.mxu0 %v98
    %v1755 = vpop.f32.mrf.mxu0
    %v1756 = vadd.f32 %v1743, %v1755
    %v1757 = vpop.f32.mrf.mxu0
    %1758 = vdwg.mxu0
    %1759 = vmatpush.bf16.msra.mxu0 %v1288
    %1760 = vmatpush.bf16.msra.mxu0 %v1286
    %1761 = vmatpush.bf16.msra.mxu0 %v1284
    %1762 = vmatpush.bf16.msra.mxu0 %v1282
    %1763 = vmatpush.bf16.msra.mxu0 %v1280
    %1764 = vmatpush.bf16.msra.mxu0 %v1278
    %1765 = vmatpush.bf16.msra.mxu0 %v1276
    %1766 = vmatpush.bf16.msra.mxu0 %v1274
    %1767 = vmatmul.bf16.gmra.mxu0 %v99
    %v1768 = vpop.f32.mrf.mxu0
    %v1769 = vadd.f32 %v1756, %v1768
    %v1770 = vpop.f32.mrf.mxu0
    %1771 = vdwg.mxu0
    %1772 = vmatpush.bf16.msra.mxu0 %v1304
    %1773 = vmatpush.bf16.msra.mxu0 %v1302
    %1774 = vmatpush.bf16.msra.mxu0 %v1300
    %1775 = vmatpush.bf16.msra.mxu0 %v1298
    %1776 = vmatpush.bf16.msra.mxu0 %v1296
    %1777 = vmatpush.bf16.msra.mxu0 %v1294
    %1778 = vmatpush.bf16.msra.mxu0 %v1292
    %1779 = vmatpush.bf16.msra.mxu0 %v1290
    %1780 = vmatmul.bf16.gmra.mxu0 %v100
    %v1781 = vpop.f32.mrf.mxu0
    %v1782 = vadd.f32 %v1769, %v1781
    %v1783 = vpop.f32.mrf.mxu0
    %1784 = vdwg.mxu0
    %1785 = vmatpush.bf16.msra.mxu0 %v1320
    %1786 = vmatpush.bf16.msra.mxu0 %v1318
    %1787 = vmatpush.bf16.msra.mxu0 %v1316
    %1788 = vmatpush.bf16.msra.mxu0 %v1314
    %1789 = vmatpush.bf16.msra.mxu0 %v1312
    %1790 = vmatpush.bf16.msra.mxu0 %v1310
    %1791 = vmatpush.bf16.msra.mxu0 %v1308
    %1792 = vmatpush.bf16.msra.mxu0 %v1306
    %1793 = vmatmul.bf16.gmra.mxu0 %v101
    %v1794 = vpop.f32.mrf.mxu0
    %v1795 = vadd.f32 %v1782, %v1794
    %v1796 = vpop.f32.mrf.mxu0
    %1797 = vdwg.mxu0
    %1798 = vmatpush.bf16.msra.mxu0 %v1336
    %1799 = vmatpush.bf16.msra.mxu0 %v1334
    %1800 = vmatpush.bf16.msra.mxu0 %v1332
    %1801 = vmatpush.bf16.msra.mxu0 %v1330
    %1802 = vmatpush.bf16.msra.mxu0 %v1328
    %1803 = vmatpush.bf16.msra.mxu0 %v1326
    %1804 = vmatpush.bf16.msra.mxu0 %v1324
    %1805 = vmatpush.bf16.msra.mxu0 %v1322
    %1806 = vmatmul.bf16.gmra.mxu0 %v102
    %v1807 = vpop.f32.mrf.mxu0
    %v1808 = vadd.f32 %v1795, %v1807
    %v1809 = vpop.f32.mrf.mxu0
    %1810 = vdwg.mxu0
    %1811 = vmatpush.bf16.msra.mxu0 %v1352
    %1812 = vmatpush.bf16.msra.mxu0 %v1350
    %1813 = vmatpush.bf16.msra.mxu0 %v1348
    %1814 = vmatpush.bf16.msra.mxu0 %v1346
    %1815 = vmatpush.bf16.msra.mxu0 %v1344
    %1816 = vmatpush.bf16.msra.mxu0 %v1342
    %1817 = vmatpush.bf16.msra.mxu0 %v1340
    %1818 = vmatpush.bf16.msra.mxu0 %v1338
    %1819 = vmatmul.bf16.gmra.mxu0 %v103
    %v1820 = vpop.f32.mrf.mxu0
    %v1821 = vadd.f32 %v1808, %v1820
    %v1822 = vpop.f32.mrf.mxu0
    %1823 = vdwg.mxu0
    %1824 = vmatpush.bf16.msra.mxu0 %v1368
    %1825 = vmatpush.bf16.msra.mxu0 %v1366
    %1826 = vmatpush.bf16.msra.mxu0 %v1364
    %1827 = vmatpush.bf16.msra.mxu0 %v1362
    %1828 = vmatpush.bf16.msra.mxu0 %v1360
    %1829 = vmatpush.bf16.msra.mxu0 %v1358
    %1830 = vmatpush.bf16.msra.mxu0 %v1356
    %1831 = vmatpush.bf16.msra.mxu0 %v1354
    %1832 = vmatmul.bf16.gmra.mxu0 %v104
    %v1833 = vpop.f32.mrf.mxu0
    %v1834 = vadd.f32 %v1821, %v1833
    %v1835 = vpop.f32.mrf.mxu0
    %1836 = vdwg.mxu0
    %1837 = vmatpush.bf16.msra.mxu0 %v1384
    %1838 = vmatpush.bf16.msra.mxu0 %v1382
    %1839 = vmatpush.bf16.msra.mxu0 %v1380
    %1840 = vmatpush.bf16.msra.mxu0 %v1378
    %1841 = vmatpush.bf16.msra.mxu0 %v1376
    %1842 = vmatpush.bf16.msra.mxu0 %v1374
    %1843 = vmatpush.bf16.msra.mxu0 %v1372
    %1844 = vmatpush.bf16.msra.mxu0 %v1370
    %1845 = vmatmul.bf16.gmra.mxu0 %v105
    %v1846 = vpop.f32.mrf.mxu0
    %v1847 = vadd.f32 %v1834, %v1846
    %v1848 = vpop.f32.mrf.mxu0
    %1849 = vdwg.mxu0
    %1850 = vmatpush.bf16.msra.mxu0 %v1145
    %1851 = vmatpush.bf16.msra.mxu0 %v1143
    %1852 = vmatpush.bf16.msra.mxu0 %v1141
    %1853 = vmatpush.bf16.msra.mxu0 %v1139
    %1854 = vmatpush.bf16.msra.mxu0 %v1137
    %1855 = vmatpush.bf16.msra.mxu0 %v1135
    %1856 = vmatpush.bf16.msra.mxu0 %v1133
    %1857 = vmatpush.bf16.msra.mxu0 %v1131
    %1858 = vmatmul.bf16.gmra.mxu0 %v90
    %v1859 = vpop.f32.mrf.mxu0
    %v1860 = vadd.f32 0.0, %v1859
    %v1861 = vpop.f32.mrf.mxu0
    %1862 = vdwg.mxu0
    %1863 = vmatpush.bf16.msra.mxu0 %v1161
    %1864 = vmatpush.bf16.msra.mxu0 %v1159
    %1865 = vmatpush.bf16.msra.mxu0 %v1157
    %1866 = vmatpush.bf16.msra.mxu0 %v1155
    %1867 = vmatpush.bf16.msra.mxu0 %v1153
    %1868 = vmatpush.bf16.msra.mxu0 %v1151
    %1869 = vmatpush.bf16.msra.mxu0 %v1149
    %1870 = vmatpush.bf16.msra.mxu0 %v1147
    %1871 = vmatmul.bf16.gmra.mxu0 %v91
    %v1872 = vpop.f32.mrf.mxu0
    %v1873 = vadd.f32 %v1860, %v1872
    %v1874 = vpop.f32.mrf.mxu0
    %1875 = vdwg.mxu0
    %1876 = vmatpush.bf16.msra.mxu0 %v1177
    %1877 = vmatpush.bf16.msra.mxu0 %v1175
    %1878 = vmatpush.bf16.msra.mxu0 %v1173
    %1879 = vmatpush.bf16.msra.mxu0 %v1171
    %1880 = vmatpush.bf16.msra.mxu0 %v1169
    %1881 = vmatpush.bf16.msra.mxu0 %v1167
    %1882 = vmatpush.bf16.msra.mxu0 %v1165
    %1883 = vmatpush.bf16.msra.mxu0 %v1163
    %1884 = vmatmul.bf16.gmra.mxu0 %v92
    %v1885 = vpop.f32.mrf.mxu0
    %v1886 = vadd.f32 %v1873, %v1885
    %v1887 = vpop.f32.mrf.mxu0
    %1888 = vdwg.mxu0
    %1889 = vmatpush.bf16.msra.mxu0 %v1193
    %1890 = vmatpush.bf16.msra.mxu0 %v1191
    %1891 = vmatpush.bf16.msra.mxu0 %v1189
    %1892 = vmatpush.bf16.msra.mxu0 %v1187
    %1893 = vmatpush.bf16.msra.mxu0 %v1185
    %1894 = vmatpush.bf16.msra.mxu0 %v1183
    %1895 = vmatpush.bf16.msra.mxu0 %v1181
    %1896 = vmatpush.bf16.msra.mxu0 %v1179
    %1897 = vmatmul.bf16.gmra.mxu0 %v93
    %v1898 = vpop.f32.mrf.mxu0
    %v1899 = vadd.f32 %v1886, %v1898
    %v1900 = vpop.f32.mrf.mxu0
    %1901 = vdwg.mxu0
    %1902 = vmatpush.bf16.msra.mxu0 %v1209
    %1903 = vmatpush.bf16.msra.mxu0 %v1207
    %1904 = vmatpush.bf16.msra.mxu0 %v1205
    %1905 = vmatpush.bf16.msra.mxu0 %v1203
    %1906 = vmatpush.bf16.msra.mxu0 %v1201
    %1907 = vmatpush.bf16.msra.mxu0 %v1199
    %1908 = vmatpush.bf16.msra.mxu0 %v1197
    %1909 = vmatpush.bf16.msra.mxu0 %v1195
    %1910 = vmatmul.bf16.gmra.mxu0 %v94
    %v1911 = vpop.f32.mrf.mxu0
    %v1912 = vadd.f32 %v1899, %v1911
    %v1913 = vpop.f32.mrf.mxu0
    %1914 = vdwg.mxu0
    %1915 = vmatpush.bf16.msra.mxu0 %v1225
    %1916 = vmatpush.bf16.msra.mxu0 %v1223
    %1917 = vmatpush.bf16.msra.mxu0 %v1221
    %1918 = vmatpush.bf16.msra.mxu0 %v1219
    %1919 = vmatpush.bf16.msra.mxu0 %v1217
    %1920 = vmatpush.bf16.msra.mxu0 %v1215
    %1921 = vmatpush.bf16.msra.mxu0 %v1213
    %1922 = vmatpush.bf16.msra.mxu0 %v1211
    %1923 = vmatmul.bf16.gmra.mxu0 %v95
    %v1924 = vpop.f32.mrf.mxu0
    %v1925 = vadd.f32 %v1912, %v1924
    %v1926 = vpop.f32.mrf.mxu0
    %1927 = vdwg.mxu0
    %1928 = vmatpush.bf16.msra.mxu0 %v1241
    %1929 = vmatpush.bf16.msra.mxu0 %v1239
    %1930 = vmatpush.bf16.msra.mxu0 %v1237
    %1931 = vmatpush.bf16.msra.mxu0 %v1235
    %1932 = vmatpush.bf16.msra.mxu0 %v1233
    %1933 = vmatpush.bf16.msra.mxu0 %v1231
    %1934 = vmatpush.bf16.msra.mxu0 %v1229
    %1935 = vmatpush.bf16.msra.mxu0 %v1227
    %1936 = vmatmul.bf16.gmra.mxu0 %v96
    %v1937 = vpop.f32.mrf.mxu0
    %v1938 = vadd.f32 %v1925, %v1937
    %v1939 = vpop.f32.mrf.mxu0
    %1940 = vdwg.mxu0
    %1941 = vmatpush.bf16.msra.mxu0 %v1257
    %1942 = vmatpush.bf16.msra.mxu0 %v1255
    %1943 = vmatpush.bf16.msra.mxu0 %v1253
    %1944 = vmatpush.bf16.msra.mxu0 %v1251
    %1945 = vmatpush.bf16.msra.mxu0 %v1249
    %1946 = vmatpush.bf16.msra.mxu0 %v1247
    %1947 = vmatpush.bf16.msra.mxu0 %v1245
    %1948 = vmatpush.bf16.msra.mxu0 %v1243
    %1949 = vmatmul.bf16.gmra.mxu0 %v97
    %v1950 = vpop.f32.mrf.mxu0
    %v1951 = vadd.f32 %v1938, %v1950
    %v1952 = vpop.f32.mrf.mxu0
    %1953 = vdwg.mxu0
    %1954 = vmatpush.bf16.msra.mxu0 %v1273
    %1955 = vmatpush.bf16.msra.mxu0 %v1271
    %1956 = vmatpush.bf16.msra.mxu0 %v1269
    %1957 = vmatpush.bf16.msra.mxu0 %v1267
    %1958 = vmatpush.bf16.msra.mxu0 %v1265
    %1959 = vmatpush.bf16.msra.mxu0 %v1263
    %1960 = vmatpush.bf16.msra.mxu0 %v1261
    %1961 = vmatpush.bf16.msra.mxu0 %v1259
    %1962 = vmatmul.bf16.gmra.mxu0 %v98
    %v1963 = vpop.f32.mrf.mxu0
    %v1964 = vadd.f32 %v1951, %v1963
    %v1965 = vpop.f32.mrf.mxu0
    %1966 = vdwg.mxu0
    %1967 = vmatpush.bf16.msra.mxu0 %v1289
    %1968 = vmatpush.bf16.msra.mxu0 %v1287
    %1969 = vmatpush.bf16.msra.mxu0 %v1285
    %1970 = vmatpush.bf16.msra.mxu0 %v1283
    %1971 = vmatpush.bf16.msra.mxu0 %v1281
    %1972 = vmatpush.bf16.msra.mxu0 %v1279
    %1973 = vmatpush.bf16.msra.mxu0 %v1277
    %1974 = vmatpush.bf16.msra.mxu0 %v1275
    %1975 = vmatmul.bf16.gmra.mxu0 %v99
    %v1976 = vpop.f32.mrf.mxu0
    %v1977 = vadd.f32 %v1964, %v1976
    %v1978 = vpop.f32.mrf.mxu0
    %1979 = vdwg.mxu0
    %1980 = vmatpush.bf16.msra.mxu0 %v1305
    %1981 = vmatpush.bf16.msra.mxu0 %v1303
    %1982 = vmatpush.bf16.msra.mxu0 %v1301
    %1983 = vmatpush.bf16.msra.mxu0 %v1299
    %1984 = vmatpush.bf16.msra.mxu0 %v1297
    %1985 = vmatpush.bf16.msra.mxu0 %v1295
    %1986 = vmatpush.bf16.msra.mxu0 %v1293
    %1987 = vmatpush.bf16.msra.mxu0 %v1291
    %1988 = vmatmul.bf16.gmra.mxu0 %v100
    %v1989 = vpop.f32.mrf.mxu0
    %v1990 = vadd.f32 %v1977, %v1989
    %v1991 = vpop.f32.mrf.mxu0
    %1992 = vdwg.mxu0
    %1993 = vmatpush.bf16.msra.mxu0 %v1321
    %1994 = vmatpush.bf16.msra.mxu0 %v1319
    %1995 = vmatpush.bf16.msra.mxu0 %v1317
    %1996 = vmatpush.bf16.msra.mxu0 %v1315
    %1997 = vmatpush.bf16.msra.mxu0 %v1313
    %1998 = vmatpush.bf16.msra.mxu0 %v1311
    %1999 = vmatpush.bf16.msra.mxu0 %v1309
    %2000 = vmatpush.bf16.msra.mxu0 %v1307
    %2001 = vmatmul.bf16.gmra.mxu0 %v101
    %v2002 = vpop.f32.mrf.mxu0
    %v2003 = vadd.f32 %v1990, %v2002
    %v2004 = vpop.f32.mrf.mxu0
    %2005 = vdwg.mxu0
    %2006 = vmatpush.bf16.msra.mxu0 %v1337
    %2007 = vmatpush.bf16.msra.mxu0 %v1335
    %2008 = vmatpush.bf16.msra.mxu0 %v1333
    %2009 = vmatpush.bf16.msra.mxu0 %v1331
    %2010 = vmatpush.bf16.msra.mxu0 %v1329
    %2011 = vmatpush.bf16.msra.mxu0 %v1327
    %2012 = vmatpush.bf16.msra.mxu0 %v1325
    %2013 = vmatpush.bf16.msra.mxu0 %v1323
    %2014 = vmatmul.bf16.gmra.mxu0 %v102
    %v2015 = vpop.f32.mrf.mxu0
    %v2016 = vadd.f32 %v2003, %v2015
    %v2017 = vpop.f32.mrf.mxu0
    %2018 = vdwg.mxu0
    %2019 = vmatpush.bf16.msra.mxu0 %v1353
    %2020 = vmatpush.bf16.msra.mxu0 %v1351
    %2021 = vmatpush.bf16.msra.mxu0 %v1349
    %2022 = vmatpush.bf16.msra.mxu0 %v1347
    %2023 = vmatpush.bf16.msra.mxu0 %v1345
    %2024 = vmatpush.bf16.msra.mxu0 %v1343
    %2025 = vmatpush.bf16.msra.mxu0 %v1341
    %2026 = vmatpush.bf16.msra.mxu0 %v1339
    %2027 = vmatmul.bf16.gmra.mxu0 %v103
    %v2028 = vpop.f32.mrf.mxu0
    %v2029 = vadd.f32 %v2016, %v2028
    %v2030 = vpop.f32.mrf.mxu0
    %2031 = vdwg.mxu0
    %2032 = vmatpush.bf16.msra.mxu0 %v1369
    %2033 = vmatpush.bf16.msra.mxu0 %v1367
    %2034 = vmatpush.bf16.msra.mxu0 %v1365
    %2035 = vmatpush.bf16.msra.mxu0 %v1363
    %2036 = vmatpush.bf16.msra.mxu0 %v1361
    %2037 = vmatpush.bf16.msra.mxu0 %v1359
    %2038 = vmatpush.bf16.msra.mxu0 %v1357
    %2039 = vmatpush.bf16.msra.mxu0 %v1355
    %2040 = vmatmul.bf16.gmra.mxu0 %v104
    %v2041 = vpop.f32.mrf.mxu0
    %v2042 = vadd.f32 %v2029, %v2041
    %v2043 = vpop.f32.mrf.mxu0
    %2044 = vdwg.mxu0
    %2045 = vmatpush.bf16.msra.mxu0 %v1385
    %2046 = vmatpush.bf16.msra.mxu0 %v1383
    %2047 = vmatpush.bf16.msra.mxu0 %v1381
    %2048 = vmatpush.bf16.msra.mxu0 %v1379
    %2049 = vmatpush.bf16.msra.mxu0 %v1377
    %2050 = vmatpush.bf16.msra.mxu0 %v1375
    %2051 = vmatpush.bf16.msra.mxu0 %v1373
    %2052 = vmatpush.bf16.msra.mxu0 %v1371
    %2053 = vmatmul.bf16.gmra.mxu0 %v105
    %v2054 = vpop.f32.mrf.mxu0
    %v2055 = vadd.f32 %v2042, %v2054
    %v2056 = vpop.f32.mrf.mxu0
    %2057 = vdwg.mxu0
    %v2058 = vpack.c.bf16 %v1847, %v1847
    %v2059 = vpack.c.bf16 %v2055, %v2055
    %v2060 = vld [vmem:[%s2] sm:$0xff]
    %v2061 = vld [vmem:[%s2 + $0x8] sm:$0xff]
    %v2062 = vld [vmem:[%s2 + $0x10] sm:$0xff]
    %v2063 = vld [vmem:[%s2 + $0x18] sm:$0xff]
    %v2064 = vld [vmem:[%s2 + $0x20] sm:$0xff]
    %v2065 = vld [vmem:[%s2 + $0x28] sm:$0xff]
    %v2066 = vld [vmem:[%s2 + $0x30] sm:$0xff]
    %v2067 = vld [vmem:[%s2 + $0x38] sm:$0xff]
    %v2068 = vld [vmem:[%s2 + $0x40] sm:$0xff]
    %v2069 = vld [vmem:[%s2 + $0x48] sm:$0xff]
    %v2070 = vld [vmem:[%s2 + $0x50] sm:$0xff]
    %v2071 = vld [vmem:[%s2 + $0x58] sm:$0xff]
    %v2072 = vld [vmem:[%s2 + $0x60] sm:$0xff]
    %v2073 = vld [vmem:[%s2 + $0x68] sm:$0xff]
    %v2074 = vld [vmem:[%s2 + $0x70] sm:$0xff]
    %v2075 = vld [vmem:[%s2 + $0x78] sm:$0xff]
    %v2076 = vld [vmem:[%s2 + $0x80] sm:$0xff]
    %v2077 = vld [vmem:[%s2 + $0x88] sm:$0xff]
    %v2078 = vld [vmem:[%s2 + $0x90] sm:$0xff]
    %v2079 = vld [vmem:[%s2 + $0x98] sm:$0xff]
    %v2080 = vld [vmem:[%s2 + $0xa0] sm:$0xff]
    %v2081 = vld [vmem:[%s2 + $0xa8] sm:$0xff]
    %v2082 = vld [vmem:[%s2 + $0xb0] sm:$0xff]
    %v2083 = vld [vmem:[%s2 + $0xb8] sm:$0xff]
    %v2084 = vld [vmem:[%s2 + $0xc0] sm:$0xff]
    %v2085 = vld [vmem:[%s2 + $0xc8] sm:$0xff]
    %v2086 = vld [vmem:[%s2 + $0xd0] sm:$0xff]
    %v2087 = vld [vmem:[%s2 + $0xd8] sm:$0xff]
    %v2088 = vld [vmem:[%s2 + $0xe0] sm:$0xff]
    %v2089 = vld [vmem:[%s2 + $0xe8] sm:$0xff]
    %v2090 = vld [vmem:[%s2 + $0xf0] sm:$0xff]
    %v2091 = vld [vmem:[%s2 + $0xf8] sm:$0xff]
    %v2092 = vld [vmem:[%s2 + $0x100] sm:$0xff]
    %v2093 = vld [vmem:[%s2 + $0x108] sm:$0xff]
    %v2094 = vld [vmem:[%s2 + $0x110] sm:$0xff]
    %v2095 = vld [vmem:[%s2 + $0x118] sm:$0xff]
    %v2096 = vld [vmem:[%s2 + $0x120] sm:$0xff]
    %v2097 = vld [vmem:[%s2 + $0x128] sm:$0xff]
    %v2098 = vld [vmem:[%s2 + $0x130] sm:$0xff]
    %v2099 = vld [vmem:[%s2 + $0x138] sm:$0xff]
    %v2100 = vld [vmem:[%s2 + $0x140] sm:$0xff]
    %v2101 = vld [vmem:[%s2 + $0x148] sm:$0xff]
    %v2102 = vld [vmem:[%s2 + $0x150] sm:$0xff]
    %v2103 = vld [vmem:[%s2 + $0x158] sm:$0xff]
    %v2104 = vld [vmem:[%s2 + $0x160] sm:$0xff]
    %v2105 = vld [vmem:[%s2 + $0x168] sm:$0xff]
    %v2106 = vld [vmem:[%s2 + $0x170] sm:$0xff]
    %v2107 = vld [vmem:[%s2 + $0x178] sm:$0xff]
    %v2108 = vld [vmem:[%s2 + $0x180] sm:$0xff]
    %v2109 = vld [vmem:[%s2 + $0x188] sm:$0xff]
    %v2110 = vld [vmem:[%s2 + $0x190] sm:$0xff]
    %v2111 = vld [vmem:[%s2 + $0x198] sm:$0xff]
    %v2112 = vld [vmem:[%s2 + $0x1a0] sm:$0xff]
    %v2113 = vld [vmem:[%s2 + $0x1a8] sm:$0xff]
    %v2114 = vld [vmem:[%s2 + $0x1b0] sm:$0xff]
    %v2115 = vld [vmem:[%s2 + $0x1b8] sm:$0xff]
    %v2116 = vld [vmem:[%s2 + $0x1c0] sm:$0xff]
    %v2117 = vld [vmem:[%s2 + $0x1c8] sm:$0xff]
    %v2118 = vld [vmem:[%s2 + $0x1d0] sm:$0xff]
    %v2119 = vld [vmem:[%s2 + $0x1d8] sm:$0xff]
    %v2120 = vld [vmem:[%s2 + $0x1e0] sm:$0xff]
    %v2121 = vld [vmem:[%s2 + $0x1e8] sm:$0xff]
    %v2122 = vld [vmem:[%s2 + $0x1f0] sm:$0xff]
    %v2123 = vld [vmem:[%s2 + $0x1f8] sm:$0xff]
    %v2124 = vld [vmem:[%s2 + $0x200] sm:$0xff]
    %v2125 = vld [vmem:[%s2 + $0x208] sm:$0xff]
    %v2126 = vld [vmem:[%s2 + $0x210] sm:$0xff]
    %v2127 = vld [vmem:[%s2 + $0x218] sm:$0xff]
    %v2128 = vld [vmem:[%s2 + $0x220] sm:$0xff]
    %v2129 = vld [vmem:[%s2 + $0x228] sm:$0xff]
    %v2130 = vld [vmem:[%s2 + $0x230] sm:$0xff]
    %v2131 = vld [vmem:[%s2 + $0x238] sm:$0xff]
    %v2132 = vld [vmem:[%s2 + $0x240] sm:$0xff]
    %v2133 = vld [vmem:[%s2 + $0x248] sm:$0xff]
    %v2134 = vld [vmem:[%s2 + $0x250] sm:$0xff]
    %v2135 = vld [vmem:[%s2 + $0x258] sm:$0xff]
    %v2136 = vld [vmem:[%s2 + $0x260] sm:$0xff]
    %v2137 = vld [vmem:[%s2 + $0x268] sm:$0xff]
    %v2138 = vld [vmem:[%s2 + $0x270] sm:$0xff]
    %v2139 = vld [vmem:[%s2 + $0x278] sm:$0xff]
    %v2140 = vld [vmem:[%s2 + $0x280] sm:$0xff]
    %v2141 = vld [vmem:[%s2 + $0x288] sm:$0xff]
    %v2142 = vld [vmem:[%s2 + $0x290] sm:$0xff]
    %v2143 = vld [vmem:[%s2 + $0x298] sm:$0xff]
    %v2144 = vld [vmem:[%s2 + $0x2a0] sm:$0xff]
    %v2145 = vld [vmem:[%s2 + $0x2a8] sm:$0xff]
    %v2146 = vld [vmem:[%s2 + $0x2b0] sm:$0xff]
    %v2147 = vld [vmem:[%s2 + $0x2b8] sm:$0xff]
    %v2148 = vld [vmem:[%s2 + $0x2c0] sm:$0xff]
    %v2149 = vld [vmem:[%s2 + $0x2c8] sm:$0xff]
    %v2150 = vld [vmem:[%s2 + $0x2d0] sm:$0xff]
    %v2151 = vld [vmem:[%s2 + $0x2d8] sm:$0xff]
    %v2152 = vld [vmem:[%s2 + $0x2e0] sm:$0xff]
    %v2153 = vld [vmem:[%s2 + $0x2e8] sm:$0xff]
    %v2154 = vld [vmem:[%s2 + $0x2f0] sm:$0xff]
    %v2155 = vld [vmem:[%s2 + $0x2f8] sm:$0xff]
    %v2156 = vld [vmem:[%s2 + $0x300] sm:$0xff]
    %v2157 = vld [vmem:[%s2 + $0x308] sm:$0xff]
    %v2158 = vld [vmem:[%s2 + $0x310] sm:$0xff]
    %v2159 = vld [vmem:[%s2 + $0x318] sm:$0xff]
    %v2160 = vld [vmem:[%s2 + $0x320] sm:$0xff]
    %v2161 = vld [vmem:[%s2 + $0x328] sm:$0xff]
    %v2162 = vld [vmem:[%s2 + $0x330] sm:$0xff]
    %v2163 = vld [vmem:[%s2 + $0x338] sm:$0xff]
    %v2164 = vld [vmem:[%s2 + $0x340] sm:$0xff]
    %v2165 = vld [vmem:[%s2 + $0x348] sm:$0xff]
    %v2166 = vld [vmem:[%s2 + $0x350] sm:$0xff]
    %v2167 = vld [vmem:[%s2 + $0x358] sm:$0xff]
    %v2168 = vld [vmem:[%s2 + $0x360] sm:$0xff]
    %v2169 = vld [vmem:[%s2 + $0x368] sm:$0xff]
    %v2170 = vld [vmem:[%s2 + $0x370] sm:$0xff]
    %v2171 = vld [vmem:[%s2 + $0x378] sm:$0xff]
    %v2172 = vld [vmem:[%s2 + $0x380] sm:$0xff]
    %v2173 = vld [vmem:[%s2 + $0x388] sm:$0xff]
    %v2174 = vld [vmem:[%s2 + $0x390] sm:$0xff]
    %v2175 = vld [vmem:[%s2 + $0x398] sm:$0xff]
    %v2176 = vld [vmem:[%s2 + $0x3a0] sm:$0xff]
    %v2177 = vld [vmem:[%s2 + $0x3a8] sm:$0xff]
    %v2178 = vld [vmem:[%s2 + $0x3b0] sm:$0xff]
    %v2179 = vld [vmem:[%s2 + $0x3b8] sm:$0xff]
    %v2180 = vld [vmem:[%s2 + $0x3c0] sm:$0xff]
    %v2181 = vld [vmem:[%s2 + $0x3c8] sm:$0xff]
    %v2182 = vld [vmem:[%s2 + $0x3d0] sm:$0xff]
    %v2183 = vld [vmem:[%s2 + $0x3d8] sm:$0xff]
    %v2184 = vld [vmem:[%s2 + $0x3e0] sm:$0xff]
    %v2185 = vld [vmem:[%s2 + $0x3e8] sm:$0xff]
    %v2186 = vld [vmem:[%s2 + $0x3f0] sm:$0xff]
    %v2187 = vld [vmem:[%s2 + $0x3f8] sm:$0xff]
    %v2188 = vld [vmem:[%s2 + $0x400] sm:$0xff]
    %v2189 = vld [vmem:[%s2 + $0x408] sm:$0xff]
    %v2190 = vld [vmem:[%s2 + $0x410] sm:$0xff]
    %v2191 = vld [vmem:[%s2 + $0x418] sm:$0xff]
    %v2192 = vld [vmem:[%s2 + $0x420] sm:$0xff]
    %v2193 = vld [vmem:[%s2 + $0x428] sm:$0xff]
    %v2194 = vld [vmem:[%s2 + $0x430] sm:$0xff]
    %v2195 = vld [vmem:[%s2 + $0x438] sm:$0xff]
    %v2196 = vld [vmem:[%s2 + $0x440] sm:$0xff]
    %v2197 = vld [vmem:[%s2 + $0x448] sm:$0xff]
    %v2198 = vld [vmem:[%s2 + $0x450] sm:$0xff]
    %v2199 = vld [vmem:[%s2 + $0x458] sm:$0xff]
    %v2200 = vld [vmem:[%s2 + $0x460] sm:$0xff]
    %v2201 = vld [vmem:[%s2 + $0x468] sm:$0xff]
    %v2202 = vld [vmem:[%s2 + $0x470] sm:$0xff]
    %v2203 = vld [vmem:[%s2 + $0x478] sm:$0xff]
    %v2204 = vld [vmem:[%s2 + $0x480] sm:$0xff]
    %v2205 = vld [vmem:[%s2 + $0x488] sm:$0xff]
    %v2206 = vld [vmem:[%s2 + $0x490] sm:$0xff]
    %v2207 = vld [vmem:[%s2 + $0x498] sm:$0xff]
    %v2208 = vld [vmem:[%s2 + $0x4a0] sm:$0xff]
    %v2209 = vld [vmem:[%s2 + $0x4a8] sm:$0xff]
    %v2210 = vld [vmem:[%s2 + $0x4b0] sm:$0xff]
    %v2211 = vld [vmem:[%s2 + $0x4b8] sm:$0xff]
    %v2212 = vld [vmem:[%s2 + $0x4c0] sm:$0xff]
    %v2213 = vld [vmem:[%s2 + $0x4c8] sm:$0xff]
    %v2214 = vld [vmem:[%s2 + $0x4d0] sm:$0xff]
    %v2215 = vld [vmem:[%s2 + $0x4d8] sm:$0xff]
    %v2216 = vld [vmem:[%s2 + $0x4e0] sm:$0xff]
    %v2217 = vld [vmem:[%s2 + $0x4e8] sm:$0xff]
    %v2218 = vld [vmem:[%s2 + $0x4f0] sm:$0xff]
    %v2219 = vld [vmem:[%s2 + $0x4f8] sm:$0xff]
    %v2220 = vld [vmem:[%s2 + $0x500] sm:$0xff]
    %v2221 = vld [vmem:[%s2 + $0x508] sm:$0xff]
    %v2222 = vld [vmem:[%s2 + $0x510] sm:$0xff]
    %v2223 = vld [vmem:[%s2 + $0x518] sm:$0xff]
    %v2224 = vld [vmem:[%s2 + $0x520] sm:$0xff]
    %v2225 = vld [vmem:[%s2 + $0x528] sm:$0xff]
    %v2226 = vld [vmem:[%s2 + $0x530] sm:$0xff]
    %v2227 = vld [vmem:[%s2 + $0x538] sm:$0xff]
    %v2228 = vld [vmem:[%s2 + $0x540] sm:$0xff]
    %v2229 = vld [vmem:[%s2 + $0x548] sm:$0xff]
    %v2230 = vld [vmem:[%s2 + $0x550] sm:$0xff]
    %v2231 = vld [vmem:[%s2 + $0x558] sm:$0xff]
    %v2232 = vld [vmem:[%s2 + $0x560] sm:$0xff]
    %v2233 = vld [vmem:[%s2 + $0x568] sm:$0xff]
    %v2234 = vld [vmem:[%s2 + $0x570] sm:$0xff]
    %v2235 = vld [vmem:[%s2 + $0x578] sm:$0xff]
    %v2236 = vld [vmem:[%s2 + $0x580] sm:$0xff]
    %v2237 = vld [vmem:[%s2 + $0x588] sm:$0xff]
    %v2238 = vld [vmem:[%s2 + $0x590] sm:$0xff]
    %v2239 = vld [vmem:[%s2 + $0x598] sm:$0xff]
    %v2240 = vld [vmem:[%s2 + $0x5a0] sm:$0xff]
    %v2241 = vld [vmem:[%s2 + $0x5a8] sm:$0xff]
    %v2242 = vld [vmem:[%s2 + $0x5b0] sm:$0xff]
    %v2243 = vld [vmem:[%s2 + $0x5b8] sm:$0xff]
    %v2244 = vld [vmem:[%s2 + $0x5c0] sm:$0xff]
    %v2245 = vld [vmem:[%s2 + $0x5c8] sm:$0xff]
    %v2246 = vld [vmem:[%s2 + $0x5d0] sm:$0xff]
    %v2247 = vld [vmem:[%s2 + $0x5d8] sm:$0xff]
    %v2248 = vld [vmem:[%s2 + $0x5e0] sm:$0xff]
    %v2249 = vld [vmem:[%s2 + $0x5e8] sm:$0xff]
    %v2250 = vld [vmem:[%s2 + $0x5f0] sm:$0xff]
    %v2251 = vld [vmem:[%s2 + $0x5f8] sm:$0xff]
    %v2252 = vld [vmem:[%s2 + $0x600] sm:$0xff]
    %v2253 = vld [vmem:[%s2 + $0x608] sm:$0xff]
    %v2254 = vld [vmem:[%s2 + $0x610] sm:$0xff]
    %v2255 = vld [vmem:[%s2 + $0x618] sm:$0xff]
    %v2256 = vld [vmem:[%s2 + $0x620] sm:$0xff]
    %v2257 = vld [vmem:[%s2 + $0x628] sm:$0xff]
    %v2258 = vld [vmem:[%s2 + $0x630] sm:$0xff]
    %v2259 = vld [vmem:[%s2 + $0x638] sm:$0xff]
    %v2260 = vld [vmem:[%s2 + $0x640] sm:$0xff]
    %v2261 = vld [vmem:[%s2 + $0x648] sm:$0xff]
    %v2262 = vld [vmem:[%s2 + $0x650] sm:$0xff]
    %v2263 = vld [vmem:[%s2 + $0x658] sm:$0xff]
    %v2264 = vld [vmem:[%s2 + $0x660] sm:$0xff]
    %v2265 = vld [vmem:[%s2 + $0x668] sm:$0xff]
    %v2266 = vld [vmem:[%s2 + $0x670] sm:$0xff]
    %v2267 = vld [vmem:[%s2 + $0x678] sm:$0xff]
    %v2268 = vld [vmem:[%s2 + $0x680] sm:$0xff]
    %v2269 = vld [vmem:[%s2 + $0x688] sm:$0xff]
    %v2270 = vld [vmem:[%s2 + $0x690] sm:$0xff]
    %v2271 = vld [vmem:[%s2 + $0x698] sm:$0xff]
    %v2272 = vld [vmem:[%s2 + $0x6a0] sm:$0xff]
    %v2273 = vld [vmem:[%s2 + $0x6a8] sm:$0xff]
    %v2274 = vld [vmem:[%s2 + $0x6b0] sm:$0xff]
    %v2275 = vld [vmem:[%s2 + $0x6b8] sm:$0xff]
    %v2276 = vld [vmem:[%s2 + $0x6c0] sm:$0xff]
    %v2277 = vld [vmem:[%s2 + $0x6c8] sm:$0xff]
    %v2278 = vld [vmem:[%s2 + $0x6d0] sm:$0xff]
    %v2279 = vld [vmem:[%s2 + $0x6d8] sm:$0xff]
    %v2280 = vld [vmem:[%s2 + $0x6e0] sm:$0xff]
    %v2281 = vld [vmem:[%s2 + $0x6e8] sm:$0xff]
    %v2282 = vld [vmem:[%s2 + $0x6f0] sm:$0xff]
    %v2283 = vld [vmem:[%s2 + $0x6f8] sm:$0xff]
    %v2284 = vld [vmem:[%s2 + $0x700] sm:$0xff]
    %v2285 = vld [vmem:[%s2 + $0x708] sm:$0xff]
    %v2286 = vld [vmem:[%s2 + $0x710] sm:$0xff]
    %v2287 = vld [vmem:[%s2 + $0x718] sm:$0xff]
    %v2288 = vld [vmem:[%s2 + $0x720] sm:$0xff]
    %v2289 = vld [vmem:[%s2 + $0x728] sm:$0xff]
    %v2290 = vld [vmem:[%s2 + $0x730] sm:$0xff]
    %v2291 = vld [vmem:[%s2 + $0x738] sm:$0xff]
    %v2292 = vld [vmem:[%s2 + $0x740] sm:$0xff]
    %v2293 = vld [vmem:[%s2 + $0x748] sm:$0xff]
    %v2294 = vld [vmem:[%s2 + $0x750] sm:$0xff]
    %v2295 = vld [vmem:[%s2 + $0x758] sm:$0xff]
    %v2296 = vld [vmem:[%s2 + $0x760] sm:$0xff]
    %v2297 = vld [vmem:[%s2 + $0x768] sm:$0xff]
    %v2298 = vld [vmem:[%s2 + $0x770] sm:$0xff]
    %v2299 = vld [vmem:[%s2 + $0x778] sm:$0xff]
    %v2300 = vld [vmem:[%s2 + $0x780] sm:$0xff]
    %v2301 = vld [vmem:[%s2 + $0x788] sm:$0xff]
    %v2302 = vld [vmem:[%s2 + $0x790] sm:$0xff]
    %v2303 = vld [vmem:[%s2 + $0x798] sm:$0xff]
    %v2304 = vld [vmem:[%s2 + $0x7a0] sm:$0xff]
    %v2305 = vld [vmem:[%s2 + $0x7a8] sm:$0xff]
    %v2306 = vld [vmem:[%s2 + $0x7b0] sm:$0xff]
    %v2307 = vld [vmem:[%s2 + $0x7b8] sm:$0xff]
    %v2308 = vld [vmem:[%s2 + $0x7c0] sm:$0xff]
    %v2309 = vld [vmem:[%s2 + $0x7c8] sm:$0xff]
    %v2310 = vld [vmem:[%s2 + $0x7d0] sm:$0xff]
    %v2311 = vld [vmem:[%s2 + $0x7d8] sm:$0xff]
    %v2312 = vld [vmem:[%s2 + $0x7e0] sm:$0xff]
    %v2313 = vld [vmem:[%s2 + $0x7e8] sm:$0xff]
    %v2314 = vld [vmem:[%s2 + $0x7f0] sm:$0xff]
    %v2315 = vld [vmem:[%s2 + $0x7f8] sm:$0xff]
    %s2316 = sld [smem:[#allocation2]]
    %v2317 = vstv %s2316
    %v2318 = vmul.f32 %v2317, %v45
    %s2319 = sld [smem:[#allocation4]]
    %v2320 = vstv %s2319
    %v2321 = vrot.slane %v45, 4
    %v2323 = vmul.f32 %v2320, %v2321
    %s2324 = sld [smem:[#allocation2 + $0x1]]
    %v2325 = vstv %s2324
    %v2326 = vmul.f32 %v2325, %v46
    %v2327 = vadd.f32 %v2318, %v2326
    %s2328 = sld [smem:[#allocation4 + $0x1]]
    %v2329 = vstv %s2328
    %v2330 = vrot.slane %v46, 4
    %v2332 = vmul.f32 %v2329, %v2330
    %v2333 = vadd.f32 %v2323, %v2332
    %s2334 = sld [smem:[#allocation2 + $0x2]]
    %v2335 = vstv %s2334
    %v2336 = vmul.f32 %v2335, %v47
    %v2337 = vadd.f32 %v2327, %v2336
    %s2338 = sld [smem:[#allocation4 + $0x2]]
    %v2339 = vstv %s2338
    %v2340 = vrot.slane %v47, 4
    %v2342 = vmul.f32 %v2339, %v2340
    %v2343 = vadd.f32 %v2333, %v2342
    %s2344 = sld [smem:[#allocation2 + $0x3]]
    %v2345 = vstv %s2344
    %v2346 = vmul.f32 %v2345, %v48
    %v2347 = vadd.f32 %v2337, %v2346
    %s2348 = sld [smem:[#allocation4 + $0x3]]
    %v2349 = vstv %s2348
    %v2350 = vrot.slane %v48, 4
    %v2352 = vmul.f32 %v2349, %v2350
    %v2353 = vadd.f32 %v2343, %v2352
    %s2354 = sld [smem:[#allocation2 + $0x80]]
    %v2355 = vstv %s2354
    %v2356 = vmul.f32 %v2355, %v45
    %s2357 = sld [smem:[#allocation4 + $0x80]]
    %v2358 = vstv %s2357
    %v2359 = vmul.f32 %v2358, %v2321
    %s2360 = sld [smem:[#allocation2 + $0x81]]
    %v2361 = vstv %s2360
    %v2362 = vmul.f32 %v2361, %v46
    %v2363 = vadd.f32 %v2356, %v2362
    %s2364 = sld [smem:[#allocation4 + $0x81]]
    %v2365 = vstv %s2364
    %v2366 = vmul.f32 %v2365, %v2330
    %v2367 = vadd.f32 %v2359, %v2366
    %s2368 = sld [smem:[#allocation2 + $0x82]]
    %v2369 = vstv %s2368
    %v2370 = vmul.f32 %v2369, %v47
    %v2371 = vadd.f32 %v2363, %v2370
    %s2372 = sld [smem:[#allocation4 + $0x82]]
    %v2373 = vstv %s2372
    %v2374 = vmul.f32 %v2373, %v2340
    %v2375 = vadd.f32 %v2367, %v2374
    %s2376 = sld [smem:[#allocation2 + $0x83]]
    %v2377 = vstv %s2376
    %v2378 = vmul.f32 %v2377, %v48
    %v2379 = vadd.f32 %v2371, %v2378
    %s2380 = sld [smem:[#allocation4 + $0x83]]
    %v2381 = vstv %s2380
    %v2382 = vmul.f32 %v2381, %v2350
    %v2383 = vadd.f32 %v2375, %v2382
    %s2384 = sld [smem:[#allocation2 + $0x100]]
    %v2385 = vstv %s2384
    %v2386 = vmul.f32 %v2385, %v45
    %s2387 = sld [smem:[#allocation4 + $0x100]]
    %v2388 = vstv %s2387
    %v2389 = vmul.f32 %v2388, %v2321
    %s2390 = sld [smem:[#allocation2 + $0x101]]
    %v2391 = vstv %s2390
    %v2392 = vmul.f32 %v2391, %v46
    %v2393 = vadd.f32 %v2386, %v2392
    %s2394 = sld [smem:[#allocation4 + $0x101]]
    %v2395 = vstv %s2394
    %v2396 = vmul.f32 %v2395, %v2330
    %v2397 = vadd.f32 %v2389, %v2396
    %s2398 = sld [smem:[#allocation2 + $0x102]]
    %v2399 = vstv %s2398
    %v2400 = vmul.f32 %v2399, %v47
    %v2401 = vadd.f32 %v2393, %v2400
    %s2402 = sld [smem:[#allocation4 + $0x102]]
    %v2403 = vstv %s2402
    %v2404 = vmul.f32 %v2403, %v2340
    %v2405 = vadd.f32 %v2397, %v2404
    %s2406 = sld [smem:[#allocation2 + $0x103]]
    %v2407 = vstv %s2406
    %v2408 = vmul.f32 %v2407, %v48
    %v2409 = vadd.f32 %v2401, %v2408
    %s2410 = sld [smem:[#allocation4 + $0x103]]
    %v2411 = vstv %s2410
    %v2412 = vmul.f32 %v2411, %v2350
    %v2413 = vadd.f32 %v2405, %v2412
    %s2414 = sld [smem:[#allocation2 + $0x180]]
    %v2415 = vstv %s2414
    %v2416 = vmul.f32 %v2415, %v45
    %s2417 = sld [smem:[#allocation4 + $0x180]]
    %v2418 = vstv %s2417
    %v2419 = vmul.f32 %v2418, %v2321
    %s2420 = sld [smem:[#allocation2 + $0x181]]
    %v2421 = vstv %s2420
    %v2422 = vmul.f32 %v2421, %v46
    %v2423 = vadd.f32 %v2416, %v2422
    %s2424 = sld [smem:[#allocation4 + $0x181]]
    %v2425 = vstv %s2424
    %v2426 = vmul.f32 %v2425, %v2330
    %v2427 = vadd.f32 %v2419, %v2426
    %s2428 = sld [smem:[#allocation2 + $0x182]]
    %v2429 = vstv %s2428
    %v2430 = vmul.f32 %v2429, %v47
    %v2431 = vadd.f32 %v2423, %v2430
    %s2432 = sld [smem:[#allocation4 + $0x182]]
    %v2433 = vstv %s2432
    %v2434 = vmul.f32 %v2433, %v2340
    %v2435 = vadd.f32 %v2427, %v2434
    %s2436 = sld [smem:[#allocation2 + $0x183]]
    %v2437 = vstv %s2436
    %v2438 = vmul.f32 %v2437, %v48
    %v2439 = vadd.f32 %v2431, %v2438
    %s2440 = sld [smem:[#allocation4 + $0x183]]
    %v2441 = vstv %s2440
    %v2442 = vmul.f32 %v2441, %v2350
    %v2443 = vadd.f32 %v2435, %v2442
    %2445 = vst [vmem:[#allocation1] ss:$4 sm:$0xff] %v2347
    %v2446 = vld.sshfl [vmem:[#allocation1] sm:$0xff pattern:$0x73625140]
    %v2447 = vld.sshfl [vmem:[#allocation1 + $0x8] sm:$0xff pattern:$0x73625140]
    %2451 = vst [vmem:[#allocation1] ss:$4 sm:$0xff] %v2353
    %v2452 = vld.sshfl [vmem:[#allocation1] sm:$0xff pattern:$0x73625140]
    %v2453 = vld.sshfl [vmem:[#allocation1 + $0x8] sm:$0xff pattern:$0x73625140]
    %2457 = vst [vmem:[#allocation1] ss:$4 sm:$0xff] %v2379
    %v2458 = vld.sshfl [vmem:[#allocation1] sm:$0xff pattern:$0x73625140]
    %v2459 = vld.sshfl [vmem:[#allocation1 + $0x8] sm:$0xff pattern:$0x73625140]
    %2463 = vst [vmem:[#allocation1] ss:$4 sm:$0xff] %v2383
    %v2464 = vld.sshfl [vmem:[#allocation1] sm:$0xff pattern:$0x73625140]
    %v2465 = vld.sshfl [vmem:[#allocation1 + $0x8] sm:$0xff pattern:$0x73625140]
    %2469 = vst [vmem:[#allocation1] ss:$4 sm:$0xff] %v2409
    %v2470 = vld.sshfl [vmem:[#allocation1] sm:$0xff pattern:$0x73625140]
    %v2471 = vld.sshfl [vmem:[#allocation1 + $0x8] sm:$0xff pattern:$0x73625140]
    %2475 = vst [vmem:[#allocation1] ss:$4 sm:$0xff] %v2413
    %v2476 = vld.sshfl [vmem:[#allocation1] sm:$0xff pattern:$0x73625140]
    %v2477 = vld.sshfl [vmem:[#allocation1 + $0x8] sm:$0xff pattern:$0x73625140]
    %2481 = vst [vmem:[#allocation1] ss:$4 sm:$0xff] %v2439
    %v2482 = vld.sshfl [vmem:[#allocation1] sm:$0xff pattern:$0x73625140]
    %v2483 = vld.sshfl [vmem:[#allocation1 + $0x8] sm:$0xff pattern:$0x73625140]
    %2487 = vst [vmem:[#allocation1] ss:$4 sm:$0xff] %v2443
    %v2488 = vld.sshfl [vmem:[#allocation1] sm:$0xff pattern:$0x73625140]
    %v2489 = vld.sshfl [vmem:[#allocation1 + $0x8] sm:$0xff pattern:$0x73625140]
    %v2748 = vunpack.c.l.b16 %v2060
    %v2749 = vunpack.c.h.b16 %v2060
    %v2750 = vunpack.c.l.b16 %v2061
    %v2751 = vunpack.c.h.b16 %v2061
    %v2752 = vunpack.c.l.b16 %v2062
    %v2753 = vunpack.c.h.b16 %v2062
    %v2754 = vunpack.c.l.b16 %v2063
    %v2755 = vunpack.c.h.b16 %v2063
    %v2756 = vunpack.c.l.b16 %v2064
    %v2757 = vunpack.c.h.b16 %v2064
    %v2758 = vunpack.c.l.b16 %v2065
    %v2759 = vunpack.c.h.b16 %v2065
    %v2760 = vunpack.c.l.b16 %v2066
    %v2761 = vunpack.c.h.b16 %v2066
    %v2762 = vunpack.c.l.b16 %v2067
    %v2763 = vunpack.c.h.b16 %v2067
    %v2764 = vunpack.c.l.b16 %v2068
    %v2765 = vunpack.c.h.b16 %v2068
    %v2766 = vunpack.c.l.b16 %v2069
    %v2767 = vunpack.c.h.b16 %v2069
    %v2768 = vunpack.c.l.b16 %v2070
    %v2769 = vunpack.c.h.b16 %v2070
    %v2770 = vunpack.c.l.b16 %v2071
    %v2771 = vunpack.c.h.b16 %v2071
    %v2772 = vunpack.c.l.b16 %v2072
    %v2773 = vunpack.c.h.b16 %v2072
    %v2774 = vunpack.c.l.b16 %v2073
    %v2775 = vunpack.c.h.b16 %v2073
    %v2776 = vunpack.c.l.b16 %v2074
    %v2777 = vunpack.c.h.b16 %v2074
    %v2778 = vunpack.c.l.b16 %v2075
    %v2779 = vunpack.c.h.b16 %v2075
    %v2780 = vunpack.c.l.b16 %v2076
    %v2781 = vunpack.c.h.b16 %v2076
    %v2782 = vunpack.c.l.b16 %v2077
    %v2783 = vunpack.c.h.b16 %v2077
    %v2784 = vunpack.c.l.b16 %v2078
    %v2785 = vunpack.c.h.b16 %v2078
    %v2786 = vunpack.c.l.b16 %v2079
    %v2787 = vunpack.c.h.b16 %v2079
    %v2788 = vunpack.c.l.b16 %v2080
    %v2789 = vunpack.c.h.b16 %v2080
    %v2790 = vunpack.c.l.b16 %v2081
    %v2791 = vunpack.c.h.b16 %v2081
    %v2792 = vunpack.c.l.b16 %v2082
    %v2793 = vunpack.c.h.b16 %v2082
    %v2794 = vunpack.c.l.b16 %v2083
    %v2795 = vunpack.c.h.b16 %v2083
    %v2796 = vunpack.c.l.b16 %v2084
    %v2797 = vunpack.c.h.b16 %v2084
    %v2798 = vunpack.c.l.b16 %v2085
    %v2799 = vunpack.c.h.b16 %v2085
    %v2800 = vunpack.c.l.b16 %v2086
    %v2801 = vunpack.c.h.b16 %v2086
    %v2802 = vunpack.c.l.b16 %v2087
    %v2803 = vunpack.c.h.b16 %v2087
    %v2804 = vunpack.c.l.b16 %v2088
    %v2805 = vunpack.c.h.b16 %v2088
    %v2806 = vunpack.c.l.b16 %v2089
    %v2807 = vunpack.c.h.b16 %v2089
    %v2808 = vunpack.c.l.b16 %v2090
    %v2809 = vunpack.c.h.b16 %v2090
    %v2810 = vunpack.c.l.b16 %v2091
    %v2811 = vunpack.c.h.b16 %v2091
    %v2812 = vunpack.c.l.b16 %v2092
    %v2813 = vunpack.c.h.b16 %v2092
    %v2814 = vunpack.c.l.b16 %v2093
    %v2815 = vunpack.c.h.b16 %v2093
    %v2816 = vunpack.c.l.b16 %v2094
    %v2817 = vunpack.c.h.b16 %v2094
    %v2818 = vunpack.c.l.b16 %v2095
    %v2819 = vunpack.c.h.b16 %v2095
    %v2820 = vunpack.c.l.b16 %v2096
    %v2821 = vunpack.c.h.b16 %v2096
    %v2822 = vunpack.c.l.b16 %v2097
    %v2823 = vunpack.c.h.b16 %v2097
    %v2824 = vunpack.c.l.b16 %v2098
    %v2825 = vunpack.c.h.b16 %v2098
    %v2826 = vunpack.c.l.b16 %v2099
    %v2827 = vunpack.c.h.b16 %v2099
    %v2828 = vunpack.c.l.b16 %v2100
    %v2829 = vunpack.c.h.b16 %v2100
    %v2830 = vunpack.c.l.b16 %v2101
    %v2831 = vunpack.c.h.b16 %v2101
    %v2832 = vunpack.c.l.b16 %v2102
    %v2833 = vunpack.c.h.b16 %v2102
    %v2834 = vunpack.c.l.b16 %v2103
    %v2835 = vunpack.c.h.b16 %v2103
    %v2836 = vunpack.c.l.b16 %v2104
    %v2837 = vunpack.c.h.b16 %v2104
    %v2838 = vunpack.c.l.b16 %v2105
    %v2839 = vunpack.c.h.b16 %v2105
    %v2840 = vunpack.c.l.b16 %v2106
    %v2841 = vunpack.c.h.b16 %v2106
    %v2842 = vunpack.c.l.b16 %v2107
    %v2843 = vunpack.c.h.b16 %v2107
    %v2844 = vunpack.c.l.b16 %v2108
    %v2845 = vunpack.c.h.b16 %v2108
    %v2846 = vunpack.c.l.b16 %v2109
    %v2847 = vunpack.c.h.b16 %v2109
    %v2848 = vunpack.c.l.b16 %v2110
    %v2849 = vunpack.c.h.b16 %v2110
    %v2850 = vunpack.c.l.b16 %v2111
    %v2851 = vunpack.c.h.b16 %v2111
    %v2852 = vunpack.c.l.b16 %v2112
    %v2853 = vunpack.c.h.b16 %v2112
    %v2854 = vunpack.c.l.b16 %v2113
    %v2855 = vunpack.c.h.b16 %v2113
    %v2856 = vunpack.c.l.b16 %v2114
    %v2857 = vunpack.c.h.b16 %v2114
    %v2858 = vunpack.c.l.b16 %v2115
    %v2859 = vunpack.c.h.b16 %v2115
    %v2860 = vunpack.c.l.b16 %v2116
    %v2861 = vunpack.c.h.b16 %v2116
    %v2862 = vunpack.c.l.b16 %v2117
    %v2863 = vunpack.c.h.b16 %v2117
    %v2864 = vunpack.c.l.b16 %v2118
    %v2865 = vunpack.c.h.b16 %v2118
    %v2866 = vunpack.c.l.b16 %v2119
    %v2867 = vunpack.c.h.b16 %v2119
    %v2868 = vunpack.c.l.b16 %v2120
    %v2869 = vunpack.c.h.b16 %v2120
    %v2870 = vunpack.c.l.b16 %v2121
    %v2871 = vunpack.c.h.b16 %v2121
    %v2872 = vunpack.c.l.b16 %v2122
    %v2873 = vunpack.c.h.b16 %v2122
    %v2874 = vunpack.c.l.b16 %v2123
    %v2875 = vunpack.c.h.b16 %v2123
    %v2876 = vunpack.c.l.b16 %v2124
    %v2877 = vunpack.c.h.b16 %v2124
    %v2878 = vunpack.c.l.b16 %v2125
    %v2879 = vunpack.c.h.b16 %v2125
    %v2880 = vunpack.c.l.b16 %v2126
    %v2881 = vunpack.c.h.b16 %v2126
    %v2882 = vunpack.c.l.b16 %v2127
    %v2883 = vunpack.c.h.b16 %v2127
    %v2884 = vunpack.c.l.b16 %v2128
    %v2885 = vunpack.c.h.b16 %v2128
    %v2886 = vunpack.c.l.b16 %v2129
    %v2887 = vunpack.c.h.b16 %v2129
    %v2888 = vunpack.c.l.b16 %v2130
    %v2889 = vunpack.c.h.b16 %v2130
    %v2890 = vunpack.c.l.b16 %v2131
    %v2891 = vunpack.c.h.b16 %v2131
    %v2892 = vunpack.c.l.b16 %v2132
    %v2893 = vunpack.c.h.b16 %v2132
    %v2894 = vunpack.c.l.b16 %v2133
    %v2895 = vunpack.c.h.b16 %v2133
    %v2896 = vunpack.c.l.b16 %v2134
    %v2897 = vunpack.c.h.b16 %v2134
    %v2898 = vunpack.c.l.b16 %v2135
    %v2899 = vunpack.c.h.b16 %v2135
    %v2900 = vunpack.c.l.b16 %v2136
    %v2901 = vunpack.c.h.b16 %v2136
    %v2902 = vunpack.c.l.b16 %v2137
    %v2903 = vunpack.c.h.b16 %v2137
    %v2904 = vunpack.c.l.b16 %v2138
    %v2905 = vunpack.c.h.b16 %v2138
    %v2906 = vunpack.c.l.b16 %v2139
    %v2907 = vunpack.c.h.b16 %v2139
    %v2908 = vunpack.c.l.b16 %v2140
    %v2909 = vunpack.c.h.b16 %v2140
    %v2910 = vunpack.c.l.b16 %v2141
    %v2911 = vunpack.c.h.b16 %v2141
    %v2912 = vunpack.c.l.b16 %v2142
    %v2913 = vunpack.c.h.b16 %v2142
    %v2914 = vunpack.c.l.b16 %v2143
    %v2915 = vunpack.c.h.b16 %v2143
    %v2916 = vunpack.c.l.b16 %v2144
    %v2917 = vunpack.c.h.b16 %v2144
    %v2918 = vunpack.c.l.b16 %v2145
    %v2919 = vunpack.c.h.b16 %v2145
    %v2920 = vunpack.c.l.b16 %v2146
    %v2921 = vunpack.c.h.b16 %v2146
    %v2922 = vunpack.c.l.b16 %v2147
    %v2923 = vunpack.c.h.b16 %v2147
    %v2924 = vunpack.c.l.b16 %v2148
    %v2925 = vunpack.c.h.b16 %v2148
    %v2926 = vunpack.c.l.b16 %v2149
    %v2927 = vunpack.c.h.b16 %v2149
    %v2928 = vunpack.c.l.b16 %v2150
    %v2929 = vunpack.c.h.b16 %v2150
    %v2930 = vunpack.c.l.b16 %v2151
    %v2931 = vunpack.c.h.b16 %v2151
    %v2932 = vunpack.c.l.b16 %v2152
    %v2933 = vunpack.c.h.b16 %v2152
    %v2934 = vunpack.c.l.b16 %v2153
    %v2935 = vunpack.c.h.b16 %v2153
    %v2936 = vunpack.c.l.b16 %v2154
    %v2937 = vunpack.c.h.b16 %v2154
    %v2938 = vunpack.c.l.b16 %v2155
    %v2939 = vunpack.c.h.b16 %v2155
    %v2940 = vunpack.c.l.b16 %v2156
    %v2941 = vunpack.c.h.b16 %v2156
    %v2942 = vunpack.c.l.b16 %v2157
    %v2943 = vunpack.c.h.b16 %v2157
    %v2944 = vunpack.c.l.b16 %v2158
    %v2945 = vunpack.c.h.b16 %v2158
    %v2946 = vunpack.c.l.b16 %v2159
    %v2947 = vunpack.c.h.b16 %v2159
    %v2948 = vunpack.c.l.b16 %v2160
    %v2949 = vunpack.c.h.b16 %v2160
    %v2950 = vunpack.c.l.b16 %v2161
    %v2951 = vunpack.c.h.b16 %v2161
    %v2952 = vunpack.c.l.b16 %v2162
    %v2953 = vunpack.c.h.b16 %v2162
    %v2954 = vunpack.c.l.b16 %v2163
    %v2955 = vunpack.c.h.b16 %v2163
    %v2956 = vunpack.c.l.b16 %v2164
    %v2957 = vunpack.c.h.b16 %v2164
    %v2958 = vunpack.c.l.b16 %v2165
    %v2959 = vunpack.c.h.b16 %v2165
    %v2960 = vunpack.c.l.b16 %v2166
    %v2961 = vunpack.c.h.b16 %v2166
    %v2962 = vunpack.c.l.b16 %v2167
    %v2963 = vunpack.c.h.b16 %v2167
    %v2964 = vunpack.c.l.b16 %v2168
    %v2965 = vunpack.c.h.b16 %v2168
    %v2966 = vunpack.c.l.b16 %v2169
    %v2967 = vunpack.c.h.b16 %v2169
    %v2968 = vunpack.c.l.b16 %v2170
    %v2969 = vunpack.c.h.b16 %v2170
    %v2970 = vunpack.c.l.b16 %v2171
    %v2971 = vunpack.c.h.b16 %v2171
    %v2972 = vunpack.c.l.b16 %v2172
    %v2973 = vunpack.c.h.b16 %v2172
    %v2974 = vunpack.c.l.b16 %v2173
    %v2975 = vunpack.c.h.b16 %v2173
    %v2976 = vunpack.c.l.b16 %v2174
    %v2977 = vunpack.c.h.b16 %v2174
    %v2978 = vunpack.c.l.b16 %v2175
    %v2979 = vunpack.c.h.b16 %v2175
    %v2980 = vunpack.c.l.b16 %v2176
    %v2981 = vunpack.c.h.b16 %v2176
    %v2982 = vunpack.c.l.b16 %v2177
    %v2983 = vunpack.c.h.b16 %v2177
    %v2984 = vunpack.c.l.b16 %v2178
    %v2985 = vunpack.c.h.b16 %v2178
    %v2986 = vunpack.c.l.b16 %v2179
    %v2987 = vunpack.c.h.b16 %v2179
    %v2988 = vunpack.c.l.b16 %v2180
    %v2989 = vunpack.c.h.b16 %v2180
    %v2990 = vunpack.c.l.b16 %v2181
    %v2991 = vunpack.c.h.b16 %v2181
    %v2992 = vunpack.c.l.b16 %v2182
    %v2993 = vunpack.c.h.b16 %v2182
    %v2994 = vunpack.c.l.b16 %v2183
    %v2995 = vunpack.c.h.b16 %v2183
    %v2996 = vunpack.c.l.b16 %v2184
    %v2997 = vunpack.c.h.b16 %v2184
    %v2998 = vunpack.c.l.b16 %v2185
    %v2999 = vunpack.c.h.b16 %v2185
    %v3000 = vunpack.c.l.b16 %v2186
    %v3001 = vunpack.c.h.b16 %v2186
    %v3002 = vunpack.c.l.b16 %v2187
    %v3003 = vunpack.c.h.b16 %v2187
    %v3004 = vunpack.c.l.b16 %v2188
    %v3005 = vunpack.c.h.b16 %v2188
    %v3006 = vunpack.c.l.b16 %v2189
    %v3007 = vunpack.c.h.b16 %v2189
    %v3008 = vunpack.c.l.b16 %v2190
    %v3009 = vunpack.c.h.b16 %v2190
    %v3010 = vunpack.c.l.b16 %v2191
    %v3011 = vunpack.c.h.b16 %v2191
    %v3012 = vunpack.c.l.b16 %v2192
    %v3013 = vunpack.c.h.b16 %v2192
    %v3014 = vunpack.c.l.b16 %v2193
    %v3015 = vunpack.c.h.b16 %v2193
    %v3016 = vunpack.c.l.b16 %v2194
    %v3017 = vunpack.c.h.b16 %v2194
    %v3018 = vunpack.c.l.b16 %v2195
    %v3019 = vunpack.c.h.b16 %v2195
    %v3020 = vunpack.c.l.b16 %v2196
    %v3021 = vunpack.c.h.b16 %v2196
    %v3022 = vunpack.c.l.b16 %v2197
    %v3023 = vunpack.c.h.b16 %v2197
    %v3024 = vunpack.c.l.b16 %v2198
    %v3025 = vunpack.c.h.b16 %v2198
    %v3026 = vunpack.c.l.b16 %v2199
    %v3027 = vunpack.c.h.b16 %v2199
    %v3028 = vunpack.c.l.b16 %v2200
    %v3029 = vunpack.c.h.b16 %v2200
    %v3030 = vunpack.c.l.b16 %v2201
    %v3031 = vunpack.c.h.b16 %v2201
    %v3032 = vunpack.c.l.b16 %v2202
    %v3033 = vunpack.c.h.b16 %v2202
    %v3034 = vunpack.c.l.b16 %v2203
    %v3035 = vunpack.c.h.b16 %v2203
    %v3036 = vunpack.c.l.b16 %v2204
    %v3037 = vunpack.c.h.b16 %v2204
    %v3038 = vunpack.c.l.b16 %v2205
    %v3039 = vunpack.c.h.b16 %v2205
    %v3040 = vunpack.c.l.b16 %v2206
    %v3041 = vunpack.c.h.b16 %v2206
    %v3042 = vunpack.c.l.b16 %v2207
    %v3043 = vunpack.c.h.b16 %v2207
    %v3044 = vunpack.c.l.b16 %v2208
    %v3045 = vunpack.c.h.b16 %v2208
    %v3046 = vunpack.c.l.b16 %v2209
    %v3047 = vunpack.c.h.b16 %v2209
    %v3048 = vunpack.c.l.b16 %v2210
    %v3049 = vunpack.c.h.b16 %v2210
    %v3050 = vunpack.c.l.b16 %v2211
    %v3051 = vunpack.c.h.b16 %v2211
    %v3052 = vunpack.c.l.b16 %v2212
    %v3053 = vunpack.c.h.b16 %v2212
    %v3054 = vunpack.c.l.b16 %v2213
    %v3055 = vunpack.c.h.b16 %v2213
    %v3056 = vunpack.c.l.b16 %v2214
    %v3057 = vunpack.c.h.b16 %v2214
    %v3058 = vunpack.c.l.b16 %v2215
    %v3059 = vunpack.c.h.b16 %v2215
    %v3060 = vunpack.c.l.b16 %v2216
    %v3061 = vunpack.c.h.b16 %v2216
    %v3062 = vunpack.c.l.b16 %v2217
    %v3063 = vunpack.c.h.b16 %v2217
    %v3064 = vunpack.c.l.b16 %v2218
    %v3065 = vunpack.c.h.b16 %v2218
    %v3066 = vunpack.c.l.b16 %v2219
    %v3067 = vunpack.c.h.b16 %v2219
    %v3068 = vunpack.c.l.b16 %v2220
    %v3069 = vunpack.c.h.b16 %v2220
    %v3070 = vunpack.c.l.b16 %v2221
    %v3071 = vunpack.c.h.b16 %v2221
    %v3072 = vunpack.c.l.b16 %v2222
    %v3073 = vunpack.c.h.b16 %v2222
    %v3074 = vunpack.c.l.b16 %v2223
    %v3075 = vunpack.c.h.b16 %v2223
    %v3076 = vunpack.c.l.b16 %v2224
    %v3077 = vunpack.c.h.b16 %v2224
    %v3078 = vunpack.c.l.b16 %v2225
    %v3079 = vunpack.c.h.b16 %v2225
    %v3080 = vunpack.c.l.b16 %v2226
    %v3081 = vunpack.c.h.b16 %v2226
    %v3082 = vunpack.c.l.b16 %v2227
    %v3083 = vunpack.c.h.b16 %v2227
    %v3084 = vunpack.c.l.b16 %v2228
    %v3085 = vunpack.c.h.b16 %v2228
    %v3086 = vunpack.c.l.b16 %v2229
    %v3087 = vunpack.c.h.b16 %v2229
    %v3088 = vunpack.c.l.b16 %v2230
    %v3089 = vunpack.c.h.b16 %v2230
    %v3090 = vunpack.c.l.b16 %v2231
    %v3091 = vunpack.c.h.b16 %v2231
    %v3092 = vunpack.c.l.b16 %v2232
    %v3093 = vunpack.c.h.b16 %v2232
    %v3094 = vunpack.c.l.b16 %v2233
    %v3095 = vunpack.c.h.b16 %v2233
    %v3096 = vunpack.c.l.b16 %v2234
    %v3097 = vunpack.c.h.b16 %v2234
    %v3098 = vunpack.c.l.b16 %v2235
    %v3099 = vunpack.c.h.b16 %v2235
    %v3100 = vunpack.c.l.b16 %v2236
    %v3101 = vunpack.c.h.b16 %v2236
    %v3102 = vunpack.c.l.b16 %v2237
    %v3103 = vunpack.c.h.b16 %v2237
    %v3104 = vunpack.c.l.b16 %v2238
    %v3105 = vunpack.c.h.b16 %v2238
    %v3106 = vunpack.c.l.b16 %v2239
    %v3107 = vunpack.c.h.b16 %v2239
    %v3108 = vunpack.c.l.b16 %v2240
    %v3109 = vunpack.c.h.b16 %v2240
    %v3110 = vunpack.c.l.b16 %v2241
    %v3111 = vunpack.c.h.b16 %v2241
    %v3112 = vunpack.c.l.b16 %v2242
    %v3113 = vunpack.c.h.b16 %v2242
    %v3114 = vunpack.c.l.b16 %v2243
    %v3115 = vunpack.c.h.b16 %v2243
    %v3116 = vunpack.c.l.b16 %v2244
    %v3117 = vunpack.c.h.b16 %v2244
    %v3118 = vunpack.c.l.b16 %v2245
    %v3119 = vunpack.c.h.b16 %v2245
    %v3120 = vunpack.c.l.b16 %v2246
    %v3121 = vunpack.c.h.b16 %v2246
    %v3122 = vunpack.c.l.b16 %v2247
    %v3123 = vunpack.c.h.b16 %v2247
    %v3124 = vunpack.c.l.b16 %v2248
    %v3125 = vunpack.c.h.b16 %v2248
    %v3126 = vunpack.c.l.b16 %v2249
    %v3127 = vunpack.c.h.b16 %v2249
    %v3128 = vunpack.c.l.b16 %v2250
    %v3129 = vunpack.c.h.b16 %v2250
    %v3130 = vunpack.c.l.b16 %v2251
    %v3131 = vunpack.c.h.b16 %v2251
    %v3132 = vunpack.c.l.b16 %v2252
    %v3133 = vunpack.c.h.b16 %v2252
    %v3134 = vunpack.c.l.b16 %v2253
    %v3135 = vunpack.c.h.b16 %v2253
    %v3136 = vunpack.c.l.b16 %v2254
    %v3137 = vunpack.c.h.b16 %v2254
    %v3138 = vunpack.c.l.b16 %v2255
    %v3139 = vunpack.c.h.b16 %v2255
    %v3140 = vunpack.c.l.b16 %v2256
    %v3141 = vunpack.c.h.b16 %v2256
    %v3142 = vunpack.c.l.b16 %v2257
    %v3143 = vunpack.c.h.b16 %v2257
    %v3144 = vunpack.c.l.b16 %v2258
    %v3145 = vunpack.c.h.b16 %v2258
    %v3146 = vunpack.c.l.b16 %v2259
    %v3147 = vunpack.c.h.b16 %v2259
    %v3148 = vunpack.c.l.b16 %v2260
    %v3149 = vunpack.c.h.b16 %v2260
    %v3150 = vunpack.c.l.b16 %v2261
    %v3151 = vunpack.c.h.b16 %v2261
    %v3152 = vunpack.c.l.b16 %v2262
    %v3153 = vunpack.c.h.b16 %v2262
    %v3154 = vunpack.c.l.b16 %v2263
    %v3155 = vunpack.c.h.b16 %v2263
    %v3156 = vunpack.c.l.b16 %v2264
    %v3157 = vunpack.c.h.b16 %v2264
    %v3158 = vunpack.c.l.b16 %v2265
    %v3159 = vunpack.c.h.b16 %v2265
    %v3160 = vunpack.c.l.b16 %v2266
    %v3161 = vunpack.c.h.b16 %v2266
    %v3162 = vunpack.c.l.b16 %v2267
    %v3163 = vunpack.c.h.b16 %v2267
    %v3164 = vunpack.c.l.b16 %v2268
    %v3165 = vunpack.c.h.b16 %v2268
    %v3166 = vunpack.c.l.b16 %v2269
    %v3167 = vunpack.c.h.b16 %v2269
    %v3168 = vunpack.c.l.b16 %v2270
    %v3169 = vunpack.c.h.b16 %v2270
    %v3170 = vunpack.c.l.b16 %v2271
    %v3171 = vunpack.c.h.b16 %v2271
    %v3172 = vunpack.c.l.b16 %v2272
    %v3173 = vunpack.c.h.b16 %v2272
    %v3174 = vunpack.c.l.b16 %v2273
    %v3175 = vunpack.c.h.b16 %v2273
    %v3176 = vunpack.c.l.b16 %v2274
    %v3177 = vunpack.c.h.b16 %v2274
    %v3178 = vunpack.c.l.b16 %v2275
    %v3179 = vunpack.c.h.b16 %v2275
    %v3180 = vunpack.c.l.b16 %v2276
    %v3181 = vunpack.c.h.b16 %v2276
    %v3182 = vunpack.c.l.b16 %v2277
    %v3183 = vunpack.c.h.b16 %v2277
    %v3184 = vunpack.c.l.b16 %v2278
    %v3185 = vunpack.c.h.b16 %v2278
    %v3186 = vunpack.c.l.b16 %v2279
    %v3187 = vunpack.c.h.b16 %v2279
    %v3188 = vunpack.c.l.b16 %v2280
    %v3189 = vunpack.c.h.b16 %v2280
    %v3190 = vunpack.c.l.b16 %v2281
    %v3191 = vunpack.c.h.b16 %v2281
    %v3192 = vunpack.c.l.b16 %v2282
    %v3193 = vunpack.c.h.b16 %v2282
    %v3194 = vunpack.c.l.b16 %v2283
    %v3195 = vunpack.c.h.b16 %v2283
    %v3196 = vunpack.c.l.b16 %v2284
    %v3197 = vunpack.c.h.b16 %v2284
    %v3198 = vunpack.c.l.b16 %v2285
    %v3199 = vunpack.c.h.b16 %v2285
    %v3200 = vunpack.c.l.b16 %v2286
    %v3201 = vunpack.c.h.b16 %v2286
    %v3202 = vunpack.c.l.b16 %v2287
    %v3203 = vunpack.c.h.b16 %v2287
    %v3204 = vunpack.c.l.b16 %v2288
    %v3205 = vunpack.c.h.b16 %v2288
    %v3206 = vunpack.c.l.b16 %v2289
    %v3207 = vunpack.c.h.b16 %v2289
    %v3208 = vunpack.c.l.b16 %v2290
    %v3209 = vunpack.c.h.b16 %v2290
    %v3210 = vunpack.c.l.b16 %v2291
    %v3211 = vunpack.c.h.b16 %v2291
    %v3212 = vunpack.c.l.b16 %v2292
    %v3213 = vunpack.c.h.b16 %v2292
    %v3214 = vunpack.c.l.b16 %v2293
    %v3215 = vunpack.c.h.b16 %v2293
    %v3216 = vunpack.c.l.b16 %v2294
    %v3217 = vunpack.c.h.b16 %v2294
    %v3218 = vunpack.c.l.b16 %v2295
    %v3219 = vunpack.c.h.b16 %v2295
    %v3220 = vunpack.c.l.b16 %v2296
    %v3221 = vunpack.c.h.b16 %v2296
    %v3222 = vunpack.c.l.b16 %v2297
    %v3223 = vunpack.c.h.b16 %v2297
    %v3224 = vunpack.c.l.b16 %v2298
    %v3225 = vunpack.c.h.b16 %v2298
    %v3226 = vunpack.c.l.b16 %v2299
    %v3227 = vunpack.c.h.b16 %v2299
    %v3228 = vunpack.c.l.b16 %v2300
    %v3229 = vunpack.c.h.b16 %v2300
    %v3230 = vunpack.c.l.b16 %v2301
    %v3231 = vunpack.c.h.b16 %v2301
    %v3232 = vunpack.c.l.b16 %v2302
    %v3233 = vunpack.c.h.b16 %v2302
    %v3234 = vunpack.c.l.b16 %v2303
    %v3235 = vunpack.c.h.b16 %v2303
    %v3236 = vunpack.c.l.b16 %v2304
    %v3237 = vunpack.c.h.b16 %v2304
    %v3238 = vunpack.c.l.b16 %v2305
    %v3239 = vunpack.c.h.b16 %v2305
    %v3240 = vunpack.c.l.b16 %v2306
    %v3241 = vunpack.c.h.b16 %v2306
    %v3242 = vunpack.c.l.b16 %v2307
    %v3243 = vunpack.c.h.b16 %v2307
    %v3244 = vunpack.c.l.b16 %v2308
    %v3245 = vunpack.c.h.b16 %v2308
    %v3246 = vunpack.c.l.b16 %v2309
    %v3247 = vunpack.c.h.b16 %v2309
    %v3248 = vunpack.c.l.b16 %v2310
    %v3249 = vunpack.c.h.b16 %v2310
    %v3250 = vunpack.c.l.b16 %v2311
    %v3251 = vunpack.c.h.b16 %v2311
    %v3252 = vunpack.c.l.b16 %v2312
    %v3253 = vunpack.c.h.b16 %v2312
    %v3254 = vunpack.c.l.b16 %v2313
    %v3255 = vunpack.c.h.b16 %v2313
    %v3256 = vunpack.c.l.b16 %v2314
    %v3257 = vunpack.c.h.b16 %v2314
    %v3258 = vunpack.c.l.b16 %v2315
    %v3259 = vunpack.c.h.b16 %v2315
    %v3260 = vpack.c.b16 %v2764, %v2748
    %v3261 = vpack.c.b16 %v2765, %v2749
    %v3262 = vpack.c.b16 %v2766, %v2750
    %v3263 = vpack.c.b16 %v2767, %v2751
    %v3264 = vpack.c.b16 %v2768, %v2752
    %v3265 = vpack.c.b16 %v2769, %v2753
    %v3266 = vpack.c.b16 %v2770, %v2754
    %v3267 = vpack.c.b16 %v2771, %v2755
    %v3268 = vpack.c.b16 %v2772, %v2756
    %v3269 = vpack.c.b16 %v2773, %v2757
    %v3270 = vpack.c.b16 %v2774, %v2758
    %v3271 = vpack.c.b16 %v2775, %v2759
    %v3272 = vpack.c.b16 %v2776, %v2760
    %v3273 = vpack.c.b16 %v2777, %v2761
    %v3274 = vpack.c.b16 %v2778, %v2762
    %v3275 = vpack.c.b16 %v2779, %v2763
    %v3276 = vpack.c.b16 %v2796, %v2780
    %v3277 = vpack.c.b16 %v2797, %v2781
    %v3278 = vpack.c.b16 %v2798, %v2782
    %v3279 = vpack.c.b16 %v2799, %v2783
    %v3280 = vpack.c.b16 %v2800, %v2784
    %v3281 = vpack.c.b16 %v2801, %v2785
    %v3282 = vpack.c.b16 %v2802, %v2786
    %v3283 = vpack.c.b16 %v2803, %v2787
    %v3284 = vpack.c.b16 %v2804, %v2788
    %v3285 = vpack.c.b16 %v2805, %v2789
    %v3286 = vpack.c.b16 %v2806, %v2790
    %v3287 = vpack.c.b16 %v2807, %v2791
    %v3288 = vpack.c.b16 %v2808, %v2792
    %v3289 = vpack.c.b16 %v2809, %v2793
    %v3290 = vpack.c.b16 %v2810, %v2794
    %v3291 = vpack.c.b16 %v2811, %v2795
    %v3292 = vpack.c.b16 %v2828, %v2812
    %v3293 = vpack.c.b16 %v2829, %v2813
    %v3294 = vpack.c.b16 %v2830, %v2814
    %v3295 = vpack.c.b16 %v2831, %v2815
    %v3296 = vpack.c.b16 %v2832, %v2816
    %v3297 = vpack.c.b16 %v2833, %v2817
    %v3298 = vpack.c.b16 %v2834, %v2818
    %v3299 = vpack.c.b16 %v2835, %v2819
    %v3300 = vpack.c.b16 %v2836, %v2820
    %v3301 = vpack.c.b16 %v2837, %v2821
    %v3302 = vpack.c.b16 %v2838, %v2822
    %v3303 = vpack.c.b16 %v2839, %v2823
    %v3304 = vpack.c.b16 %v2840, %v2824
    %v3305 = vpack.c.b16 %v2841, %v2825
    %v3306 = vpack.c.b16 %v2842, %v2826
    %v3307 = vpack.c.b16 %v2843, %v2827
    %v3308 = vpack.c.b16 %v2860, %v2844
    %v3309 = vpack.c.b16 %v2861, %v2845
    %v3310 = vpack.c.b16 %v2862, %v2846
    %v3311 = vpack.c.b16 %v2863, %v2847
    %v3312 = vpack.c.b16 %v2864, %v2848
    %v3313 = vpack.c.b16 %v2865, %v2849
    %v3314 = vpack.c.b16 %v2866, %v2850
    %v3315 = vpack.c.b16 %v2867, %v2851
    %v3316 = vpack.c.b16 %v2868, %v2852
    %v3317 = vpack.c.b16 %v2869, %v2853
    %v3318 = vpack.c.b16 %v2870, %v2854
    %v3319 = vpack.c.b16 %v2871, %v2855
    %v3320 = vpack.c.b16 %v2872, %v2856
    %v3321 = vpack.c.b16 %v2873, %v2857
    %v3322 = vpack.c.b16 %v2874, %v2858
    %v3323 = vpack.c.b16 %v2875, %v2859
    %v3324 = vpack.c.b16 %v2892, %v2876
    %v3325 = vpack.c.b16 %v2893, %v2877
    %v3326 = vpack.c.b16 %v2894, %v2878
    %v3327 = vpack.c.b16 %v2895, %v2879
    %v3328 = vpack.c.b16 %v2896, %v2880
    %v3329 = vpack.c.b16 %v2897, %v2881
    %v3330 = vpack.c.b16 %v2898, %v2882
    %v3331 = vpack.c.b16 %v2899, %v2883
    %v3332 = vpack.c.b16 %v2900, %v2884
    %v3333 = vpack.c.b16 %v2901, %v2885
    %v3334 = vpack.c.b16 %v2902, %v2886
    %v3335 = vpack.c.b16 %v2903, %v2887
    %v3336 = vpack.c.b16 %v2904, %v2888
    %v3337 = vpack.c.b16 %v2905, %v2889
    %v3338 = vpack.c.b16 %v2906, %v2890
    %v3339 = vpack.c.b16 %v2907, %v2891
    %v3340 = vpack.c.b16 %v2924, %v2908
    %v3341 = vpack.c.b16 %v2925, %v2909
    %v3342 = vpack.c.b16 %v2926, %v2910
    %v3343 = vpack.c.b16 %v2927, %v2911
    %v3344 = vpack.c.b16 %v2928, %v2912
    %v3345 = vpack.c.b16 %v2929, %v2913
    %v3346 = vpack.c.b16 %v2930, %v2914
    %v3347 = vpack.c.b16 %v2931, %v2915
    %v3348 = vpack.c.b16 %v2932, %v2916
    %v3349 = vpack.c.b16 %v2933, %v2917
    %v3350 = vpack.c.b16 %v2934, %v2918
    %v3351 = vpack.c.b16 %v2935, %v2919
    %v3352 = vpack.c.b16 %v2936, %v2920
    %v3353 = vpack.c.b16 %v2937, %v2921
    %v3354 = vpack.c.b16 %v2938, %v2922
    %v3355 = vpack.c.b16 %v2939, %v2923
    %v3356 = vpack.c.b16 %v2956, %v2940
    %v3357 = vpack.c.b16 %v2957, %v2941
    %v3358 = vpack.c.b16 %v2958, %v2942
    %v3359 = vpack.c.b16 %v2959, %v2943
    %v3360 = vpack.c.b16 %v2960, %v2944
    %v3361 = vpack.c.b16 %v2961, %v2945
    %v3362 = vpack.c.b16 %v2962, %v2946
    %v3363 = vpack.c.b16 %v2963, %v2947
    %v3364 = vpack.c.b16 %v2964, %v2948
    %v3365 = vpack.c.b16 %v2965, %v2949
    %v3366 = vpack.c.b16 %v2966, %v2950
    %v3367 = vpack.c.b16 %v2967, %v2951
    %v3368 = vpack.c.b16 %v2968, %v2952
    %v3369 = vpack.c.b16 %v2969, %v2953
    %v3370 = vpack.c.b16 %v2970, %v2954
    %v3371 = vpack.c.b16 %v2971, %v2955
    %v3372 = vpack.c.b16 %v2988, %v2972
    %v3373 = vpack.c.b16 %v2989, %v2973
    %v3374 = vpack.c.b16 %v2990, %v2974
    %v3375 = vpack.c.b16 %v2991, %v2975
    %v3376 = vpack.c.b16 %v2992, %v2976
    %v3377 = vpack.c.b16 %v2993, %v2977
    %v3378 = vpack.c.b16 %v2994, %v2978
    %v3379 = vpack.c.b16 %v2995, %v2979
    %v3380 = vpack.c.b16 %v2996, %v2980
    %v3381 = vpack.c.b16 %v2997, %v2981
    %v3382 = vpack.c.b16 %v2998, %v2982
    %v3383 = vpack.c.b16 %v2999, %v2983
    %v3384 = vpack.c.b16 %v3000, %v2984
    %v3385 = vpack.c.b16 %v3001, %v2985
    %v3386 = vpack.c.b16 %v3002, %v2986
    %v3387 = vpack.c.b16 %v3003, %v2987
    %v3388 = vpack.c.b16 %v3020, %v3004
    %v3389 = vpack.c.b16 %v3021, %v3005
    %v3390 = vpack.c.b16 %v3022, %v3006
    %v3391 = vpack.c.b16 %v3023, %v3007
    %v3392 = vpack.c.b16 %v3024, %v3008
    %v3393 = vpack.c.b16 %v3025, %v3009
    %v3394 = vpack.c.b16 %v3026, %v3010
    %v3395 = vpack.c.b16 %v3027, %v3011
    %v3396 = vpack.c.b16 %v3028, %v3012
    %v3397 = vpack.c.b16 %v3029, %v3013
    %v3398 = vpack.c.b16 %v3030, %v3014
    %v3399 = vpack.c.b16 %v3031, %v3015
    %v3400 = vpack.c.b16 %v3032, %v3016
    %v3401 = vpack.c.b16 %v3033, %v3017
    %v3402 = vpack.c.b16 %v3034, %v3018
    %v3403 = vpack.c.b16 %v3035, %v3019
    %v3404 = vpack.c.b16 %v3052, %v3036
    %v3405 = vpack.c.b16 %v3053, %v3037
    %v3406 = vpack.c.b16 %v3054, %v3038
    %v3407 = vpack.c.b16 %v3055, %v3039
    %v3408 = vpack.c.b16 %v3056, %v3040
    %v3409 = vpack.c.b16 %v3057, %v3041
    %v3410 = vpack.c.b16 %v3058, %v3042
    %v3411 = vpack.c.b16 %v3059, %v3043
    %v3412 = vpack.c.b16 %v3060, %v3044
    %v3413 = vpack.c.b16 %v3061, %v3045
    %v3414 = vpack.c.b16 %v3062, %v3046
    %v3415 = vpack.c.b16 %v3063, %v3047
    %v3416 = vpack.c.b16 %v3064, %v3048
    %v3417 = vpack.c.b16 %v3065, %v3049
    %v3418 = vpack.c.b16 %v3066, %v3050
    %v3419 = vpack.c.b16 %v3067, %v3051
    %v3420 = vpack.c.b16 %v3084, %v3068
    %v3421 = vpack.c.b16 %v3085, %v3069
    %v3422 = vpack.c.b16 %v3086, %v3070
    %v3423 = vpack.c.b16 %v3087, %v3071
    %v3424 = vpack.c.b16 %v3088, %v3072
    %v3425 = vpack.c.b16 %v3089, %v3073
    %v3426 = vpack.c.b16 %v3090, %v3074
    %v3427 = vpack.c.b16 %v3091, %v3075
    %v3428 = vpack.c.b16 %v3092, %v3076
    %v3429 = vpack.c.b16 %v3093, %v3077
    %v3430 = vpack.c.b16 %v3094, %v3078
    %v3431 = vpack.c.b16 %v3095, %v3079
    %v3432 = vpack.c.b16 %v3096, %v3080
    %v3433 = vpack.c.b16 %v3097, %v3081
    %v3434 = vpack.c.b16 %v3098, %v3082
    %v3435 = vpack.c.b16 %v3099, %v3083
    %v3436 = vpack.c.b16 %v3116, %v3100
    %v3437 = vpack.c.b16 %v3117, %v3101
    %v3438 = vpack.c.b16 %v3118, %v3102
    %v3439 = vpack.c.b16 %v3119, %v3103
    %v3440 = vpack.c.b16 %v3120, %v3104
    %v3441 = vpack.c.b16 %v3121, %v3105
    %v3442 = vpack.c.b16 %v3122, %v3106
    %v3443 = vpack.c.b16 %v3123, %v3107
    %v3444 = vpack.c.b16 %v3124, %v3108
    %v3445 = vpack.c.b16 %v3125, %v3109
    %v3446 = vpack.c.b16 %v3126, %v3110
    %v3447 = vpack.c.b16 %v3127, %v3111
    %v3448 = vpack.c.b16 %v3128, %v3112
    %v3449 = vpack.c.b16 %v3129, %v3113
    %v3450 = vpack.c.b16 %v3130, %v3114
    %v3451 = vpack.c.b16 %v3131, %v3115
    %v3452 = vpack.c.b16 %v3148, %v3132
    %v3453 = vpack.c.b16 %v3149, %v3133
    %v3454 = vpack.c.b16 %v3150, %v3134
    %v3455 = vpack.c.b16 %v3151, %v3135
    %v3456 = vpack.c.b16 %v3152, %v3136
    %v3457 = vpack.c.b16 %v3153, %v3137
    %v3458 = vpack.c.b16 %v3154, %v3138
    %v3459 = vpack.c.b16 %v3155, %v3139
    %v3460 = vpack.c.b16 %v3156, %v3140
    %v3461 = vpack.c.b16 %v3157, %v3141
    %v3462 = vpack.c.b16 %v3158, %v3142
    %v3463 = vpack.c.b16 %v3159, %v3143
    %v3464 = vpack.c.b16 %v3160, %v3144
    %v3465 = vpack.c.b16 %v3161, %v3145
    %v3466 = vpack.c.b16 %v3162, %v3146
    %v3467 = vpack.c.b16 %v3163, %v3147
    %v3468 = vpack.c.b16 %v3180, %v3164
    %v3469 = vpack.c.b16 %v3181, %v3165
    %v3470 = vpack.c.b16 %v3182, %v3166
    %v3471 = vpack.c.b16 %v3183, %v3167
    %v3472 = vpack.c.b16 %v3184, %v3168
    %v3473 = vpack.c.b16 %v3185, %v3169
    %v3474 = vpack.c.b16 %v3186, %v3170
    %v3475 = vpack.c.b16 %v3187, %v3171
    %v3476 = vpack.c.b16 %v3188, %v3172
    %v3477 = vpack.c.b16 %v3189, %v3173
    %v3478 = vpack.c.b16 %v3190, %v3174
    %v3479 = vpack.c.b16 %v3191, %v3175
    %v3480 = vpack.c.b16 %v3192, %v3176
    %v3481 = vpack.c.b16 %v3193, %v3177
    %v3482 = vpack.c.b16 %v3194, %v3178
    %v3483 = vpack.c.b16 %v3195, %v3179
    %v3484 = vpack.c.b16 %v3212, %v3196
    %v3485 = vpack.c.b16 %v3213, %v3197
    %v3486 = vpack.c.b16 %v3214, %v3198
    %v3487 = vpack.c.b16 %v3215, %v3199
    %v3488 = vpack.c.b16 %v3216, %v3200
    %v3489 = vpack.c.b16 %v3217, %v3201
    %v3490 = vpack.c.b16 %v3218, %v3202
    %v3491 = vpack.c.b16 %v3219, %v3203
    %v3492 = vpack.c.b16 %v3220, %v3204
    %v3493 = vpack.c.b16 %v3221, %v3205
    %v3494 = vpack.c.b16 %v3222, %v3206
    %v3495 = vpack.c.b16 %v3223, %v3207
    %v3496 = vpack.c.b16 %v3224, %v3208
    %v3497 = vpack.c.b16 %v3225, %v3209
    %v3498 = vpack.c.b16 %v3226, %v3210
    %v3499 = vpack.c.b16 %v3227, %v3211
    %v3500 = vpack.c.b16 %v3244, %v3228
    %v3501 = vpack.c.b16 %v3245, %v3229
    %v3502 = vpack.c.b16 %v3246, %v3230
    %v3503 = vpack.c.b16 %v3247, %v3231
    %v3504 = vpack.c.b16 %v3248, %v3232
    %v3505 = vpack.c.b16 %v3249, %v3233
    %v3506 = vpack.c.b16 %v3250, %v3234
    %v3507 = vpack.c.b16 %v3251, %v3235
    %v3508 = vpack.c.b16 %v3252, %v3236
    %v3509 = vpack.c.b16 %v3253, %v3237
    %v3510 = vpack.c.b16 %v3254, %v3238
    %v3511 = vpack.c.b16 %v3255, %v3239
    %v3512 = vpack.c.b16 %v3256, %v3240
    %v3513 = vpack.c.b16 %v3257, %v3241
    %v3514 = vpack.c.b16 %v3258, %v3242
    %v3515 = vpack.c.b16 %v3259, %v3243
    %3772 = vmatpush.bf16.msra.mxu0 %v3372
    %3773 = vmatpush.bf16.msra.mxu0 %v3356
    %3774 = vmatpush.bf16.msra.mxu0 %v3340
    %3775 = vmatpush.bf16.msra.mxu0 %v3324
    %3776 = vmatpush.bf16.msra.mxu0 %v3308
    %3777 = vmatpush.bf16.msra.mxu0 %v3292
    %3778 = vmatpush.bf16.msra.mxu0 %v3276
    %3779 = vmatpush.bf16.msra.mxu0 %v3260
    %3780 = vmatmul.bf16.gmra.mxu0 %v2058
    %v3781 = vpop.f32.mrf.mxu0
    %v3782 = vadd.f32 %v2446, %v3781
    %v3783 = vpop.f32.mrf.mxu0
    %3784 = vdwg.mxu0
    %3785 = vmatpush.bf16.msra.mxu0 %v3500
    %3786 = vmatpush.bf16.msra.mxu0 %v3484
    %3787 = vmatpush.bf16.msra.mxu0 %v3468
    %3788 = vmatpush.bf16.msra.mxu0 %v3452
    %3789 = vmatpush.bf16.msra.mxu0 %v3436
    %3790 = vmatpush.bf16.msra.mxu0 %v3420
    %3791 = vmatpush.bf16.msra.mxu0 %v3404
    %3792 = vmatpush.bf16.msra.mxu0 %v3388
    %3793 = vmatmul.bf16.gmra.mxu0 %v2059
    %v3794 = vpop.f32.mrf.mxu0
    %v3795 = vadd.f32 %v3782, %v3794
    %v3796 = vpop.f32.mrf.mxu0
    %3797 = vdwg.mxu0
    %3798 = vmatpush.bf16.msra.mxu0 %v3373
    %3799 = vmatpush.bf16.msra.mxu0 %v3357
    %3800 = vmatpush.bf16.msra.mxu0 %v3341
    %3801 = vmatpush.bf16.msra.mxu0 %v3325
    %3802 = vmatpush.bf16.msra.mxu0 %v3309
    %3803 = vmatpush.bf16.msra.mxu0 %v3293
    %3804 = vmatpush.bf16.msra.mxu0 %v3277
    %3805 = vmatpush.bf16.msra.mxu0 %v3261
    %3806 = vmatmul.bf16.gmra.mxu0 %v2058
    %v3807 = vpop.f32.mrf.mxu0
    %v3808 = vadd.f32 %v2447, %v3807
    %v3809 = vpop.f32.mrf.mxu0
    %3810 = vdwg.mxu0
    %3811 = vmatpush.bf16.msra.mxu0 %v3501
    %3812 = vmatpush.bf16.msra.mxu0 %v3485
    %3813 = vmatpush.bf16.msra.mxu0 %v3469
    %3814 = vmatpush.bf16.msra.mxu0 %v3453
    %3815 = vmatpush.bf16.msra.mxu0 %v3437
    %3816 = vmatpush.bf16.msra.mxu0 %v3421
    %3817 = vmatpush.bf16.msra.mxu0 %v3405
    %3818 = vmatpush.bf16.msra.mxu0 %v3389
    %3819 = vmatmul.bf16.gmra.mxu0 %v2059
    %v3820 = vpop.f32.mrf.mxu0
    %v3821 = vadd.f32 %v3808, %v3820
    %v3822 = vpop.f32.mrf.mxu0
    %3823 = vdwg.mxu0
    %3824 = vmatpush.bf16.msra.mxu0 %v3374
    %3825 = vmatpush.bf16.msra.mxu0 %v3358
    %3826 = vmatpush.bf16.msra.mxu0 %v3342
    %3827 = vmatpush.bf16.msra.mxu0 %v3326
    %3828 = vmatpush.bf16.msra.mxu0 %v3310
    %3829 = vmatpush.bf16.msra.mxu0 %v3294
    %3830 = vmatpush.bf16.msra.mxu0 %v3278
    %3831 = vmatpush.bf16.msra.mxu0 %v3262
    %3832 = vmatmul.bf16.gmra.mxu0 %v2058
    %v3833 = vpop.f32.mrf.mxu0
    %v3834 = vadd.f32 %v2452, %v3833
    %v3835 = vpop.f32.mrf.mxu0
    %3836 = vdwg.mxu0
    %3837 = vmatpush.bf16.msra.mxu0 %v3502
    %3838 = vmatpush.bf16.msra.mxu0 %v3486
    %3839 = vmatpush.bf16.msra.mxu0 %v3470
    %3840 = vmatpush.bf16.msra.mxu0 %v3454
    %3841 = vmatpush.bf16.msra.mxu0 %v3438
    %3842 = vmatpush.bf16.msra.mxu0 %v3422
    %3843 = vmatpush.bf16.msra.mxu0 %v3406
    %3844 = vmatpush.bf16.msra.mxu0 %v3390
    %3845 = vmatmul.bf16.gmra.mxu0 %v2059
    %v3846 = vpop.f32.mrf.mxu0
    %v3847 = vadd.f32 %v3834, %v3846
    %v3848 = vpop.f32.mrf.mxu0
    %3849 = vdwg.mxu0
    %3850 = vmatpush.bf16.msra.mxu0 %v3375
    %3851 = vmatpush.bf16.msra.mxu0 %v3359
    %3852 = vmatpush.bf16.msra.mxu0 %v3343
    %3853 = vmatpush.bf16.msra.mxu0 %v3327
    %3854 = vmatpush.bf16.msra.mxu0 %v3311
    %3855 = vmatpush.bf16.msra.mxu0 %v3295
    %3856 = vmatpush.bf16.msra.mxu0 %v3279
    %3857 = vmatpush.bf16.msra.mxu0 %v3263
    %3858 = vmatmul.bf16.gmra.mxu0 %v2058
    %v3859 = vpop.f32.mrf.mxu0
    %v3860 = vadd.f32 %v2453, %v3859
    %v3861 = vpop.f32.mrf.mxu0
    %3862 = vdwg.mxu0
    %3863 = vmatpush.bf16.msra.mxu0 %v3503
    %3864 = vmatpush.bf16.msra.mxu0 %v3487
    %3865 = vmatpush.bf16.msra.mxu0 %v3471
    %3866 = vmatpush.bf16.msra.mxu0 %v3455
    %3867 = vmatpush.bf16.msra.mxu0 %v3439
    %3868 = vmatpush.bf16.msra.mxu0 %v3423
    %3869 = vmatpush.bf16.msra.mxu0 %v3407
    %3870 = vmatpush.bf16.msra.mxu0 %v3391
    %3871 = vmatmul.bf16.gmra.mxu0 %v2059
    %v3872 = vpop.f32.mrf.mxu0
    %v3873 = vadd.f32 %v3860, %v3872
    %v3874 = vpop.f32.mrf.mxu0
    %3875 = vdwg.mxu0
    %3876 = vmatpush.bf16.msra.mxu0 %v3376
    %3877 = vmatpush.bf16.msra.mxu0 %v3360
    %3878 = vmatpush.bf16.msra.mxu0 %v3344
    %3879 = vmatpush.bf16.msra.mxu0 %v3328
    %3880 = vmatpush.bf16.msra.mxu0 %v3312
    %3881 = vmatpush.bf16.msra.mxu0 %v3296
    %3882 = vmatpush.bf16.msra.mxu0 %v3280
    %3883 = vmatpush.bf16.msra.mxu0 %v3264
    %3884 = vmatmul.bf16.gmra.mxu0 %v2058
    %v3885 = vpop.f32.mrf.mxu0
    %v3886 = vadd.f32 %v2458, %v3885
    %v3887 = vpop.f32.mrf.mxu0
    %3888 = vdwg.mxu0
    %3889 = vmatpush.bf16.msra.mxu0 %v3504
    %3890 = vmatpush.bf16.msra.mxu0 %v3488
    %3891 = vmatpush.bf16.msra.mxu0 %v3472
    %3892 = vmatpush.bf16.msra.mxu0 %v3456
    %3893 = vmatpush.bf16.msra.mxu0 %v3440
    %3894 = vmatpush.bf16.msra.mxu0 %v3424
    %3895 = vmatpush.bf16.msra.mxu0 %v3408
    %3896 = vmatpush.bf16.msra.mxu0 %v3392
    %3897 = vmatmul.bf16.gmra.mxu0 %v2059
    %v3898 = vpop.f32.mrf.mxu0
    %v3899 = vadd.f32 %v3886, %v3898
    %v3900 = vpop.f32.mrf.mxu0
    %3901 = vdwg.mxu0
    %3902 = vmatpush.bf16.msra.mxu0 %v3377
    %3903 = vmatpush.bf16.msra.mxu0 %v3361
    %3904 = vmatpush.bf16.msra.mxu0 %v3345
    %3905 = vmatpush.bf16.msra.mxu0 %v3329
    %3906 = vmatpush.bf16.msra.mxu0 %v3313
    %3907 = vmatpush.bf16.msra.mxu0 %v3297
    %3908 = vmatpush.bf16.msra.mxu0 %v3281
    %3909 = vmatpush.bf16.msra.mxu0 %v3265
    %3910 = vmatmul.bf16.gmra.mxu0 %v2058
    %v3911 = vpop.f32.mrf.mxu0
    %v3912 = vadd.f32 %v2459, %v3911
    %v3913 = vpop.f32.mrf.mxu0
    %3914 = vdwg.mxu0
    %3915 = vmatpush.bf16.msra.mxu0 %v3505
    %3916 = vmatpush.bf16.msra.mxu0 %v3489
    %3917 = vmatpush.bf16.msra.mxu0 %v3473
    %3918 = vmatpush.bf16.msra.mxu0 %v3457
    %3919 = vmatpush.bf16.msra.mxu0 %v3441
    %3920 = vmatpush.bf16.msra.mxu0 %v3425
    %3921 = vmatpush.bf16.msra.mxu0 %v3409
    %3922 = vmatpush.bf16.msra.mxu0 %v3393
    %3923 = vmatmul.bf16.gmra.mxu0 %v2059
    %v3924 = vpop.f32.mrf.mxu0
    %v3925 = vadd.f32 %v3912, %v3924
    %v3926 = vpop.f32.mrf.mxu0
    %3927 = vdwg.mxu0
    %3928 = vmatpush.bf16.msra.mxu0 %v3378
    %3929 = vmatpush.bf16.msra.mxu0 %v3362
    %3930 = vmatpush.bf16.msra.mxu0 %v3346
    %3931 = vmatpush.bf16.msra.mxu0 %v3330
    %3932 = vmatpush.bf16.msra.mxu0 %v3314
    %3933 = vmatpush.bf16.msra.mxu0 %v3298
    %3934 = vmatpush.bf16.msra.mxu0 %v3282
    %3935 = vmatpush.bf16.msra.mxu0 %v3266
    %3936 = vmatmul.bf16.gmra.mxu0 %v2058
    %v3937 = vpop.f32.mrf.mxu0
    %v3938 = vadd.f32 %v2464, %v3937
    %v3939 = vpop.f32.mrf.mxu0
    %3940 = vdwg.mxu0
    %3941 = vmatpush.bf16.msra.mxu0 %v3506
    %3942 = vmatpush.bf16.msra.mxu0 %v3490
    %3943 = vmatpush.bf16.msra.mxu0 %v3474
    %3944 = vmatpush.bf16.msra.mxu0 %v3458
    %3945 = vmatpush.bf16.msra.mxu0 %v3442
    %3946 = vmatpush.bf16.msra.mxu0 %v3426
    %3947 = vmatpush.bf16.msra.mxu0 %v3410
    %3948 = vmatpush.bf16.msra.mxu0 %v3394
    %3949 = vmatmul.bf16.gmra.mxu0 %v2059
    %v3950 = vpop.f32.mrf.mxu0
    %v3951 = vadd.f32 %v3938, %v3950
    %v3952 = vpop.f32.mrf.mxu0
    %3953 = vdwg.mxu0
    %3954 = vmatpush.bf16.msra.mxu0 %v3379
    %3955 = vmatpush.bf16.msra.mxu0 %v3363
    %3956 = vmatpush.bf16.msra.mxu0 %v3347
    %3957 = vmatpush.bf16.msra.mxu0 %v3331
    %3958 = vmatpush.bf16.msra.mxu0 %v3315
    %3959 = vmatpush.bf16.msra.mxu0 %v3299
    %3960 = vmatpush.bf16.msra.mxu0 %v3283
    %3961 = vmatpush.bf16.msra.mxu0 %v3267
    %3962 = vmatmul.bf16.gmra.mxu0 %v2058
    %v3963 = vpop.f32.mrf.mxu0
    %v3964 = vadd.f32 %v2465, %v3963
    %v3965 = vpop.f32.mrf.mxu0
    %3966 = vdwg.mxu0
    %3967 = vmatpush.bf16.msra.mxu0 %v3507
    %3968 = vmatpush.bf16.msra.mxu0 %v3491
    %3969 = vmatpush.bf16.msra.mxu0 %v3475
    %3970 = vmatpush.bf16.msra.mxu0 %v3459
    %3971 = vmatpush.bf16.msra.mxu0 %v3443
    %3972 = vmatpush.bf16.msra.mxu0 %v3427
    %3973 = vmatpush.bf16.msra.mxu0 %v3411
    %3974 = vmatpush.bf16.msra.mxu0 %v3395
    %3975 = vmatmul.bf16.gmra.mxu0 %v2059
    %v3976 = vpop.f32.mrf.mxu0
    %v3977 = vadd.f32 %v3964, %v3976
    %v3978 = vpop.f32.mrf.mxu0
    %3979 = vdwg.mxu0
    %3980 = vmatpush.bf16.msra.mxu0 %v3380
    %3981 = vmatpush.bf16.msra.mxu0 %v3364
    %3982 = vmatpush.bf16.msra.mxu0 %v3348
    %3983 = vmatpush.bf16.msra.mxu0 %v3332
    %3984 = vmatpush.bf16.msra.mxu0 %v3316
    %3985 = vmatpush.bf16.msra.mxu0 %v3300
    %3986 = vmatpush.bf16.msra.mxu0 %v3284
    %3987 = vmatpush.bf16.msra.mxu0 %v3268
    %3988 = vmatmul.bf16.gmra.mxu0 %v2058
    %v3989 = vpop.f32.mrf.mxu0
    %v3990 = vadd.f32 %v2470, %v3989
    %v3991 = vpop.f32.mrf.mxu0
    %3992 = vdwg.mxu0
    %3993 = vmatpush.bf16.msra.mxu0 %v3508
    %3994 = vmatpush.bf16.msra.mxu0 %v3492
    %3995 = vmatpush.bf16.msra.mxu0 %v3476
    %3996 = vmatpush.bf16.msra.mxu0 %v3460
    %3997 = vmatpush.bf16.msra.mxu0 %v3444
    %3998 = vmatpush.bf16.msra.mxu0 %v3428
    %3999 = vmatpush.bf16.msra.mxu0 %v3412
    %4000 = vmatpush.bf16.msra.mxu0 %v3396
    %4001 = vmatmul.bf16.gmra.mxu0 %v2059
    %v4002 = vpop.f32.mrf.mxu0
    %v4003 = vadd.f32 %v3990, %v4002
    %v4004 = vpop.f32.mrf.mxu0
    %4005 = vdwg.mxu0
    %4006 = vmatpush.bf16.msra.mxu0 %v3381
    %4007 = vmatpush.bf16.msra.mxu0 %v3365
    %4008 = vmatpush.bf16.msra.mxu0 %v3349
    %4009 = vmatpush.bf16.msra.mxu0 %v3333
    %4010 = vmatpush.bf16.msra.mxu0 %v3317
    %4011 = vmatpush.bf16.msra.mxu0 %v3301
    %4012 = vmatpush.bf16.msra.mxu0 %v3285
    %4013 = vmatpush.bf16.msra.mxu0 %v3269
    %4014 = vmatmul.bf16.gmra.mxu0 %v2058
    %v4015 = vpop.f32.mrf.mxu0
    %v4016 = vadd.f32 %v2471, %v4015
    %v4017 = vpop.f32.mrf.mxu0
    %4018 = vdwg.mxu0
    %4019 = vmatpush.bf16.msra.mxu0 %v3509
    %4020 = vmatpush.bf16.msra.mxu0 %v3493
    %4021 = vmatpush.bf16.msra.mxu0 %v3477
    %4022 = vmatpush.bf16.msra.mxu0 %v3461
    %4023 = vmatpush.bf16.msra.mxu0 %v3445
    %4024 = vmatpush.bf16.msra.mxu0 %v3429
    %4025 = vmatpush.bf16.msra.mxu0 %v3413
    %4026 = vmatpush.bf16.msra.mxu0 %v3397
    %4027 = vmatmul.bf16.gmra.mxu0 %v2059
    %v4028 = vpop.f32.mrf.mxu0
    %v4029 = vadd.f32 %v4016, %v4028
    %v4030 = vpop.f32.mrf.mxu0
    %4031 = vdwg.mxu0
    %4032 = vmatpush.bf16.msra.mxu0 %v3382
    %4033 = vmatpush.bf16.msra.mxu0 %v3366
    %4034 = vmatpush.bf16.msra.mxu0 %v3350
    %4035 = vmatpush.bf16.msra.mxu0 %v3334
    %4036 = vmatpush.bf16.msra.mxu0 %v3318
    %4037 = vmatpush.bf16.msra.mxu0 %v3302
    %4038 = vmatpush.bf16.msra.mxu0 %v3286
    %4039 = vmatpush.bf16.msra.mxu0 %v3270
    %4040 = vmatmul.bf16.gmra.mxu0 %v2058
    %v4041 = vpop.f32.mrf.mxu0
    %v4042 = vadd.f32 %v2476, %v4041
    %v4043 = vpop.f32.mrf.mxu0
    %4044 = vdwg.mxu0
    %4045 = vmatpush.bf16.msra.mxu0 %v3510
    %4046 = vmatpush.bf16.msra.mxu0 %v3494
    %4047 = vmatpush.bf16.msra.mxu0 %v3478
    %4048 = vmatpush.bf16.msra.mxu0 %v3462
    %4049 = vmatpush.bf16.msra.mxu0 %v3446
    %4050 = vmatpush.bf16.msra.mxu0 %v3430
    %4051 = vmatpush.bf16.msra.mxu0 %v3414
    %4052 = vmatpush.bf16.msra.mxu0 %v3398
    %4053 = vmatmul.bf16.gmra.mxu0 %v2059
    %v4054 = vpop.f32.mrf.mxu0
    %v4055 = vadd.f32 %v4042, %v4054
    %v4056 = vpop.f32.mrf.mxu0
    %4057 = vdwg.mxu0
    %4058 = vmatpush.bf16.msra.mxu0 %v3383
    %4059 = vmatpush.bf16.msra.mxu0 %v3367
    %4060 = vmatpush.bf16.msra.mxu0 %v3351
    %4061 = vmatpush.bf16.msra.mxu0 %v3335
    %4062 = vmatpush.bf16.msra.mxu0 %v3319
    %4063 = vmatpush.bf16.msra.mxu0 %v3303
    %4064 = vmatpush.bf16.msra.mxu0 %v3287
    %4065 = vmatpush.bf16.msra.mxu0 %v3271
    %4066 = vmatmul.bf16.gmra.mxu0 %v2058
    %v4067 = vpop.f32.mrf.mxu0
    %v4068 = vadd.f32 %v2477, %v4067
    %v4069 = vpop.f32.mrf.mxu0
    %4070 = vdwg.mxu0
    %4071 = vmatpush.bf16.msra.mxu0 %v3511
    %4072 = vmatpush.bf16.msra.mxu0 %v3495
    %4073 = vmatpush.bf16.msra.mxu0 %v3479
    %4074 = vmatpush.bf16.msra.mxu0 %v3463
    %4075 = vmatpush.bf16.msra.mxu0 %v3447
    %4076 = vmatpush.bf16.msra.mxu0 %v3431
    %4077 = vmatpush.bf16.msra.mxu0 %v3415
    %4078 = vmatpush.bf16.msra.mxu0 %v3399
    %4079 = vmatmul.bf16.gmra.mxu0 %v2059
    %v4080 = vpop.f32.mrf.mxu0
    %v4081 = vadd.f32 %v4068, %v4080
    %v4082 = vpop.f32.mrf.mxu0
    %4083 = vdwg.mxu0
    %4084 = vmatpush.bf16.msra.mxu0 %v3384
    %4085 = vmatpush.bf16.msra.mxu0 %v3368
    %4086 = vmatpush.bf16.msra.mxu0 %v3352
    %4087 = vmatpush.bf16.msra.mxu0 %v3336
    %4088 = vmatpush.bf16.msra.mxu0 %v3320
    %4089 = vmatpush.bf16.msra.mxu0 %v3304
    %4090 = vmatpush.bf16.msra.mxu0 %v3288
    %4091 = vmatpush.bf16.msra.mxu0 %v3272
    %4092 = vmatmul.bf16.gmra.mxu0 %v2058
    %v4093 = vpop.f32.mrf.mxu0
    %v4094 = vadd.f32 %v2482, %v4093
    %v4095 = vpop.f32.mrf.mxu0
    %4096 = vdwg.mxu0
    %4097 = vmatpush.bf16.msra.mxu0 %v3512
    %4098 = vmatpush.bf16.msra.mxu0 %v3496
    %4099 = vmatpush.bf16.msra.mxu0 %v3480
    %4100 = vmatpush.bf16.msra.mxu0 %v3464
    %4101 = vmatpush.bf16.msra.mxu0 %v3448
    %4102 = vmatpush.bf16.msra.mxu0 %v3432
    %4103 = vmatpush.bf16.msra.mxu0 %v3416
    %4104 = vmatpush.bf16.msra.mxu0 %v3400
    %4105 = vmatmul.bf16.gmra.mxu0 %v2059
    %v4106 = vpop.f32.mrf.mxu0
    %v4107 = vadd.f32 %v4094, %v4106
    %v4108 = vpop.f32.mrf.mxu0
    %4109 = vdwg.mxu0
    %4110 = vmatpush.bf16.msra.mxu0 %v3385
    %4111 = vmatpush.bf16.msra.mxu0 %v3369
    %4112 = vmatpush.bf16.msra.mxu0 %v3353
    %4113 = vmatpush.bf16.msra.mxu0 %v3337
    %4114 = vmatpush.bf16.msra.mxu0 %v3321
    %4115 = vmatpush.bf16.msra.mxu0 %v3305
    %4116 = vmatpush.bf16.msra.mxu0 %v3289
    %4117 = vmatpush.bf16.msra.mxu0 %v3273
    %4118 = vmatmul.bf16.gmra.mxu0 %v2058
    %v4119 = vpop.f32.mrf.mxu0
    %v4120 = vadd.f32 %v2483, %v4119
    %v4121 = vpop.f32.mrf.mxu0
    %4122 = vdwg.mxu0
    %4123 = vmatpush.bf16.msra.mxu0 %v3513
    %4124 = vmatpush.bf16.msra.mxu0 %v3497
    %4125 = vmatpush.bf16.msra.mxu0 %v3481
    %4126 = vmatpush.bf16.msra.mxu0 %v3465
    %4127 = vmatpush.bf16.msra.mxu0 %v3449
    %4128 = vmatpush.bf16.msra.mxu0 %v3433
    %4129 = vmatpush.bf16.msra.mxu0 %v3417
    %4130 = vmatpush.bf16.msra.mxu0 %v3401
    %4131 = vmatmul.bf16.gmra.mxu0 %v2059
    %v4132 = vpop.f32.mrf.mxu0
    %v4133 = vadd.f32 %v4120, %v4132
    %v4134 = vpop.f32.mrf.mxu0
    %4135 = vdwg.mxu0
    %4136 = vmatpush.bf16.msra.mxu0 %v3386
    %4137 = vmatpush.bf16.msra.mxu0 %v3370
    %4138 = vmatpush.bf16.msra.mxu0 %v3354
    %4139 = vmatpush.bf16.msra.mxu0 %v3338
    %4140 = vmatpush.bf16.msra.mxu0 %v3322
    %4141 = vmatpush.bf16.msra.mxu0 %v3306
    %4142 = vmatpush.bf16.msra.mxu0 %v3290
    %4143 = vmatpush.bf16.msra.mxu0 %v3274
    %4144 = vmatmul.bf16.gmra.mxu0 %v2058
    %v4145 = vpop.f32.mrf.mxu0
    %v4146 = vadd.f32 %v2488, %v4145
    %v4147 = vpop.f32.mrf.mxu0
    %4148 = vdwg.mxu0
    %4149 = vmatpush.bf16.msra.mxu0 %v3514
    %4150 = vmatpush.bf16.msra.mxu0 %v3498
    %4151 = vmatpush.bf16.msra.mxu0 %v3482
    %4152 = vmatpush.bf16.msra.mxu0 %v3466
    %4153 = vmatpush.bf16.msra.mxu0 %v3450
    %4154 = vmatpush.bf16.msra.mxu0 %v3434
    %4155 = vmatpush.bf16.msra.mxu0 %v3418
    %4156 = vmatpush.bf16.msra.mxu0 %v3402
    %4157 = vmatmul.bf16.gmra.mxu0 %v2059
    %v4158 = vpop.f32.mrf.mxu0
    %v4159 = vadd.f32 %v4146, %v4158
    %v4160 = vpop.f32.mrf.mxu0
    %4161 = vdwg.mxu0
    %4162 = vmatpush.bf16.msra.mxu0 %v3387
    %4163 = vmatpush.bf16.msra.mxu0 %v3371
    %4164 = vmatpush.bf16.msra.mxu0 %v3355
    %4165 = vmatpush.bf16.msra.mxu0 %v3339
    %4166 = vmatpush.bf16.msra.mxu0 %v3323
    %4167 = vmatpush.bf16.msra.mxu0 %v3307
    %4168 = vmatpush.bf16.msra.mxu0 %v3291
    %4169 = vmatpush.bf16.msra.mxu0 %v3275
    %4170 = vmatmul.bf16.gmra.mxu0 %v2058
    %v4171 = vpop.f32.mrf.mxu0
    %v4172 = vadd.f32 %v2489, %v4171
    %v4173 = vpop.f32.mrf.mxu0
    %4174 = vdwg.mxu0
    %4175 = vmatpush.bf16.msra.mxu0 %v3515
    %4176 = vmatpush.bf16.msra.mxu0 %v3499
    %4177 = vmatpush.bf16.msra.mxu0 %v3483
    %4178 = vmatpush.bf16.msra.mxu0 %v3467
    %4179 = vmatpush.bf16.msra.mxu0 %v3451
    %4180 = vmatpush.bf16.msra.mxu0 %v3435
    %4181 = vmatpush.bf16.msra.mxu0 %v3419
    %4182 = vmatpush.bf16.msra.mxu0 %v3403
    %4183 = vmatmul.bf16.gmra.mxu0 %v2059
    %v4184 = vpop.f32.mrf.mxu0
    %v4185 = vadd.f32 %v4172, %v4184
    %v4186 = vpop.f32.mrf.mxu0
    %4187 = vdwg.mxu0
    %v4188 = vmul.f32 %v3795, 0.5
    %v4189 = vmul.f32 %v3821, 0.5
    %v4190 = vmul.f32 %v3847, 0.5
    %v4191 = vmul.f32 %v3873, 0.5
    %v4192 = vmul.f32 %v3899, 0.5
    %v4193 = vmul.f32 %v3925, 0.5
    %v4194 = vmul.f32 %v3951, 0.5
    %v4195 = vmul.f32 %v3977, 0.5
    %v4196 = vmul.f32 %v4003, 0.5
    %v4197 = vmul.f32 %v4029, 0.5
    %v4198 = vmul.f32 %v4055, 0.5
    %v4199 = vmul.f32 %v4081, 0.5
    %v4200 = vmul.f32 %v4107, 0.5
    %v4201 = vmul.f32 %v4133, 0.5
    %v4202 = vmul.f32 %v4159, 0.5
    %v4203 = vmul.f32 %v4185, 0.5
    %v4204 = vmul.f32 %v3795, 0.70710677
    %v4205 = vmul.f32 %v3821, 0.70710677
    %v4206 = vmul.f32 %v3847, 0.70710677
    %v4207 = vmul.f32 %v3873, 0.70710677
    %v4208 = vmul.f32 %v3899, 0.70710677
    %v4209 = vmul.f32 %v3925, 0.70710677
    %v4210 = vmul.f32 %v3951, 0.70710677
    %v4211 = vmul.f32 %v3977, 0.70710677
    %v4212 = vmul.f32 %v4003, 0.70710677
    %v4213 = vmul.f32 %v4029, 0.70710677
    %v4214 = vmul.f32 %v4055, 0.70710677
    %v4215 = vmul.f32 %v4081, 0.70710677
    %v4216 = vmul.f32 %v4107, 0.70710677
    %v4217 = vmul.f32 %v4133, 0.70710677
    %v4218 = vmul.f32 %v4159, 0.70710677
    %v4219 = vmul.f32 %v4185, 0.70710677
    %v4220 = vand.u32 2147483647, %v4204
    %v4221 = vand.u32 2147483647, %v4205
    %v4222 = vand.u32 2147483647, %v4206
    %v4223 = vand.u32 2147483647, %v4207
    %v4224 = vand.u32 2147483647, %v4208
    %v4225 = vand.u32 2147483647, %v4209
    %v4226 = vand.u32 2147483647, %v4210
    %v4227 = vand.u32 2147483647, %v4211
    %v4228 = vand.u32 2147483647, %v4212
    %v4229 = vand.u32 2147483647, %v4213
    %v4230 = vand.u32 2147483647, %v4214
    %v4231 = vand.u32 2147483647, %v4215
    %v4232 = vand.u32 2147483647, %v4216
    %v4233 = vand.u32 2147483647, %v4217
    %v4234 = vand.u32 2147483647, %v4218
    %v4235 = vand.u32 2147483647, %v4219
    %v4236 = vmul.f32 %v4220, 0.3275911
    %v4237 = vmul.f32 %v4221, 0.3275911
    %v4238 = vmul.f32 %v4222, 0.3275911
    %v4239 = vmul.f32 %v4223, 0.3275911
    %v4240 = vmul.f32 %v4224, 0.3275911
    %v4241 = vmul.f32 %v4225, 0.3275911
    %v4242 = vmul.f32 %v4226, 0.3275911
    %v4243 = vmul.f32 %v4227, 0.3275911
    %v4244 = vmul.f32 %v4228, 0.3275911
    %v4245 = vmul.f32 %v4229, 0.3275911
    %v4246 = vmul.f32 %v4230, 0.3275911
    %v4247 = vmul.f32 %v4231, 0.3275911
    %v4248 = vmul.f32 %v4232, 0.3275911
    %v4249 = vmul.f32 %v4233, 0.3275911
    %v4250 = vmul.f32 %v4234, 0.3275911
    %v4251 = vmul.f32 %v4235, 0.3275911
    %v4252 = vadd.f32 %v4236, 1.0
    %v4253 = vadd.f32 %v4237, 1.0
    %v4254 = vadd.f32 %v4238, 1.0
    %v4255 = vadd.f32 %v4239, 1.0
    %v4256 = vadd.f32 %v4240, 1.0
    %v4257 = vadd.f32 %v4241, 1.0
    %v4258 = vadd.f32 %v4242, 1.0
    %v4259 = vadd.f32 %v4243, 1.0
    %v4260 = vadd.f32 %v4244, 1.0
    %v4261 = vadd.f32 %v4245, 1.0
    %v4262 = vadd.f32 %v4246, 1.0
    %v4263 = vadd.f32 %v4247, 1.0
    %v4264 = vadd.f32 %v4248, 1.0
    %v4265 = vadd.f32 %v4249, 1.0
    %v4266 = vadd.f32 %v4250, 1.0
    %v4267 = vadd.f32 %v4251, 1.0
    %v4268 = vrcp.pop %v4252
    %v4269 = vmul.f32 %v4252, %v4268
    %v4270 = vsub.f32 1.0, %v4269
    %v4271 = vmul.f32 %v4268, %v4270
    %v4272 = vadd.f32 %v4268, %v4271
    %vm4273 = vweird.f32 %v4252
    %vm4274 = vweird.f32 %v4268
    %vm4275 = vmor %vm4273, %vm4274
    %v4276 = vsel %vm4275, %v4268, %v4272
    %v4277 = vand.u32 2147483647, %v4252
    %vm4278 = vcmp.eq.f32.partialorder %v4277, 8.507059e+37
    %v4279 = vand.u32 %v4252, 2147483648
    %v4280 = vor.u32 1.1754944e-38, %v4279
    %v4281 = vsel %vm4278, %v4280, %v4276
    %v4282 = vmul.f32 1.0, %v4281
    %v4283 = vrcp.pop %v4253
    %v4284 = vmul.f32 %v4253, %v4283
    %v4285 = vsub.f32 1.0, %v4284
    %v4286 = vmul.f32 %v4283, %v4285
    %v4287 = vadd.f32 %v4283, %v4286
    %vm4288 = vweird.f32 %v4253
    %vm4289 = vweird.f32 %v4283
    %vm4290 = vmor %vm4288, %vm4289
    %v4291 = vsel %vm4290, %v4283, %v4287
    %v4292 = vand.u32 2147483647, %v4253
    %vm4293 = vcmp.eq.f32.partialorder %v4292, 8.507059e+37
    %v4294 = vand.u32 %v4253, 2147483648
    %v4295 = vor.u32 1.1754944e-38, %v4294
    %v4296 = vsel %vm4293, %v4295, %v4291
    %v4297 = vmul.f32 1.0, %v4296
    %v4298 = vrcp.pop %v4254
    %v4299 = vmul.f32 %v4254, %v4298
    %v4300 = vsub.f32 1.0, %v4299
    %v4301 = vmul.f32 %v4298, %v4300
    %v4302 = vadd.f32 %v4298, %v4301
    %vm4303 = vweird.f32 %v4254
    %vm4304 = vweird.f32 %v4298
    %vm4305 = vmor %vm4303, %vm4304
    %v4306 = vsel %vm4305, %v4298, %v4302
    %v4307 = vand.u32 2147483647, %v4254
    %vm4308 = vcmp.eq.f32.partialorder %v4307, 8.507059e+37
    %v4309 = vand.u32 %v4254, 2147483648
    %v4310 = vor.u32 1.1754944e-38, %v4309
    %v4311 = vsel %vm4308, %v4310, %v4306
    %v4312 = vmul.f32 1.0, %v4311
    %v4313 = vrcp.pop %v4255
    %v4314 = vmul.f32 %v4255, %v4313
    %v4315 = vsub.f32 1.0, %v4314
    %v4316 = vmul.f32 %v4313, %v4315
    %v4317 = vadd.f32 %v4313, %v4316
    %vm4318 = vweird.f32 %v4255
    %vm4319 = vweird.f32 %v4313
    %vm4320 = vmor %vm4318, %vm4319
    %v4321 = vsel %vm4320, %v4313, %v4317
    %v4322 = vand.u32 2147483647, %v4255
    %vm4323 = vcmp.eq.f32.partialorder %v4322, 8.507059e+37
    %v4324 = vand.u32 %v4255, 2147483648
    %v4325 = vor.u32 1.1754944e-38, %v4324
    %v4326 = vsel %vm4323, %v4325, %v4321
    %v4327 = vmul.f32 1.0, %v4326
    %v4328 = vrcp.pop %v4256
    %v4329 = vmul.f32 %v4256, %v4328
    %v4330 = vsub.f32 1.0, %v4329
    %v4331 = vmul.f32 %v4328, %v4330
    %v4332 = vadd.f32 %v4328, %v4331
    %vm4333 = vweird.f32 %v4256
    %vm4334 = vweird.f32 %v4328
    %vm4335 = vmor %vm4333, %vm4334
    %v4336 = vsel %vm4335, %v4328, %v4332
    %v4337 = vand.u32 2147483647, %v4256
    %vm4338 = vcmp.eq.f32.partialorder %v4337, 8.507059e+37
    %v4339 = vand.u32 %v4256, 2147483648
    %v4340 = vor.u32 1.1754944e-38, %v4339
    %v4341 = vsel %vm4338, %v4340, %v4336
    %v4342 = vmul.f32 1.0, %v4341
    %v4343 = vrcp.pop %v4257
    %v4344 = vmul.f32 %v4257, %v4343
    %v4345 = vsub.f32 1.0, %v4344
    %v4346 = vmul.f32 %v4343, %v4345
    %v4347 = vadd.f32 %v4343, %v4346
    %vm4348 = vweird.f32 %v4257
    %vm4349 = vweird.f32 %v4343
    %vm4350 = vmor %vm4348, %vm4349
    %v4351 = vsel %vm4350, %v4343, %v4347
    %v4352 = vand.u32 2147483647, %v4257
    %vm4353 = vcmp.eq.f32.partialorder %v4352, 8.507059e+37
    %v4354 = vand.u32 %v4257, 2147483648
    %v4355 = vor.u32 1.1754944e-38, %v4354
    %v4356 = vsel %vm4353, %v4355, %v4351
    %v4357 = vmul.f32 1.0, %v4356
    %v4358 = vrcp.pop %v4258
    %v4359 = vmul.f32 %v4258, %v4358
    %v4360 = vsub.f32 1.0, %v4359
    %v4361 = vmul.f32 %v4358, %v4360
    %v4362 = vadd.f32 %v4358, %v4361
    %vm4363 = vweird.f32 %v4258
    %vm4364 = vweird.f32 %v4358
    %vm4365 = vmor %vm4363, %vm4364
    %v4366 = vsel %vm4365, %v4358, %v4362
    %v4367 = vand.u32 2147483647, %v4258
    %vm4368 = vcmp.eq.f32.partialorder %v4367, 8.507059e+37
    %v4369 = vand.u32 %v4258, 2147483648
    %v4370 = vor.u32 1.1754944e-38, %v4369
    %v4371 = vsel %vm4368, %v4370, %v4366
    %v4372 = vmul.f32 1.0, %v4371
    %v4373 = vrcp.pop %v4259
    %v4374 = vmul.f32 %v4259, %v4373
    %v4375 = vsub.f32 1.0, %v4374
    %v4376 = vmul.f32 %v4373, %v4375
    %v4377 = vadd.f32 %v4373, %v4376
    %vm4378 = vweird.f32 %v4259
    %vm4379 = vweird.f32 %v4373
    %vm4380 = vmor %vm4378, %vm4379
    %v4381 = vsel %vm4380, %v4373, %v4377
    %v4382 = vand.u32 2147483647, %v4259
    %vm4383 = vcmp.eq.f32.partialorder %v4382, 8.507059e+37
    %v4384 = vand.u32 %v4259, 2147483648
    %v4385 = vor.u32 1.1754944e-38, %v4384
    %v4386 = vsel %vm4383, %v4385, %v4381
    %v4387 = vmul.f32 1.0, %v4386
    %v4388 = vrcp.pop %v4260
    %v4389 = vmul.f32 %v4260, %v4388
    %v4390 = vsub.f32 1.0, %v4389
    %v4391 = vmul.f32 %v4388, %v4390
    %v4392 = vadd.f32 %v4388, %v4391
    %vm4393 = vweird.f32 %v4260
    %vm4394 = vweird.f32 %v4388
    %vm4395 = vmor %vm4393, %vm4394
    %v4396 = vsel %vm4395, %v4388, %v4392
    %v4397 = vand.u32 2147483647, %v4260
    %vm4398 = vcmp.eq.f32.partialorder %v4397, 8.507059e+37
    %v4399 = vand.u32 %v4260, 2147483648
    %v4400 = vor.u32 1.1754944e-38, %v4399
    %v4401 = vsel %vm4398, %v4400, %v4396
    %v4402 = vmul.f32 1.0, %v4401
    %v4403 = vrcp.pop %v4261
    %v4404 = vmul.f32 %v4261, %v4403
    %v4405 = vsub.f32 1.0, %v4404
    %v4406 = vmul.f32 %v4403, %v4405
    %v4407 = vadd.f32 %v4403, %v4406
    %vm4408 = vweird.f32 %v4261
    %vm4409 = vweird.f32 %v4403
    %vm4410 = vmor %vm4408, %vm4409
    %v4411 = vsel %vm4410, %v4403, %v4407
    %v4412 = vand.u32 2147483647, %v4261
    %vm4413 = vcmp.eq.f32.partialorder %v4412, 8.507059e+37
    %v4414 = vand.u32 %v4261, 2147483648
    %v4415 = vor.u32 1.1754944e-38, %v4414
    %v4416 = vsel %vm4413, %v4415, %v4411
    %v4417 = vmul.f32 1.0, %v4416
    %v4418 = vrcp.pop %v4262
    %v4419 = vmul.f32 %v4262, %v4418
    %v4420 = vsub.f32 1.0, %v4419
    %v4421 = vmul.f32 %v4418, %v4420
    %v4422 = vadd.f32 %v4418, %v4421
    %vm4423 = vweird.f32 %v4262
    %vm4424 = vweird.f32 %v4418
    %vm4425 = vmor %vm4423, %vm4424
    %v4426 = vsel %vm4425, %v4418, %v4422
    %v4427 = vand.u32 2147483647, %v4262
    %vm4428 = vcmp.eq.f32.partialorder %v4427, 8.507059e+37
    %v4429 = vand.u32 %v4262, 2147483648
    %v4430 = vor.u32 1.1754944e-38, %v4429
    %v4431 = vsel %vm4428, %v4430, %v4426
    %v4432 = vmul.f32 1.0, %v4431
    %v4433 = vrcp.pop %v4263
    %v4434 = vmul.f32 %v4263, %v4433
    %v4435 = vsub.f32 1.0, %v4434
    %v4436 = vmul.f32 %v4433, %v4435
    %v4437 = vadd.f32 %v4433, %v4436
    %vm4438 = vweird.f32 %v4263
    %vm4439 = vweird.f32 %v4433
    %vm4440 = vmor %vm4438, %vm4439
    %v4441 = vsel %vm4440, %v4433, %v4437
    %v4442 = vand.u32 2147483647, %v4263
    %vm4443 = vcmp.eq.f32.partialorder %v4442, 8.507059e+37
    %v4444 = vand.u32 %v4263, 2147483648
    %v4445 = vor.u32 1.1754944e-38, %v4444
    %v4446 = vsel %vm4443, %v4445, %v4441
    %v4447 = vmul.f32 1.0, %v4446
    %v4448 = vrcp.pop %v4264
    %v4449 = vmul.f32 %v4264, %v4448
    %v4450 = vsub.f32 1.0, %v4449
    %v4451 = vmul.f32 %v4448, %v4450
    %v4452 = vadd.f32 %v4448, %v4451
    %vm4453 = vweird.f32 %v4264
    %vm4454 = vweird.f32 %v4448
    %vm4455 = vmor %vm4453, %vm4454
    %v4456 = vsel %vm4455, %v4448, %v4452
    %v4457 = vand.u32 2147483647, %v4264
    %vm4458 = vcmp.eq.f32.partialorder %v4457, 8.507059e+37
    %v4459 = vand.u32 %v4264, 2147483648
    %v4460 = vor.u32 1.1754944e-38, %v4459
    %v4461 = vsel %vm4458, %v4460, %v4456
    %v4462 = vmul.f32 1.0, %v4461
    %v4463 = vrcp.pop %v4265
    %v4464 = vmul.f32 %v4265, %v4463
    %v4465 = vsub.f32 1.0, %v4464
    %v4466 = vmul.f32 %v4463, %v4465
    %v4467 = vadd.f32 %v4463, %v4466
    %vm4468 = vweird.f32 %v4265
    %vm4469 = vweird.f32 %v4463
    %vm4470 = vmor %vm4468, %vm4469
    %v4471 = vsel %vm4470, %v4463, %v4467
    %v4472 = vand.u32 2147483647, %v4265
    %vm4473 = vcmp.eq.f32.partialorder %v4472, 8.507059e+37
    %v4474 = vand.u32 %v4265, 2147483648
    %v4475 = vor.u32 1.1754944e-38, %v4474
    %v4476 = vsel %vm4473, %v4475, %v4471
    %v4477 = vmul.f32 1.0, %v4476
    %v4478 = vrcp.pop %v4266
    %v4479 = vmul.f32 %v4266, %v4478
    %v4480 = vsub.f32 1.0, %v4479
    %v4481 = vmul.f32 %v4478, %v4480
    %v4482 = vadd.f32 %v4478, %v4481
    %vm4483 = vweird.f32 %v4266
    %vm4484 = vweird.f32 %v4478
    %vm4485 = vmor %vm4483, %vm4484
    %v4486 = vsel %vm4485, %v4478, %v4482
    %v4487 = vand.u32 2147483647, %v4266
    %vm4488 = vcmp.eq.f32.partialorder %v4487, 8.507059e+37
    %v4489 = vand.u32 %v4266, 2147483648
    %v4490 = vor.u32 1.1754944e-38, %v4489
    %v4491 = vsel %vm4488, %v4490, %v4486
    %v4492 = vmul.f32 1.0, %v4491
    %v4493 = vrcp.pop %v4267
    %v4494 = vmul.f32 %v4267, %v4493
    %v4495 = vsub.f32 1.0, %v4494
    %v4496 = vmul.f32 %v4493, %v4495
    %v4497 = vadd.f32 %v4493, %v4496
    %vm4498 = vweird.f32 %v4267
    %vm4499 = vweird.f32 %v4493
    %vm4500 = vmor %vm4498, %vm4499
    %v4501 = vsel %vm4500, %v4493, %v4497
    %v4502 = vand.u32 2147483647, %v4267
    %vm4503 = vcmp.eq.f32.partialorder %v4502, 8.507059e+37
    %v4504 = vand.u32 %v4267, 2147483648
    %v4505 = vor.u32 1.1754944e-38, %v4504
    %v4506 = vsel %vm4503, %v4505, %v4501
    %v4507 = vmul.f32 1.0, %v4506
    %v4508 = vmul.f32 %v4282, 1.0614054
    %v4509 = vmul.f32 %v4297, 1.0614054
    %v4510 = vmul.f32 %v4312, 1.0614054
    %v4511 = vmul.f32 %v4327, 1.0614054
    %v4512 = vmul.f32 %v4342, 1.0614054
    %v4513 = vmul.f32 %v4357, 1.0614054
    %v4514 = vmul.f32 %v4372, 1.0614054
    %v4515 = vmul.f32 %v4387, 1.0614054
    %v4516 = vmul.f32 %v4402, 1.0614054
    %v4517 = vmul.f32 %v4417, 1.0614054
    %v4518 = vmul.f32 %v4432, 1.0614054
    %v4519 = vmul.f32 %v4447, 1.0614054
    %v4520 = vmul.f32 %v4462, 1.0614054
    %v4521 = vmul.f32 %v4477, 1.0614054
    %v4522 = vmul.f32 %v4492, 1.0614054
    %v4523 = vmul.f32 %v4507, 1.0614054
    %v4524 = vadd.f32 %v4508, -1.4531521
    %v4525 = vadd.f32 %v4509, -1.4531521
    %v4526 = vadd.f32 %v4510, -1.4531521
    %v4527 = vadd.f32 %v4511, -1.4531521
    %v4528 = vadd.f32 %v4512, -1.4531521
    %v4529 = vadd.f32 %v4513, -1.4531521
    %v4530 = vadd.f32 %v4514, -1.4531521
    %v4531 = vadd.f32 %v4515, -1.4531521
    %v4532 = vadd.f32 %v4516, -1.4531521
    %v4533 = vadd.f32 %v4517, -1.4531521
    %v4534 = vadd.f32 %v4518, -1.4531521
    %v4535 = vadd.f32 %v4519, -1.4531521
    %v4536 = vadd.f32 %v4520, -1.4531521
    %v4537 = vadd.f32 %v4521, -1.4531521
    %v4538 = vadd.f32 %v4522, -1.4531521
    %v4539 = vadd.f32 %v4523, -1.4531521
    %v4540 = vmul.f32 %v4282, %v4524
    %v4541 = vmul.f32 %v4297, %v4525
    %v4542 = vmul.f32 %v4312, %v4526
    %v4543 = vmul.f32 %v4327, %v4527
    %v4544 = vmul.f32 %v4342, %v4528
    %v4545 = vmul.f32 %v4357, %v4529
    %v4546 = vmul.f32 %v4372, %v4530
    %v4547 = vmul.f32 %v4387, %v4531
    %v4548 = vmul.f32 %v4402, %v4532
    %v4549 = vmul.f32 %v4417, %v4533
    %v4550 = vmul.f32 %v4432, %v4534
    %v4551 = vmul.f32 %v4447, %v4535
    %v4552 = vmul.f32 %v4462, %v4536
    %v4553 = vmul.f32 %v4477, %v4537
    %v4554 = vmul.f32 %v4492, %v4538
    %v4555 = vmul.f32 %v4507, %v4539
    %v4556 = vadd.f32 %v4540, 1.4214138
    %v4557 = vadd.f32 %v4541, 1.4214138
    %v4558 = vadd.f32 %v4542, 1.4214138
    %v4559 = vadd.f32 %v4543, 1.4214138
    %v4560 = vadd.f32 %v4544, 1.4214138
    %v4561 = vadd.f32 %v4545, 1.4214138
    %v4562 = vadd.f32 %v4546, 1.4214138
    %v4563 = vadd.f32 %v4547, 1.4214138
    %v4564 = vadd.f32 %v4548, 1.4214138
    %v4565 = vadd.f32 %v4549, 1.4214138
    %v4566 = vadd.f32 %v4550, 1.4214138
    %v4567 = vadd.f32 %v4551, 1.4214138
    %v4568 = vadd.f32 %v4552, 1.4214138
    %v4569 = vadd.f32 %v4553, 1.4214138
    %v4570 = vadd.f32 %v4554, 1.4214138
    %v4571 = vadd.f32 %v4555, 1.4214138
    %v4572 = vmul.f32 %v4282, %v4556
    %v4573 = vmul.f32 %v4297, %v4557
    %v4574 = vmul.f32 %v4312, %v4558
    %v4575 = vmul.f32 %v4327, %v4559
    %v4576 = vmul.f32 %v4342, %v4560
    %v4577 = vmul.f32 %v4357, %v4561
    %v4578 = vmul.f32 %v4372, %v4562
    %v4579 = vmul.f32 %v4387, %v4563
    %v4580 = vmul.f32 %v4402, %v4564
    %v4581 = vmul.f32 %v4417, %v4565
    %v4582 = vmul.f32 %v4432, %v4566
    %v4583 = vmul.f32 %v4447, %v4567
    %v4584 = vmul.f32 %v4462, %v4568
    %v4585 = vmul.f32 %v4477, %v4569
    %v4586 = vmul.f32 %v4492, %v4570
    %v4587 = vmul.f32 %v4507, %v4571
    %v4588 = vadd.f32 %v4572, -0.28449672
    %v4589 = vadd.f32 %v4573, -0.28449672
    %v4590 = vadd.f32 %v4574, -0.28449672
    %v4591 = vadd.f32 %v4575, -0.28449672
    %v4592 = vadd.f32 %v4576, -0.28449672
    %v4593 = vadd.f32 %v4577, -0.28449672
    %v4594 = vadd.f32 %v4578, -0.28449672
    %v4595 = vadd.f32 %v4579, -0.28449672
    %v4596 = vadd.f32 %v4580, -0.28449672
    %v4597 = vadd.f32 %v4581, -0.28449672
    %v4598 = vadd.f32 %v4582, -0.28449672
    %v4599 = vadd.f32 %v4583, -0.28449672
    %v4600 = vadd.f32 %v4584, -0.28449672
    %v4601 = vadd.f32 %v4585, -0.28449672
    %v4602 = vadd.f32 %v4586, -0.28449672
    %v4603 = vadd.f32 %v4587, -0.28449672
    %v4604 = vmul.f32 %v4282, %v4588
    %v4605 = vmul.f32 %v4297, %v4589
    %v4606 = vmul.f32 %v4312, %v4590
    %v4607 = vmul.f32 %v4327, %v4591
    %v4608 = vmul.f32 %v4342, %v4592
    %v4609 = vmul.f32 %v4357, %v4593
    %v4610 = vmul.f32 %v4372, %v4594
    %v4611 = vmul.f32 %v4387, %v4595
    %v4612 = vmul.f32 %v4402, %v4596
    %v4613 = vmul.f32 %v4417, %v4597
    %v4614 = vmul.f32 %v4432, %v4598
    %v4615 = vmul.f32 %v4447, %v4599
    %v4616 = vmul.f32 %v4462, %v4600
    %v4617 = vmul.f32 %v4477, %v4601
    %v4618 = vmul.f32 %v4492, %v4602
    %v4619 = vmul.f32 %v4507, %v4603
    %v4620 = vadd.f32 %v4604, 0.2548296
    %v4621 = vadd.f32 %v4605, 0.2548296
    %v4622 = vadd.f32 %v4606, 0.2548296
    %v4623 = vadd.f32 %v4607, 0.2548296
    %v4624 = vadd.f32 %v4608, 0.2548296
    %v4625 = vadd.f32 %v4609, 0.2548296
    %v4626 = vadd.f32 %v4610, 0.2548296
    %v4627 = vadd.f32 %v4611, 0.2548296
    %v4628 = vadd.f32 %v4612, 0.2548296
    %v4629 = vadd.f32 %v4613, 0.2548296
    %v4630 = vadd.f32 %v4614, 0.2548296
    %v4631 = vadd.f32 %v4615, 0.2548296
    %v4632 = vadd.f32 %v4616, 0.2548296
    %v4633 = vadd.f32 %v4617, 0.2548296
    %v4634 = vadd.f32 %v4618, 0.2548296
    %v4635 = vadd.f32 %v4619, 0.2548296
    %v4636 = vmul.f32 %v4282, %v4620
    %v4637 = vmul.f32 %v4297, %v4621
    %v4638 = vmul.f32 %v4312, %v4622
    %v4639 = vmul.f32 %v4327, %v4623
    %v4640 = vmul.f32 %v4342, %v4624
    %v4641 = vmul.f32 %v4357, %v4625
    %v4642 = vmul.f32 %v4372, %v4626
    %v4643 = vmul.f32 %v4387, %v4627
    %v4644 = vmul.f32 %v4402, %v4628
    %v4645 = vmul.f32 %v4417, %v4629
    %v4646 = vmul.f32 %v4432, %v4630
    %v4647 = vmul.f32 %v4447, %v4631
    %v4648 = vmul.f32 %v4462, %v4632
    %v4649 = vmul.f32 %v4477, %v4633
    %v4650 = vmul.f32 %v4492, %v4634
    %v4651 = vmul.f32 %v4507, %v4635
    %v4652 = vsub.f32 0.0, %v4220
    %v4653 = vsub.f32 0.0, %v4221
    %v4654 = vsub.f32 0.0, %v4222
    %v4655 = vsub.f32 0.0, %v4223
    %v4656 = vsub.f32 0.0, %v4224
    %v4657 = vsub.f32 0.0, %v4225
    %v4658 = vsub.f32 0.0, %v4226
    %v4659 = vsub.f32 0.0, %v4227
    %v4660 = vsub.f32 0.0, %v4228
    %v4661 = vsub.f32 0.0, %v4229
    %v4662 = vsub.f32 0.0, %v4230
    %v4663 = vsub.f32 0.0, %v4231
    %v4664 = vsub.f32 0.0, %v4232
    %v4665 = vsub.f32 0.0, %v4233
    %v4666 = vsub.f32 0.0, %v4234
    %v4667 = vsub.f32 0.0, %v4235
    %v4668 = vmul.f32 %v4652, %v4220
    %v4669 = vmul.f32 %v4653, %v4221
    %v4670 = vmul.f32 %v4654, %v4222
    %v4671 = vmul.f32 %v4655, %v4223
    %v4672 = vmul.f32 %v4656, %v4224
    %v4673 = vmul.f32 %v4657, %v4225
    %v4674 = vmul.f32 %v4658, %v4226
    %v4675 = vmul.f32 %v4659, %v4227
    %v4676 = vmul.f32 %v4660, %v4228
    %v4677 = vmul.f32 %v4661, %v4229
    %v4678 = vmul.f32 %v4662, %v4230
    %v4679 = vmul.f32 %v4663, %v4231
    %v4680 = vmul.f32 %v4664, %v4232
    %v4681 = vmul.f32 %v4665, %v4233
    %v4682 = vmul.f32 %v4666, %v4234
    %v4683 = vmul.f32 %v4667, %v4235
    %v4684 = vmul.f32 %v4668, 1.442695
    %v4685 = vpow.pop %v4684
    %v4686 = vmul.f32 %v4669, 1.442695
    %v4687 = vpow.pop %v4686
    %v4688 = vmul.f32 %v4670, 1.442695
    %v4689 = vpow.pop %v4688
    %v4690 = vmul.f32 %v4671, 1.442695
    %v4691 = vpow.pop %v4690
    %v4692 = vmul.f32 %v4672, 1.442695
    %v4693 = vpow.pop %v4692
    %v4694 = vmul.f32 %v4673, 1.442695
    %v4695 = vpow.pop %v4694
    %v4696 = vmul.f32 %v4674, 1.442695
    %v4697 = vpow.pop %v4696
    %v4698 = vmul.f32 %v4675, 1.442695
    %v4699 = vpow.pop %v4698
    %v4700 = vmul.f32 %v4676, 1.442695
    %v4701 = vpow.pop %v4700
    %v4702 = vmul.f32 %v4677, 1.442695
    %v4703 = vpow.pop %v4702
    %v4704 = vmul.f32 %v4678, 1.442695
    %v4705 = vpow.pop %v4704
    %v4706 = vmul.f32 %v4679, 1.442695
    %v4707 = vpow.pop %v4706
    %v4708 = vmul.f32 %v4680, 1.442695
    %v4709 = vpow.pop %v4708
    %v4710 = vmul.f32 %v4681, 1.442695
    %v4711 = vpow.pop %v4710
    %v4712 = vmul.f32 %v4682, 1.442695
    %v4713 = vpow.pop %v4712
    %v4714 = vmul.f32 %v4683, 1.442695
    %v4715 = vpow.pop %v4714
    %v4716 = vmul.f32 %v4636, %v4685
    %v4717 = vmul.f32 %v4637, %v4687
    %v4718 = vmul.f32 %v4638, %v4689
    %v4719 = vmul.f32 %v4639, %v4691
    %v4720 = vmul.f32 %v4640, %v4693
    %v4721 = vmul.f32 %v4641, %v4695
    %v4722 = vmul.f32 %v4642, %v4697
    %v4723 = vmul.f32 %v4643, %v4699
    %v4724 = vmul.f32 %v4644, %v4701
    %v4725 = vmul.f32 %v4645, %v4703
    %v4726 = vmul.f32 %v4646, %v4705
    %v4727 = vmul.f32 %v4647, %v4707
    %v4728 = vmul.f32 %v4648, %v4709
    %v4729 = vmul.f32 %v4649, %v4711
    %v4730 = vmul.f32 %v4650, %v4713
    %v4731 = vmul.f32 %v4651, %v4715
    %v4732 = vsub.f32 1.0, %v4716
    %v4733 = vsub.f32 1.0, %v4717
    %v4734 = vsub.f32 1.0, %v4718
    %v4735 = vsub.f32 1.0, %v4719
    %v4736 = vsub.f32 1.0, %v4720
    %v4737 = vsub.f32 1.0, %v4721
    %v4738 = vsub.f32 1.0, %v4722
    %v4739 = vsub.f32 1.0, %v4723
    %v4740 = vsub.f32 1.0, %v4724
    %v4741 = vsub.f32 1.0, %v4725
    %v4742 = vsub.f32 1.0, %v4726
    %v4743 = vsub.f32 1.0, %v4727
    %v4744 = vsub.f32 1.0, %v4728
    %v4745 = vsub.f32 1.0, %v4729
    %v4746 = vsub.f32 1.0, %v4730
    %v4747 = vsub.f32 1.0, %v4731
    %vm4748 = vcmp.lt.f32.partialorder %v4204, 0.0
    %vm4749 = vcmp.lt.f32.partialorder %v4205, 0.0
    %vm4750 = vcmp.lt.f32.partialorder %v4206, 0.0
    %vm4751 = vcmp.lt.f32.partialorder %v4207, 0.0
    %vm4752 = vcmp.lt.f32.partialorder %v4208, 0.0
    %vm4753 = vcmp.lt.f32.partialorder %v4209, 0.0
    %vm4754 = vcmp.lt.f32.partialorder %v4210, 0.0
    %vm4755 = vcmp.lt.f32.partialorder %v4211, 0.0
    %vm4756 = vcmp.lt.f32.partialorder %v4212, 0.0
    %vm4757 = vcmp.lt.f32.partialorder %v4213, 0.0
    %vm4758 = vcmp.lt.f32.partialorder %v4214, 0.0
    %vm4759 = vcmp.lt.f32.partialorder %v4215, 0.0
    %vm4760 = vcmp.lt.f32.partialorder %v4216, 0.0
    %vm4761 = vcmp.lt.f32.partialorder %v4217, 0.0
    %vm4762 = vcmp.lt.f32.partialorder %v4218, 0.0
    %vm4763 = vcmp.lt.f32.partialorder %v4219, 0.0
    %v4764 = vsub.f32 0.0, %v4732
    %v4765 = vsub.f32 0.0, %v4733
    %v4766 = vsub.f32 0.0, %v4734
    %v4767 = vsub.f32 0.0, %v4735
    %v4768 = vsub.f32 0.0, %v4736
    %v4769 = vsub.f32 0.0, %v4737
    %v4770 = vsub.f32 0.0, %v4738
    %v4771 = vsub.f32 0.0, %v4739
    %v4772 = vsub.f32 0.0, %v4740
    %v4773 = vsub.f32 0.0, %v4741
    %v4774 = vsub.f32 0.0, %v4742
    %v4775 = vsub.f32 0.0, %v4743
    %v4776 = vsub.f32 0.0, %v4744
    %v4777 = vsub.f32 0.0, %v4745
    %v4778 = vsub.f32 0.0, %v4746
    %v4779 = vsub.f32 0.0, %v4747
    %v4780 = vsel %vm4748, %v4764, %v4732
    %v4781 = vsel %vm4749, %v4765, %v4733
    %v4782 = vsel %vm4750, %v4766, %v4734
    %v4783 = vsel %vm4751, %v4767, %v4735
    %v4784 = vsel %vm4752, %v4768, %v4736
    %v4785 = vsel %vm4753, %v4769, %v4737
    %v4786 = vsel %vm4754, %v4770, %v4738
    %v4787 = vsel %vm4755, %v4771, %v4739
    %v4788 = vsel %vm4756, %v4772, %v4740
    %v4789 = vsel %vm4757, %v4773, %v4741
    %v4790 = vsel %vm4758, %v4774, %v4742
    %v4791 = vsel %vm4759, %v4775, %v4743
    %v4792 = vsel %vm4760, %v4776, %v4744
    %v4793 = vsel %vm4761, %v4777, %v4745
    %v4794 = vsel %vm4762, %v4778, %v4746
    %v4795 = vsel %vm4763, %v4779, %v4747
    %v4796 = vadd.f32 %v4780, 1.0
    %v4797 = vadd.f32 %v4781, 1.0
    %v4798 = vadd.f32 %v4782, 1.0
    %v4799 = vadd.f32 %v4783, 1.0
    %v4800 = vadd.f32 %v4784, 1.0
    %v4801 = vadd.f32 %v4785, 1.0
    %v4802 = vadd.f32 %v4786, 1.0
    %v4803 = vadd.f32 %v4787, 1.0
    %v4804 = vadd.f32 %v4788, 1.0
    %v4805 = vadd.f32 %v4789, 1.0
    %v4806 = vadd.f32 %v4790, 1.0
    %v4807 = vadd.f32 %v4791, 1.0
    %v4808 = vadd.f32 %v4792, 1.0
    %v4809 = vadd.f32 %v4793, 1.0
    %v4810 = vadd.f32 %v4794, 1.0
    %v4811 = vadd.f32 %v4795, 1.0
    %v4812 = vmul.f32 %v4188, %v4796
    %v4813 = vmul.f32 %v4189, %v4797
    %v4814 = vmul.f32 %v4190, %v4798
    %v4815 = vmul.f32 %v4191, %v4799
    %v4816 = vmul.f32 %v4192, %v4800
    %v4817 = vmul.f32 %v4193, %v4801
    %v4818 = vmul.f32 %v4194, %v4802
    %v4819 = vmul.f32 %v4195, %v4803
    %v4820 = vmul.f32 %v4196, %v4804
    %v4821 = vmul.f32 %v4197, %v4805
    %v4822 = vmul.f32 %v4198, %v4806
    %v4823 = vmul.f32 %v4199, %v4807
    %v4824 = vmul.f32 %v4200, %v4808
    %v4825 = vmul.f32 %v4201, %v4809
    %v4826 = vmul.f32 %v4202, %v4810
    %v4827 = vmul.f32 %v4203, %v4811
    %v4844 = vrot.slane %v4813, 6
    %v4845 = vrot.slane %v4814, 4
    %v4846 = vrot.slane %v4815, 2
    %v4847 = vrot.slane %v4817, 6
    %v4848 = vrot.slane %v4818, 4
    %v4849 = vrot.slane %v4819, 2
    %v4850 = vrot.slane %v4821, 6
    %v4851 = vrot.slane %v4822, 4
    %v4852 = vrot.slane %v4823, 2
    %v4853 = vrot.slane %v4825, 6
    %v4854 = vrot.slane %v4826, 4
    %v4855 = vrot.slane %v4827, 2
    %vm4856 = vcmask 1041408
    %v4857 = vsel %vm4856, %v4812, %v4844
    %vm4858 = vcmask 1045508
    %v4859 = vsel %vm4858, %v4845, %v4846
    %vm4860 = vcmask 1043456
    %v4861 = vsel %vm4860, %v4857, %v4859
    %v4862 = vsel %vm4856, %v4816, %v4847
    %v4863 = vsel %vm4858, %v4848, %v4849
    %v4864 = vsel %vm4860, %v4862, %v4863
    %v4865 = vsel %vm4856, %v4820, %v4850
    %v4866 = vsel %vm4858, %v4851, %v4852
    %v4867 = vsel %vm4860, %v4865, %v4866
    %v4868 = vsel %vm4856, %v4824, %v4853
    %v4869 = vsel %vm4858, %v4854, %v4855
    %v4870 = vsel %vm4860, %v4868, %v4869
    %4875 = vst [vmem:[%s5] sm:$0xff] %v4861
    %4876 = vst [vmem:[%s5 + $0x8] sm:$0xff] %v4864
    %4877 = vst [vmem:[%s5 + $0x10] sm:$0xff] %v4867
    %4878 = vst [vmem:[%s5 + $0x18] sm:$0xff] %v4870
    // Predicated region
    $region30: #{dse_layer_forward.1} parent=1 // pred_check
      _
    $region31: #{dse_layer_forward.1} parent=1 // pred_check_branch
      %4880 = sbr.rel (0) target = $region33
    $region32: #{dse_layer_forward.1} parent=1 // pred_region
      _
    $region33: #{dse_layer_forward.1} parent=1 // pred_fallthru
      _
    // Predicated region
    $region34: #{dse_layer_forward.1} parent=1 // pred_check
      _
    $region35: #{dse_layer_forward.1} parent=1 // pred_check_branch
      %4882 = sbr.rel (0) target = $region37
    $region36: #{dse_layer_forward.1} parent=1 // pred_region
      _
    $region37: #{dse_layer_forward.1} parent=1 // pred_fallthru
      _
    %4883 = vsyncpa [#allocation3], 1
    %4884 = vsyncpa [#allocation5], 1

</llo_original>
